<compile_context>
chip_gen: v7x
topology: tpu7x:2x2x1
jax: 0.10.0
libtpu: 0.0.40
codegen_flags: <defaults>
</compile_context>

<pallas_src>
import jax
import jax.numpy as jnp
from jax.experimental import pallas as pl
from jax.experimental.pallas import tpu as pltpu  # noqa: F401  (TPU backend)

# ----------------------------- configuration (small demo sizes) -----------------------------
C1 = 64                      # encoder hidden channels (stand-in for encoder.hidden_channels)
C2 = 128                     # branch width p  (= last trunk width, as DeepONetCartesianProd requires)
TRUNK = (1, 64, 64, 64, C2)  # [1] + decoder  (scaled down from [1, 128, 128, 128, 512])
NQ = 128                     # n_frequencies  (scaled down from 300; keeps the output lane-dense)


# ----------------------------- fused Pallas kernel -----------------------------
def _deeponet_kernel(x9_ref, pool_ref, q_ref,
                     wc1_ref, bc1_ref, wr1_ref, br1_ref, wr2_ref, br2_ref,
                     wc2_ref, bc2_ref,
                     wt0_ref, bt0_ref, wt1_ref, bt1_ref, wt2_ref, bt2_ref,
                     wt3_ref, bt3_ref, b0_ref, out_ref):
    f32 = jnp.float32

    def dot(a, b):
        return jnp.dot(a, b, preferred_element_type=f32)

    def relu(v):
        return jnp.maximum(v, 0.0)

    # ---- branch: ResNet-style encoder stand-in, pool=True, flatten ----
    h = relu(dot(x9_ref[...], wc1_ref[...]) + bc1_ref[...])        # 3x3 conv     [B*HW, C1]
    r = relu(dot(h, wr1_ref[...]) + br1_ref[...])                  # 1x1 residual block
    h = relu(h + dot(r, wr2_ref[...]) + br2_ref[...])
    h = relu(dot(h, wc2_ref[...]) + bc2_ref[...])                  # 1x1 conv     [B*HW, C2]
    branch = dot(pool_ref[...], h)                                 # global avg pool -> [B, C2]

    # ---- trunk: FNN([1] + decoder, relu); deepxde applies relu to the trunk output too ----
    t = relu(q_ref[...] * wt0_ref[...] + bt0_ref[...])             # [NQ,1]x[1,64] (K=1 -> broadcast)
    t = relu(dot(t, wt1_ref[...]) + bt1_ref[...])
    t = relu(dot(t, wt2_ref[...]) + bt2_ref[...])
    t = relu(dot(t, wt3_ref[...]) + bt3_ref[...])                  # [NQ, C2]

    # ---- DeepONetCartesianProd combine: einsum('bi,ni->bn') + scalar bias ----
    out_ref[...] = (jax.lax.dot_general(
        branch, t, dimension_numbers=(((1,), (1,)), ((), ())),
        preferred_element_type=f32) + b0_ref[...]).astype(out_ref.dtype)


# ----------------------------- JAX wrapper -----------------------------
def deeponet_forward(params, x):
    """Full DeepONet forward: NCHW image -> [B, NQ] frequency response (one pallas_call)."""
    B, C, H, W = x.shape
    # im2col for the single 3x3 / pad=1 conv of the branch encoder (layout-only XLA work).
    xp = jnp.pad(x, ((0, 0), (0, 0), (1, 1), (1, 1)))
    cols = [xp[:, :, dy:dy + H, dx:dx + W] for dy in range(3) for dx in range(3)]
    x9 = jnp.stack(cols, axis=2)                                    # [B, C, 9, H, W]
    x9 = x9.transpose(0, 3, 4, 1, 2).reshape(B * H * W, C * 9)      # [B*HW, 9*C]
    # Global average pool expressed as a matmul (keeps the kernel free of reshapes):
    pool = jnp.repeat(jnp.eye(B, dtype=jnp.float32), H * W, axis=1) / float(H * W)  # [B, B*HW]
    args = [x9, pool, params["queries"]] + list(params["weights"])
    return pl.pallas_call(
        _deeponet_kernel,
        out_shape=jax.ShapeDtypeStruct((B, NQ), jnp.float32),
        # No grid: single invocation, every operand fully VMEM-resident (<1 MiB << 64 MiB).
    )(*args)


# ----------------------------- parameter init -----------------------------
def _glorot(key, fan_in, fan_out):
    std = (2.0 / (fan_in + fan_out)) ** 0.5
    return std * jax.random.normal(key, (fan_in, fan_out), jnp.float32)


def _zeros_b(n):
    return jnp.zeros((1, n), jnp.float32)


def init_params(key, c_in):
    ks = jax.random.split(key, 8)
    w = []
    # branch encoder (resnet stand-in)
    w += [_glorot(ks[0], 9 * c_in, C1), _zeros_b(C1)]     # 3x3 conv (im2col)
    w += [_glorot(ks[1], C1, C1), _zeros_b(C1)]           # residual block, conv a
    w += [_glorot(ks[2], C1, C1), _zeros_b(C1)]           # residual block, conv b
    w += [_glorot(ks[3], C1, C2), _zeros_b(C2)]           # 1x1 conv to branch width p
    # trunk FNN: [1] + decoder, Glorot-normal init, zero bias
    for i in range(4):
        w += [_glorot(ks[4 + i], TRUNK[i], TRUNK[i + 1]), _zeros_b(TRUNK[i + 1])]
    w += [jnp.zeros((1, 1), jnp.float32)]                 # DeepONetCartesianProd bias b
    queries = jnp.linspace(-1.0, 1.0, NQ, dtype=jnp.float32).reshape(NQ, 1)
    return {"weights": w, "queries": queries}


# ----------------------------- main -----------------------------
if __name__ == "__main__":
    key = jax.random.PRNGKey(0)
    kp, kx = jax.random.split(key)
    B, C, H, W = 2, 4, 16, 16
    params = init_params(kp, C)
    x = jax.random.normal(kx, (B, C, H, W), jnp.float32)   # NCHW, like PyTorch

    out = jax.block_until_ready(jax.jit(deeponet_forward)(params, x))
    assert out.shape == (B, NQ), out.shape
    assert bool(jnp.all(jnp.isfinite(out)))
    print("KERNEL_OK")
</pallas_src>

<mosaic_0001>
module attributes {stable_mosaic.version = 11 : i64} {
  func.func @_deeponet_kernel(%arg0: memref<512x36xf32, #tpu.memory_space<vmem>>, %arg1: memref<2x512xf32, #tpu.memory_space<vmem>>, %arg2: memref<128x1xf32, #tpu.memory_space<vmem>>, %arg3: memref<36x64xf32, #tpu.memory_space<vmem>>, %arg4: memref<1x64xf32, #tpu.memory_space<vmem>>, %arg5: memref<64x64xf32, #tpu.memory_space<vmem>>, %arg6: memref<1x64xf32, #tpu.memory_space<vmem>>, %arg7: memref<64x64xf32, #tpu.memory_space<vmem>>, %arg8: memref<1x64xf32, #tpu.memory_space<vmem>>, %arg9: memref<64x128xf32, #tpu.memory_space<vmem>>, %arg10: memref<1x128xf32, #tpu.memory_space<vmem>>, %arg11: memref<1x64xf32, #tpu.memory_space<vmem>>, %arg12: memref<1x64xf32, #tpu.memory_space<vmem>>, %arg13: memref<64x64xf32, #tpu.memory_space<vmem>>, %arg14: memref<1x64xf32, #tpu.memory_space<vmem>>, %arg15: memref<64x64xf32, #tpu.memory_space<vmem>>, %arg16: memref<1x64xf32, #tpu.memory_space<vmem>>, %arg17: memref<64x128xf32, #tpu.memory_space<vmem>>, %arg18: memref<1x128xf32, #tpu.memory_space<vmem>>, %arg19: memref<1x1xf32, #tpu.memory_space<vmem>>, %arg20: memref<2x128xf32, #tpu.memory_space<vmem>>) attributes {dimension_semantics = [], scalar_prefetch = 0 : i64, scratch_operands = 0 : i64, tpu.core_type = #tpu.core_type<tc>} {
    %c0 = arith.constant 0 : index
    %c0_0 = arith.constant 0 : index
    %0 = vector.load %arg0[%c0, %c0_0] : memref<512x36xf32, #tpu.memory_space<vmem>>, vector<512x36xf32>
    %c0_1 = arith.constant 0 : index
    %c0_2 = arith.constant 0 : index
    %1 = vector.load %arg3[%c0_1, %c0_2] : memref<36x64xf32, #tpu.memory_space<vmem>>, vector<36x64xf32>
    %cst = arith.constant dense<0.000000e+00> : vector<512x64xf32>
    %2 = tpu.matmul %0, %1, %cst {dimension_numbers = #tpu.dot_dimension_numbers<[1], [0], [0], [1], [0, 0, 1, 1], [], []>} : vector<512x36xf32>, vector<36x64xf32>, vector<512x64xf32> -> vector<512x64xf32>
    %c0_3 = arith.constant 0 : index
    %c0_4 = arith.constant 0 : index
    %3 = vector.load %arg4[%c0_3, %c0_4] : memref<1x64xf32, #tpu.memory_space<vmem>>, vector<1x64xf32>
    %4 = vector.broadcast %3 : vector<1x64xf32> to vector<512x64xf32>
    %5 = arith.addf %2, %4 : vector<512x64xf32>
    %cst_5 = arith.constant 0.000000e+00 : f32
    %6 = vector.broadcast %cst_5 : f32 to vector<512x64xf32>
    %7 = arith.maximumf %5, %6 : vector<512x64xf32>
    %c0_6 = arith.constant 0 : index
    %c0_7 = arith.constant 0 : index
    %8 = vector.load %arg5[%c0_6, %c0_7] : memref<64x64xf32, #tpu.memory_space<vmem>>, vector<64x64xf32>
    %cst_8 = arith.constant dense<0.000000e+00> : vector<512x64xf32>
    %9 = tpu.matmul %7, %8, %cst_8 {dimension_numbers = #tpu.dot_dimension_numbers<[1], [0], [0], [1], [0, 0, 1, 1], [], []>} : vector<512x64xf32>, vector<64x64xf32>, vector<512x64xf32> -> vector<512x64xf32>
    %c0_9 = arith.constant 0 : index
    %c0_10 = arith.constant 0 : index
    %10 = vector.load %arg6[%c0_9, %c0_10] : memref<1x64xf32, #tpu.memory_space<vmem>>, vector<1x64xf32>
    %11 = vector.broadcast %10 : vector<1x64xf32> to vector<512x64xf32>
    %12 = arith.addf %9, %11 : vector<512x64xf32>
    %cst_11 = arith.constant 0.000000e+00 : f32
    %13 = vector.broadcast %cst_11 : f32 to vector<512x64xf32>
    %14 = arith.maximumf %12, %13 : vector<512x64xf32>
    %c0_12 = arith.constant 0 : index
    %c0_13 = arith.constant 0 : index
    %15 = vector.load %arg7[%c0_12, %c0_13] : memref<64x64xf32, #tpu.memory_space<vmem>>, vector<64x64xf32>
    %cst_14 = arith.constant dense<0.000000e+00> : vector<512x64xf32>
    %16 = tpu.matmul %14, %15, %cst_14 {dimension_numbers = #tpu.dot_dimension_numbers<[1], [0], [0], [1], [0, 0, 1, 1], [], []>} : vector<512x64xf32>, vector<64x64xf32>, vector<512x64xf32> -> vector<512x64xf32>
    %17 = arith.addf %7, %16 : vector<512x64xf32>
    %c0_15 = arith.constant 0 : index
    %c0_16 = arith.constant 0 : index
    %18 = vector.load %arg8[%c0_15, %c0_16] : memref<1x64xf32, #tpu.memory_space<vmem>>, vector<1x64xf32>
    %19 = vector.broadcast %18 : vector<1x64xf32> to vector<512x64xf32>
    %20 = arith.addf %17, %19 : vector<512x64xf32>
    %cst_17 = arith.constant 0.000000e+00 : f32
    %21 = vector.broadcast %cst_17 : f32 to vector<512x64xf32>
    %22 = arith.maximumf %20, %21 : vector<512x64xf32>
    %c0_18 = arith.constant 0 : index
    %c0_19 = arith.constant 0 : index
    %23 = vector.load %arg9[%c0_18, %c0_19] : memref<64x128xf32, #tpu.memory_space<vmem>>, vector<64x128xf32>
    %cst_20 = arith.constant dense<0.000000e+00> : vector<512x128xf32>
    %24 = tpu.matmul %22, %23, %cst_20 {dimension_numbers = #tpu.dot_dimension_numbers<[1], [0], [0], [1], [0, 0, 1, 1], [], []>} : vector<512x64xf32>, vector<64x128xf32>, vector<512x128xf32> -> vector<512x128xf32>
    %c0_21 = arith.constant 0 : index
    %c0_22 = arith.constant 0 : index
    %25 = vector.load %arg10[%c0_21, %c0_22] : memref<1x128xf32, #tpu.memory_space<vmem>>, vector<1x128xf32>
    %26 = vector.broadcast %25 : vector<1x128xf32> to vector<512x128xf32>
    %27 = arith.addf %24, %26 : vector<512x128xf32>
    %cst_23 = arith.constant 0.000000e+00 : f32
    %28 = vector.broadcast %cst_23 : f32 to vector<512x128xf32>
    %29 = arith.maximumf %27, %28 : vector<512x128xf32>
    %c0_24 = arith.constant 0 : index
    %c0_25 = arith.constant 0 : index
    %30 = vector.load %arg1[%c0_24, %c0_25] : memref<2x512xf32, #tpu.memory_space<vmem>>, vector<2x512xf32>
    %cst_26 = arith.constant dense<0.000000e+00> : vector<2x128xf32>
    %31 = tpu.matmul %30, %29, %cst_26 {dimension_numbers = #tpu.dot_dimension_numbers<[1], [0], [0], [1], [0, 0, 1, 1], [], []>} : vector<2x512xf32>, vector<512x128xf32>, vector<2x128xf32> -> vector<2x128xf32>
    %c0_27 = arith.constant 0 : index
    %c0_28 = arith.constant 0 : index
    %32 = vector.load %arg2[%c0_27, %c0_28] : memref<128x1xf32, #tpu.memory_space<vmem>>, vector<128x1xf32>
    %c0_29 = arith.constant 0 : index
    %c0_30 = arith.constant 0 : index
    %33 = vector.load %arg11[%c0_29, %c0_30] : memref<1x64xf32, #tpu.memory_space<vmem>>, vector<1x64xf32>
    %34 = vector.broadcast %32 : vector<128x1xf32> to vector<128x64xf32>
    %35 = vector.broadcast %33 : vector<1x64xf32> to vector<128x64xf32>
    %36 = arith.mulf %34, %35 : vector<128x64xf32>
    %c0_31 = arith.constant 0 : index
    %c0_32 = arith.constant 0 : index
    %37 = vector.load %arg12[%c0_31, %c0_32] : memref<1x64xf32, #tpu.memory_space<vmem>>, vector<1x64xf32>
    %38 = vector.broadcast %37 : vector<1x64xf32> to vector<128x64xf32>
    %39 = arith.addf %36, %38 : vector<128x64xf32>
    %cst_33 = arith.constant 0.000000e+00 : f32
    %40 = vector.broadcast %cst_33 : f32 to vector<128x64xf32>
    %41 = arith.maximumf %39, %40 : vector<128x64xf32>
    %c0_34 = arith.constant 0 : index
    %c0_35 = arith.constant 0 : index
    %42 = vector.load %arg13[%c0_34, %c0_35] : memref<64x64xf32, #tpu.memory_space<vmem>>, vector<64x64xf32>
    %cst_36 = arith.constant dense<0.000000e+00> : vector<128x64xf32>
    %43 = tpu.matmul %41, %42, %cst_36 {dimension_numbers = #tpu.dot_dimension_numbers<[1], [0], [0], [1], [0, 0, 1, 1], [], []>} : vector<128x64xf32>, vector<64x64xf32>, vector<128x64xf32> -> vector<128x64xf32>
    %c0_37 = arith.constant 0 : index
    %c0_38 = arith.constant 0 : index
    %44 = vector.load %arg14[%c0_37, %c0_38] : memref<1x64xf32, #tpu.memory_space<vmem>>, vector<1x64xf32>
    %45 = vector.broadcast %44 : vector<1x64xf32> to vector<128x64xf32>
    %46 = arith.addf %43, %45 : vector<128x64xf32>
    %cst_39 = arith.constant 0.000000e+00 : f32
    %47 = vector.broadcast %cst_39 : f32 to vector<128x64xf32>
    %48 = arith.maximumf %46, %47 : vector<128x64xf32>
    %c0_40 = arith.constant 0 : index
    %c0_41 = arith.constant 0 : index
    %49 = vector.load %arg15[%c0_40, %c0_41] : memref<64x64xf32, #tpu.memory_space<vmem>>, vector<64x64xf32>
    %cst_42 = arith.constant dense<0.000000e+00> : vector<128x64xf32>
    %50 = tpu.matmul %48, %49, %cst_42 {dimension_numbers = #tpu.dot_dimension_numbers<[1], [0], [0], [1], [0, 0, 1, 1], [], []>} : vector<128x64xf32>, vector<64x64xf32>, vector<128x64xf32> -> vector<128x64xf32>
    %c0_43 = arith.constant 0 : index
    %c0_44 = arith.constant 0 : index
    %51 = vector.load %arg16[%c0_43, %c0_44] : memref<1x64xf32, #tpu.memory_space<vmem>>, vector<1x64xf32>
    %52 = vector.broadcast %51 : vector<1x64xf32> to vector<128x64xf32>
    %53 = arith.addf %50, %52 : vector<128x64xf32>
    %cst_45 = arith.constant 0.000000e+00 : f32
    %54 = vector.broadcast %cst_45 : f32 to vector<128x64xf32>
    %55 = arith.maximumf %53, %54 : vector<128x64xf32>
    %c0_46 = arith.constant 0 : index
    %c0_47 = arith.constant 0 : index
    %56 = vector.load %arg17[%c0_46, %c0_47] : memref<64x128xf32, #tpu.memory_space<vmem>>, vector<64x128xf32>
    %cst_48 = arith.constant dense<0.000000e+00> : vector<128x128xf32>
    %57 = tpu.matmul %55, %56, %cst_48 {dimension_numbers = #tpu.dot_dimension_numbers<[1], [0], [0], [1], [0, 0, 1, 1], [], []>} : vector<128x64xf32>, vector<64x128xf32>, vector<128x128xf32> -> vector<128x128xf32>
    %c0_49 = arith.constant 0 : index
    %c0_50 = arith.constant 0 : index
    %58 = vector.load %arg18[%c0_49, %c0_50] : memref<1x128xf32, #tpu.memory_space<vmem>>, vector<1x128xf32>
    %59 = vector.broadcast %58 : vector<1x128xf32> to vector<128x128xf32>
    %60 = arith.addf %57, %59 : vector<128x128xf32>
    %cst_51 = arith.constant 0.000000e+00 : f32
    %61 = vector.broadcast %cst_51 : f32 to vector<128x128xf32>
    %62 = arith.maximumf %60, %61 : vector<128x128xf32>
    %cst_52 = arith.constant dense<0.000000e+00> : vector<2x128xf32>
    %63 = tpu.matmul %31, %62, %cst_52 {dimension_numbers = #tpu.dot_dimension_numbers<[1], [1], [0], [0], [0, 0, 1, 0], [], []>} : vector<2x128xf32>, vector<128x128xf32>, vector<2x128xf32> -> vector<2x128xf32>
    %c0_53 = arith.constant 0 : index
    %c0_54 = arith.constant 0 : index
    %64 = vector.load %arg19[%c0_53, %c0_54] : memref<1x1xf32, #tpu.memory_space<vmem>>, vector<1x1xf32>
    %65 = vector.broadcast %64 : vector<1x1xf32> to vector<2x128xf32>
    %66 = arith.addf %63, %65 : vector<2x128xf32>
    %c0_55 = arith.constant 0 : index
    %c0_56 = arith.constant 0 : index
    %67 = vector.load %arg20[%c0_55, %c0_56] : memref<2x128xf32, #tpu.memory_space<vmem>>, vector<2x128xf32>
    tpu.vector_store %arg20[%c0_55, %c0_56], %66 {strides = array<i32>} : memref<2x128xf32, #tpu.memory_space<vmem>>, vector<2x128xf32>,
    return
  }
}

</mosaic_0001>

<llo_original>
// kernel: deeponet_forward.1
$region0: #{deeponet_forward.1}
  #allocation0 [shape = 'u32[]', space=smem, size = 0x4, offset = 0x4, fixed_abs, tag = 'smem constant byte address 0x4 - core index']
  #allocation1 [shape = 'u32[144,128]{1,0:T(1,128)}', space=vmem, size = 0x12000, scoped, tag = 'internal scratch']
  #allocation2 [shape = 'f32[1,1]{1,0:T(1,128)S(1)}', space=vmem, size = 0x200, scoped, tag = 'scoped memory for deeponet_forward.1']
  %s0 = inlined_call_operand.vmem [shape: f32[512,36], index: 0, kind: input, shape index: {}]
  %s1 = inlined_call_operand.vmem [shape: f32[2,512], index: 1, kind: input, shape index: {}]
  %s2 = inlined_call_operand.vmem [shape: f32[128,1], index: 2, kind: input, shape index: {}]
  %s3 = inlined_call_operand.vmem [shape: f32[36,64], index: 3, kind: input, shape index: {}]
  %s4 = inlined_call_operand.vmem [shape: f32[1,64], index: 4, kind: input, shape index: {}]
  %s5 = inlined_call_operand.vmem [shape: f32[64,64], index: 5, kind: input, shape index: {}]
  %s6 = inlined_call_operand.vmem [shape: f32[1,64], index: 6, kind: input, shape index: {}]
  %s7 = inlined_call_operand.vmem [shape: f32[64,64], index: 7, kind: input, shape index: {}]
  %s8 = inlined_call_operand.vmem [shape: f32[1,64], index: 8, kind: input, shape index: {}]
  %s9 = inlined_call_operand.vmem [shape: f32[64,128], index: 9, kind: input, shape index: {}]
  %s10 = inlined_call_operand.vmem [shape: f32[1,128], index: 10, kind: input, shape index: {}]
  %s11 = inlined_call_operand.vmem [shape: f32[1,64], index: 11, kind: input, shape index: {}]
  %s12 = inlined_call_operand.vmem [shape: f32[1,64], index: 12, kind: input, shape index: {}]
  %s13 = inlined_call_operand.vmem [shape: f32[64,64], index: 13, kind: input, shape index: {}]
  %s14 = inlined_call_operand.vmem [shape: f32[1,64], index: 14, kind: input, shape index: {}]
  %s15 = inlined_call_operand.vmem [shape: f32[64,64], index: 15, kind: input, shape index: {}]
  %s16 = inlined_call_operand.vmem [shape: f32[1,64], index: 16, kind: input, shape index: {}]
  %s17 = inlined_call_operand.vmem [shape: f32[64,128], index: 17, kind: input, shape index: {}]
  %s18 = inlined_call_operand.vmem [shape: f32[1,128], index: 18, kind: input, shape index: {}]
  %s19 = inlined_call_operand.<no memory space> [shape: f32[1,1], index: 19, kind: input, shape index: {}]
  %s20 = inlined_call_operand.hbm [shape: f32[2,128], index: 20, kind: output, shape index: {}]
  %s21 = sld [smem:[#allocation0]]
  $region90: #{deeponet_forward.1} parent=0
    _
  %s23 = ssub.s32 1, %s21
  %s24 = scalar_select 0, %s23, %s21
  %v25 = vstv %s19
  %26 = vst [vmem:[#allocation2] sm:$0x1] %v25
  $region1: #{deeponet_forward.1} parent=0
    #allocation3 [shape = 'u8[1024]{0}', space=vmem, size = 0x400, scoped, tag = 'output window, operand 0, single buffered']
    #allocation4 [shape = 's32[1]{0}', space=sflag, size = 0x4, scoped, tag = 'scoped memory for deeponet_forward.1']
    %27 = vsyncpa [#allocation4], 0
    // Predicated region
    $region2: #{deeponet_forward.1} parent=1 // pred_check
      _
    $region3: #{deeponet_forward.1} parent=1 // pred_check_branch
      %29 = sbr.rel (0) target = $region5
    $region4: #{deeponet_forward.1} parent=1 // pred_region
      _
    $region5: #{deeponet_forward.1} parent=1 // pred_fallthru
      _
    // Predicated region
    $region6: #{deeponet_forward.1} parent=1 // pred_check
      _
    $region7: #{deeponet_forward.1} parent=1 // pred_check_branch
      %31 = sbr.rel (0) target = $region9
    $region8: #{deeponet_forward.1} parent=1 // pred_region
      _
    $region9: #{deeponet_forward.1} parent=1 // pred_fallthru
      _
    // Predicated region
    $region10: #{deeponet_forward.1} parent=1 // pred_check
      _
    $region11: #{deeponet_forward.1} parent=1 // pred_check_branch
      %33 = sbr.rel (0) target = $region13
    $region12: #{deeponet_forward.1} parent=1 // pred_region
      _
    $region13: #{deeponet_forward.1} parent=1 // pred_fallthru
      _
    // Predicated region
    $region14: #{deeponet_forward.1} parent=1 // pred_check
      _
    $region15: #{deeponet_forward.1} parent=1 // pred_check_branch
      %35 = sbr.rel (0) target = $region17
    $region16: #{deeponet_forward.1} parent=1 // pred_region
      _
    $region17: #{deeponet_forward.1} parent=1 // pred_fallthru
      _
    // Predicated region
    $region18: #{deeponet_forward.1} parent=1 // pred_check
      _
    $region19: #{deeponet_forward.1} parent=1 // pred_check_branch
      %37 = sbr.rel (0) target = $region21
    $region20: #{deeponet_forward.1} parent=1 // pred_region
      _
    $region21: #{deeponet_forward.1} parent=1 // pred_fallthru
      _
    // Predicated region
    $region22: #{deeponet_forward.1} parent=1 // pred_check
      _
    $region23: #{deeponet_forward.1} parent=1 // pred_check_branch
      %39 = sbr.rel (0) target = $region25
    $region24: #{deeponet_forward.1} parent=1 // pred_region
      _
    $region25: #{deeponet_forward.1} parent=1 // pred_fallthru
      _
    // Predicated region
    $region26: #{deeponet_forward.1} parent=1 // pred_check
      _
    $region27: #{deeponet_forward.1} parent=1 // pred_check_branch
      %41 = sbr.rel (0) target = $region29
    $region28: #{deeponet_forward.1} parent=1 // pred_region
      _
    $region29: #{deeponet_forward.1} parent=1 // pred_fallthru
      _
    // Predicated region
    $region30: #{deeponet_forward.1} parent=1 // pred_check
      _
    $region31: #{deeponet_forward.1} parent=1 // pred_check_branch
      %43 = sbr.rel (0) target = $region33
    $region32: #{deeponet_forward.1} parent=1 // pred_region
      _
    $region33: #{deeponet_forward.1} parent=1 // pred_fallthru
      _
    // Predicated region
    $region34: #{deeponet_forward.1} parent=1 // pred_check
      _
    $region35: #{deeponet_forward.1} parent=1 // pred_check_branch
      %45 = sbr.rel (0) target = $region37
    $region36: #{deeponet_forward.1} parent=1 // pred_region
      _
    $region37: #{deeponet_forward.1} parent=1 // pred_fallthru
      _
    // Predicated region
    $region38: #{deeponet_forward.1} parent=1 // pred_check
      _
    $region39: #{deeponet_forward.1} parent=1 // pred_check_branch
      %47 = sbr.rel (0) target = $region41
    $region40: #{deeponet_forward.1} parent=1 // pred_region
      _
    $region41: #{deeponet_forward.1} parent=1 // pred_fallthru
      _
    // Predicated region
    $region42: #{deeponet_forward.1} parent=1 // pred_check
      _
    $region43: #{deeponet_forward.1} parent=1 // pred_check_branch
      %49 = sbr.rel (0) target = $region45
    $region44: #{deeponet_forward.1} parent=1 // pred_region
      _
    $region45: #{deeponet_forward.1} parent=1 // pred_fallthru
      _
    // Predicated region
    $region46: #{deeponet_forward.1} parent=1 // pred_check
      _
    $region47: #{deeponet_forward.1} parent=1 // pred_check_branch
      %51 = sbr.rel (0) target = $region49
    $region48: #{deeponet_forward.1} parent=1 // pred_region
      _
    $region49: #{deeponet_forward.1} parent=1 // pred_fallthru
      _
    // Predicated region
    $region50: #{deeponet_forward.1} parent=1 // pred_check
      _
    $region51: #{deeponet_forward.1} parent=1 // pred_check_branch
      %53 = sbr.rel (0) target = $region53
    $region52: #{deeponet_forward.1} parent=1 // pred_region
      _
    $region53: #{deeponet_forward.1} parent=1 // pred_fallthru
      _
    // Predicated region
    $region54: #{deeponet_forward.1} parent=1 // pred_check
      _
    $region55: #{deeponet_forward.1} parent=1 // pred_check_branch
      %55 = sbr.rel (0) target = $region57
    $region56: #{deeponet_forward.1} parent=1 // pred_region
      _
    $region57: #{deeponet_forward.1} parent=1 // pred_fallthru
      _
    // Predicated region
    $region58: #{deeponet_forward.1} parent=1 // pred_check
      _
    $region59: #{deeponet_forward.1} parent=1 // pred_check_branch
      %57 = sbr.rel (0) target = $region61
    $region60: #{deeponet_forward.1} parent=1 // pred_region
      _
    $region61: #{deeponet_forward.1} parent=1 // pred_fallthru
      _
    // Predicated region
    $region62: #{deeponet_forward.1} parent=1 // pred_check
      _
    $region63: #{deeponet_forward.1} parent=1 // pred_check_branch
      %59 = sbr.rel (0) target = $region65
    $region64: #{deeponet_forward.1} parent=1 // pred_region
      _
    $region65: #{deeponet_forward.1} parent=1 // pred_fallthru
      _
    // Predicated region
    $region66: #{deeponet_forward.1} parent=1 // pred_check
      _
    $region67: #{deeponet_forward.1} parent=1 // pred_check_branch
      %61 = sbr.rel (0) target = $region69
    $region68: #{deeponet_forward.1} parent=1 // pred_region
      _
    $region69: #{deeponet_forward.1} parent=1 // pred_fallthru
      _
    // Predicated region
    $region70: #{deeponet_forward.1} parent=1 // pred_check
      _
    $region71: #{deeponet_forward.1} parent=1 // pred_check_branch
      %63 = sbr.rel (0) target = $region73
    $region72: #{deeponet_forward.1} parent=1 // pred_region
      _
    $region73: #{deeponet_forward.1} parent=1 // pred_fallthru
      _
    // Predicated region
    $region74: #{deeponet_forward.1} parent=1 // pred_check
      _
    $region75: #{deeponet_forward.1} parent=1 // pred_check_branch
      %65 = sbr.rel (0) target = $region77
    $region76: #{deeponet_forward.1} parent=1 // pred_region
      _
    $region77: #{deeponet_forward.1} parent=1 // pred_fallthru
      _
    // Predicated region
    $region78: #{deeponet_forward.1} parent=1 // pred_check
      _
    $region79: #{deeponet_forward.1} parent=1 // pred_check_branch
      %67 = sbr.rel (0) target = $region81
    $region80: #{deeponet_forward.1} parent=1 // pred_region
      _
    $region81: #{deeponet_forward.1} parent=1 // pred_fallthru
      _
    %v68 = vld [vmem:[%s0] sm:$0xff]
    %v69 = vld [vmem:[%s0 + $0x8] sm:$0xff]
    %v70 = vld [vmem:[%s0 + $0x10] sm:$0xff]
    %v71 = vld [vmem:[%s0 + $0x18] sm:$0xff]
    %v72 = vld [vmem:[%s0 + $0x20] sm:$0xff]
    %v73 = vld [vmem:[%s0 + $0x28] sm:$0xff]
    %v74 = vld [vmem:[%s0 + $0x30] sm:$0xff]
    %v75 = vld [vmem:[%s0 + $0x38] sm:$0xff]
    %v76 = vld [vmem:[%s0 + $0x40] sm:$0xff]
    %v77 = vld [vmem:[%s0 + $0x48] sm:$0xff]
    %v78 = vld [vmem:[%s0 + $0x50] sm:$0xff]
    %v79 = vld [vmem:[%s0 + $0x58] sm:$0xff]
    %v80 = vld [vmem:[%s0 + $0x60] sm:$0xff]
    %v81 = vld [vmem:[%s0 + $0x68] sm:$0xff]
    %v82 = vld [vmem:[%s0 + $0x70] sm:$0xff]
    %v83 = vld [vmem:[%s0 + $0x78] sm:$0xff]
    %v84 = vld [vmem:[%s0 + $0x80] sm:$0xff]
    %v85 = vld [vmem:[%s0 + $0x88] sm:$0xff]
    %v86 = vld [vmem:[%s0 + $0x90] sm:$0xff]
    %v87 = vld [vmem:[%s0 + $0x98] sm:$0xff]
    %v88 = vld [vmem:[%s0 + $0xa0] sm:$0xff]
    %v89 = vld [vmem:[%s0 + $0xa8] sm:$0xff]
    %v90 = vld [vmem:[%s0 + $0xb0] sm:$0xff]
    %v91 = vld [vmem:[%s0 + $0xb8] sm:$0xff]
    %v92 = vld [vmem:[%s0 + $0xc0] sm:$0xff]
    %v93 = vld [vmem:[%s0 + $0xc8] sm:$0xff]
    %v94 = vld [vmem:[%s0 + $0xd0] sm:$0xff]
    %v95 = vld [vmem:[%s0 + $0xd8] sm:$0xff]
    %v96 = vld [vmem:[%s0 + $0xe0] sm:$0xff]
    %v97 = vld [vmem:[%s0 + $0xe8] sm:$0xff]
    %v98 = vld [vmem:[%s0 + $0xf0] sm:$0xff]
    %v99 = vld [vmem:[%s0 + $0xf8] sm:$0xff]
    %v100 = vld [vmem:[%s0 + $0x100] sm:$0xff]
    %v101 = vld [vmem:[%s0 + $0x108] sm:$0xff]
    %v102 = vld [vmem:[%s0 + $0x110] sm:$0xff]
    %v103 = vld [vmem:[%s0 + $0x118] sm:$0xff]
    %v104 = vld [vmem:[%s0 + $0x120] sm:$0xff]
    %v105 = vld [vmem:[%s0 + $0x128] sm:$0xff]
    %v106 = vld [vmem:[%s0 + $0x130] sm:$0xff]
    %v107 = vld [vmem:[%s0 + $0x138] sm:$0xff]
    %v108 = vld [vmem:[%s0 + $0x140] sm:$0xff]
    %v109 = vld [vmem:[%s0 + $0x148] sm:$0xff]
    %v110 = vld [vmem:[%s0 + $0x150] sm:$0xff]
    %v111 = vld [vmem:[%s0 + $0x158] sm:$0xff]
    %v112 = vld [vmem:[%s0 + $0x160] sm:$0xff]
    %v113 = vld [vmem:[%s0 + $0x168] sm:$0xff]
    %v114 = vld [vmem:[%s0 + $0x170] sm:$0xff]
    %v115 = vld [vmem:[%s0 + $0x178] sm:$0xff]
    %v116 = vld [vmem:[%s0 + $0x180] sm:$0xff]
    %v117 = vld [vmem:[%s0 + $0x188] sm:$0xff]
    %v118 = vld [vmem:[%s0 + $0x190] sm:$0xff]
    %v119 = vld [vmem:[%s0 + $0x198] sm:$0xff]
    %v120 = vld [vmem:[%s0 + $0x1a0] sm:$0xff]
    %v121 = vld [vmem:[%s0 + $0x1a8] sm:$0xff]
    %v122 = vld [vmem:[%s0 + $0x1b0] sm:$0xff]
    %v123 = vld [vmem:[%s0 + $0x1b8] sm:$0xff]
    %v124 = vld [vmem:[%s0 + $0x1c0] sm:$0xff]
    %v125 = vld [vmem:[%s0 + $0x1c8] sm:$0xff]
    %v126 = vld [vmem:[%s0 + $0x1d0] sm:$0xff]
    %v127 = vld [vmem:[%s0 + $0x1d8] sm:$0xff]
    %v128 = vld [vmem:[%s0 + $0x1e0] sm:$0xff]
    %v129 = vld [vmem:[%s0 + $0x1e8] sm:$0xff]
    %v130 = vld [vmem:[%s0 + $0x1f0] sm:$0xff]
    %v131 = vld [vmem:[%s0 + $0x1f8] sm:$0xff]
    %v132 = vld [vmem:[%s3] sm:$0xff]
    %v133 = vld [vmem:[%s3 + $0x8] sm:$0xff]
    %v134 = vld [vmem:[%s3 + $0x10] sm:$0xff]
    %v135 = vld [vmem:[%s3 + $0x18] sm:$0xff]
    %v136 = vld [vmem:[%s3 + $0x20] sm:$0xf]
    %v137 = vld [vmem:[%s4] sm:$0x1]
    %v139 = vlaneseq
    %v140 = vshrl.u32 %v139, 7
    %v141 = vsub.s32 0, %v140
    %v142 = vrot.slane %v137, %v141
    %vm144 = vcmask 293888
    %v146 = vsel %vm144, %v68, 0
    %v149 = vsel %vm144, %v69, 0
    %v152 = vsel %vm144, %v70, 0
    %v155 = vsel %vm144, %v71, 0
    %v158 = vsel %vm144, %v72, 0
    %v161 = vsel %vm144, %v73, 0
    %v164 = vsel %vm144, %v74, 0
    %v167 = vsel %vm144, %v75, 0
    %v170 = vsel %vm144, %v76, 0
    %v173 = vsel %vm144, %v77, 0
    %v176 = vsel %vm144, %v78, 0
    %v179 = vsel %vm144, %v79, 0
    %v182 = vsel %vm144, %v80, 0
    %v185 = vsel %vm144, %v81, 0
    %v188 = vsel %vm144, %v82, 0
    %v191 = vsel %vm144, %v83, 0
    %v194 = vsel %vm144, %v84, 0
    %v197 = vsel %vm144, %v85, 0
    %v200 = vsel %vm144, %v86, 0
    %v203 = vsel %vm144, %v87, 0
    %v206 = vsel %vm144, %v88, 0
    %v209 = vsel %vm144, %v89, 0
    %v212 = vsel %vm144, %v90, 0
    %v215 = vsel %vm144, %v91, 0
    %v218 = vsel %vm144, %v92, 0
    %v221 = vsel %vm144, %v93, 0
    %v224 = vsel %vm144, %v94, 0
    %v227 = vsel %vm144, %v95, 0
    %v230 = vsel %vm144, %v96, 0
    %v233 = vsel %vm144, %v97, 0
    %v236 = vsel %vm144, %v98, 0
    %v239 = vsel %vm144, %v99, 0
    %v242 = vsel %vm144, %v100, 0
    %v245 = vsel %vm144, %v101, 0
    %v248 = vsel %vm144, %v102, 0
    %v251 = vsel %vm144, %v103, 0
    %v254 = vsel %vm144, %v104, 0
    %v257 = vsel %vm144, %v105, 0
    %v260 = vsel %vm144, %v106, 0
    %v263 = vsel %vm144, %v107, 0
    %v266 = vsel %vm144, %v108, 0
    %v269 = vsel %vm144, %v109, 0
    %v272 = vsel %vm144, %v110, 0
    %v275 = vsel %vm144, %v111, 0
    %v278 = vsel %vm144, %v112, 0
    %v281 = vsel %vm144, %v113, 0
    %v284 = vsel %vm144, %v114, 0
    %v287 = vsel %vm144, %v115, 0
    %v290 = vsel %vm144, %v116, 0
    %v293 = vsel %vm144, %v117, 0
    %v296 = vsel %vm144, %v118, 0
    %v299 = vsel %vm144, %v119, 0
    %v302 = vsel %vm144, %v120, 0
    %v305 = vsel %vm144, %v121, 0
    %v308 = vsel %vm144, %v122, 0
    %v311 = vsel %vm144, %v123, 0
    %v314 = vsel %vm144, %v124, 0
    %v317 = vsel %vm144, %v125, 0
    %v320 = vsel %vm144, %v126, 0
    %v323 = vsel %vm144, %v127, 0
    %v326 = vsel %vm144, %v128, 0
    %v329 = vsel %vm144, %v129, 0
    %v332 = vsel %vm144, %v130, 0
    %v335 = vsel %vm144, %v131, 0
    %vm337 = vcmask 1043456
    %v339 = vsel %vm337, %v136, 0
    %341 = vmatprep.subr.mxu0 0.0
    %342 = vmatpush1.msra.mxu0 %v132
    %343 = vmatprep.subr.mxu0 0.0
    %344 = vmatpush1.msra.mxu0 %v133
    %345 = vmatprep.subr.mxu0 0.0
    %346 = vmatpush1.msra.mxu0 %v134
    %347 = vmatprep.subr.mxu0 0.0
    %348 = vmatpush1.msra.mxu0 %v135
    %349 = vmatprep.subr.mxu0 0.0
    %350 = vmatpush1.msra.mxu0 %v339
    %351 = vmatprep.subr.mxu0 0.0
    %352 = vmatpush1.msra.mxu0 0.0
    %353 = vmatprep.subr.mxu0 0.0
    %354 = vmatpush1.msra.mxu0 0.0
    %355 = vmatprep.subr.mxu0 0.0
    %356 = vmatpush1.msra.mxu0 0.0
    %357 = vmatprep.subr.mxu0 0.0
    %358 = vmatpush1.msra.mxu0 0.0
    %359 = vmatprep.subr.mxu0 0.0
    %360 = vmatpush1.msra.mxu0 0.0
    %361 = vmatprep.subr.mxu0 0.0
    %362 = vmatpush1.msra.mxu0 0.0
    %363 = vmatprep.subr.mxu0 0.0
    %364 = vmatpush1.msra.mxu0 0.0
    %365 = vmatprep.subr.mxu0 0.0
    %366 = vmatpush1.msra.mxu0 0.0
    %367 = vmatprep.subr.mxu0 0.0
    %368 = vmatpush1.msra.mxu0 0.0
    %369 = vmatprep.subr.mxu0 0.0
    %370 = vmatpush1.msra.mxu0 0.0
    %371 = vmatprep.subr.mxu0 0.0
    %372 = vmatpush1.msra.mxu0 0.0
    %373 = vmatprep.subr.mxu0 0.0
    %374 = vmatpush1.msra.mxu0 0.0
    %375 = vmatprep.subr.mxu0 0.0
    %376 = vmatpush1.msra.mxu0 0.0
    %377 = vmatprep.subr.mxu0 0.0
    %378 = vmatpush1.msra.mxu0 0.0
    %379 = vmatprep.subr.mxu0 0.0
    %380 = vmatpush1.msra.mxu0 0.0
    %381 = vmatprep.subr.mxu0 0.0
    %382 = vmatpush1.msra.mxu0 0.0
    %383 = vmatprep.subr.mxu0 0.0
    %384 = vmatpush1.msra.mxu0 0.0
    %385 = vmatprep.subr.mxu0 0.0
    %386 = vmatpush1.msra.mxu0 0.0
    %387 = vmatprep.subr.mxu0 0.0
    %388 = vmatpush1.msra.mxu0 0.0
    %389 = vmatprep.subr.mxu0 0.0
    %390 = vmatpush1.msra.mxu0 0.0
    %391 = vmatprep.subr.mxu0 0.0
    %392 = vmatpush1.msra.mxu0 0.0
    %393 = vmatprep.subr.mxu0 0.0
    %394 = vmatpush1.msra.mxu0 0.0
    %395 = vmatprep.subr.mxu0 0.0
    %396 = vmatpush1.msra.mxu0 0.0
    %397 = vmatprep.subr.mxu0 0.0
    %398 = vmatpush1.msra.mxu0 0.0
    %399 = vmatprep.subr.mxu0 0.0
    %400 = vmatpush1.msra.mxu0 0.0
    %401 = vmatprep.subr.mxu0 0.0
    %402 = vmatpush1.msra.mxu0 0.0
    %403 = vmatprep.subr.mxu0 0.0
    %404 = vmatpush1.msra.mxu0 0.0
    %405 = vmatprep.mubr.f32.mxu0 0.0
    %406 = vmatmul.mubr.f32.gmra.mrb[0].mxu0 %v146
    %v407 = vpop.f32.mrb[0].mxu0
    %v408 = vadd.f32 %v142, %v407
    %v409 = vpop.f32.mrb[0].mxu0
    %410 = vmatprep.mubr.f32.mxu0 0.0
    %411 = vmatmul.mubr.f32.gmra.mrb[0].mxu0 %v149
    %v412 = vpop.f32.mrb[0].mxu0
    %v413 = vadd.f32 %v142, %v412
    %v414 = vpop.f32.mrb[0].mxu0
    %415 = vmatprep.mubr.f32.mxu0 0.0
    %416 = vmatmul.mubr.f32.gmra.mrb[0].mxu0 %v152
    %v417 = vpop.f32.mrb[0].mxu0
    %v418 = vadd.f32 %v142, %v417
    %v419 = vpop.f32.mrb[0].mxu0
    %420 = vmatprep.mubr.f32.mxu0 0.0
    %421 = vmatmul.mubr.f32.gmra.mrb[0].mxu0 %v155
    %v422 = vpop.f32.mrb[0].mxu0
    %v423 = vadd.f32 %v142, %v422
    %v424 = vpop.f32.mrb[0].mxu0
    %425 = vmatprep.mubr.f32.mxu0 0.0
    %426 = vmatmul.mubr.f32.gmra.mrb[0].mxu0 %v158
    %v427 = vpop.f32.mrb[0].mxu0
    %v428 = vadd.f32 %v142, %v427
    %v429 = vpop.f32.mrb[0].mxu0
    %430 = vmatprep.mubr.f32.mxu0 0.0
    %431 = vmatmul.mubr.f32.gmra.mrb[0].mxu0 %v161
    %v432 = vpop.f32.mrb[0].mxu0
    %v433 = vadd.f32 %v142, %v432
    %v434 = vpop.f32.mrb[0].mxu0
    %435 = vmatprep.mubr.f32.mxu0 0.0
    %436 = vmatmul.mubr.f32.gmra.mrb[0].mxu0 %v164
    %v437 = vpop.f32.mrb[0].mxu0
    %v438 = vadd.f32 %v142, %v437
    %v439 = vpop.f32.mrb[0].mxu0
    %440 = vmatprep.mubr.f32.mxu0 0.0
    %441 = vmatmul.mubr.f32.gmra.mrb[0].mxu0 %v167
    %v442 = vpop.f32.mrb[0].mxu0
    %v443 = vadd.f32 %v142, %v442
    %v444 = vpop.f32.mrb[0].mxu0
    %445 = vmatprep.mubr.f32.mxu0 0.0
    %446 = vmatmul.mubr.f32.gmra.mrb[0].mxu0 %v170
    %v447 = vpop.f32.mrb[0].mxu0
    %v448 = vadd.f32 %v142, %v447
    %v449 = vpop.f32.mrb[0].mxu0
    %450 = vmatprep.mubr.f32.mxu0 0.0
    %451 = vmatmul.mubr.f32.gmra.mrb[0].mxu0 %v173
    %v452 = vpop.f32.mrb[0].mxu0
    %v453 = vadd.f32 %v142, %v452
    %v454 = vpop.f32.mrb[0].mxu0
    %455 = vmatprep.mubr.f32.mxu0 0.0
    %456 = vmatmul.mubr.f32.gmra.mrb[0].mxu0 %v176
    %v457 = vpop.f32.mrb[0].mxu0
    %v458 = vadd.f32 %v142, %v457
    %v459 = vpop.f32.mrb[0].mxu0
    %460 = vmatprep.mubr.f32.mxu0 0.0
    %461 = vmatmul.mubr.f32.gmra.mrb[0].mxu0 %v179
    %v462 = vpop.f32.mrb[0].mxu0
    %v463 = vadd.f32 %v142, %v462
    %v464 = vpop.f32.mrb[0].mxu0
    %465 = vmatprep.mubr.f32.mxu0 0.0
    %466 = vmatmul.mubr.f32.gmra.mrb[0].mxu0 %v182
    %v467 = vpop.f32.mrb[0].mxu0
    %v468 = vadd.f32 %v142, %v467
    %v469 = vpop.f32.mrb[0].mxu0
    %470 = vmatprep.mubr.f32.mxu0 0.0
    %471 = vmatmul.mubr.f32.gmra.mrb[0].mxu0 %v185
    %v472 = vpop.f32.mrb[0].mxu0
    %v473 = vadd.f32 %v142, %v472
    %v474 = vpop.f32.mrb[0].mxu0
    %475 = vmatprep.mubr.f32.mxu0 0.0
    %476 = vmatmul.mubr.f32.gmra.mrb[0].mxu0 %v188
    %v477 = vpop.f32.mrb[0].mxu0
    %v478 = vadd.f32 %v142, %v477
    %v479 = vpop.f32.mrb[0].mxu0
    %480 = vmatprep.mubr.f32.mxu0 0.0
    %481 = vmatmul.mubr.f32.gmra.mrb[0].mxu0 %v191
    %v482 = vpop.f32.mrb[0].mxu0
    %v483 = vadd.f32 %v142, %v482
    %v484 = vpop.f32.mrb[0].mxu0
    %485 = vmatprep.mubr.f32.mxu0 0.0
    %486 = vmatmul.mubr.f32.gmra.mrb[0].mxu0 %v194
    %v487 = vpop.f32.mrb[0].mxu0
    %v488 = vadd.f32 %v142, %v487
    %v489 = vpop.f32.mrb[0].mxu0
    %490 = vmatprep.mubr.f32.mxu0 0.0
    %491 = vmatmul.mubr.f32.gmra.mrb[0].mxu0 %v197
    %v492 = vpop.f32.mrb[0].mxu0
    %v493 = vadd.f32 %v142, %v492
    %v494 = vpop.f32.mrb[0].mxu0
    %495 = vmatprep.mubr.f32.mxu0 0.0
    %496 = vmatmul.mubr.f32.gmra.mrb[0].mxu0 %v200
    %v497 = vpop.f32.mrb[0].mxu0
    %v498 = vadd.f32 %v142, %v497
    %v499 = vpop.f32.mrb[0].mxu0
    %500 = vmatprep.mubr.f32.mxu0 0.0
    %501 = vmatmul.mubr.f32.gmra.mrb[0].mxu0 %v203
    %v502 = vpop.f32.mrb[0].mxu0
    %v503 = vadd.f32 %v142, %v502
    %v504 = vpop.f32.mrb[0].mxu0
    %505 = vmatprep.mubr.f32.mxu0 0.0
    %506 = vmatmul.mubr.f32.gmra.mrb[0].mxu0 %v206
    %v507 = vpop.f32.mrb[0].mxu0
    %v508 = vadd.f32 %v142, %v507
    %v509 = vpop.f32.mrb[0].mxu0
    %510 = vmatprep.mubr.f32.mxu0 0.0
    %511 = vmatmul.mubr.f32.gmra.mrb[0].mxu0 %v209
    %v512 = vpop.f32.mrb[0].mxu0
    %v513 = vadd.f32 %v142, %v512
    %v514 = vpop.f32.mrb[0].mxu0
    %515 = vmatprep.mubr.f32.mxu0 0.0
    %516 = vmatmul.mubr.f32.gmra.mrb[0].mxu0 %v212
    %v517 = vpop.f32.mrb[0].mxu0
    %v518 = vadd.f32 %v142, %v517
    %v519 = vpop.f32.mrb[0].mxu0
    %520 = vmatprep.mubr.f32.mxu0 0.0
    %521 = vmatmul.mubr.f32.gmra.mrb[0].mxu0 %v215
    %v522 = vpop.f32.mrb[0].mxu0
    %v523 = vadd.f32 %v142, %v522
    %v524 = vpop.f32.mrb[0].mxu0
    %525 = vmatprep.mubr.f32.mxu0 0.0
    %526 = vmatmul.mubr.f32.gmra.mrb[0].mxu0 %v218
    %v527 = vpop.f32.mrb[0].mxu0
    %v528 = vadd.f32 %v142, %v527
    %v529 = vpop.f32.mrb[0].mxu0
    %530 = vmatprep.mubr.f32.mxu0 0.0
    %531 = vmatmul.mubr.f32.gmra.mrb[0].mxu0 %v221
    %v532 = vpop.f32.mrb[0].mxu0
    %v533 = vadd.f32 %v142, %v532
    %v534 = vpop.f32.mrb[0].mxu0
    %535 = vmatprep.mubr.f32.mxu0 0.0
    %536 = vmatmul.mubr.f32.gmra.mrb[0].mxu0 %v224
    %v537 = vpop.f32.mrb[0].mxu0
    %v538 = vadd.f32 %v142, %v537
    %v539 = vpop.f32.mrb[0].mxu0
    %540 = vmatprep.mubr.f32.mxu0 0.0
    %541 = vmatmul.mubr.f32.gmra.mrb[0].mxu0 %v227
    %v542 = vpop.f32.mrb[0].mxu0
    %v543 = vadd.f32 %v142, %v542
    %v544 = vpop.f32.mrb[0].mxu0
    %545 = vmatprep.mubr.f32.mxu0 0.0
    %546 = vmatmul.mubr.f32.gmra.mrb[0].mxu0 %v230
    %v547 = vpop.f32.mrb[0].mxu0
    %v548 = vadd.f32 %v142, %v547
    %v549 = vpop.f32.mrb[0].mxu0
    %550 = vmatprep.mubr.f32.mxu0 0.0
    %551 = vmatmul.mubr.f32.gmra.mrb[0].mxu0 %v233
    %v552 = vpop.f32.mrb[0].mxu0
    %v553 = vadd.f32 %v142, %v552
    %v554 = vpop.f32.mrb[0].mxu0
    %555 = vmatprep.mubr.f32.mxu0 0.0
    %556 = vmatmul.mubr.f32.gmra.mrb[0].mxu0 %v236
    %v557 = vpop.f32.mrb[0].mxu0
    %v558 = vadd.f32 %v142, %v557
    %v559 = vpop.f32.mrb[0].mxu0
    %560 = vmatprep.mubr.f32.mxu0 0.0
    %561 = vmatmul.mubr.f32.gmra.mrb[0].mxu0 %v239
    %v562 = vpop.f32.mrb[0].mxu0
    %v563 = vadd.f32 %v142, %v562
    %v564 = vpop.f32.mrb[0].mxu0
    %565 = vmatprep.mubr.f32.mxu0 0.0
    %566 = vmatmul.mubr.f32.gmra.mrb[0].mxu0 %v242
    %v567 = vpop.f32.mrb[0].mxu0
    %v568 = vadd.f32 %v142, %v567
    %v569 = vpop.f32.mrb[0].mxu0
    %570 = vmatprep.mubr.f32.mxu0 0.0
    %571 = vmatmul.mubr.f32.gmra.mrb[0].mxu0 %v245
    %v572 = vpop.f32.mrb[0].mxu0
    %v573 = vadd.f32 %v142, %v572
    %v574 = vpop.f32.mrb[0].mxu0
    %575 = vmatprep.mubr.f32.mxu0 0.0
    %576 = vmatmul.mubr.f32.gmra.mrb[0].mxu0 %v248
    %v577 = vpop.f32.mrb[0].mxu0
    %v578 = vadd.f32 %v142, %v577
    %v579 = vpop.f32.mrb[0].mxu0
    %580 = vmatprep.mubr.f32.mxu0 0.0
    %581 = vmatmul.mubr.f32.gmra.mrb[0].mxu0 %v251
    %v582 = vpop.f32.mrb[0].mxu0
    %v583 = vadd.f32 %v142, %v582
    %v584 = vpop.f32.mrb[0].mxu0
    %585 = vmatprep.mubr.f32.mxu0 0.0
    %586 = vmatmul.mubr.f32.gmra.mrb[0].mxu0 %v254
    %v587 = vpop.f32.mrb[0].mxu0
    %v588 = vadd.f32 %v142, %v587
    %v589 = vpop.f32.mrb[0].mxu0
    %590 = vmatprep.mubr.f32.mxu0 0.0
    %591 = vmatmul.mubr.f32.gmra.mrb[0].mxu0 %v257
    %v592 = vpop.f32.mrb[0].mxu0
    %v593 = vadd.f32 %v142, %v592
    %v594 = vpop.f32.mrb[0].mxu0
    %595 = vmatprep.mubr.f32.mxu0 0.0
    %596 = vmatmul.mubr.f32.gmra.mrb[0].mxu0 %v260
    %v597 = vpop.f32.mrb[0].mxu0
    %v598 = vadd.f32 %v142, %v597
    %v599 = vpop.f32.mrb[0].mxu0
    %600 = vmatprep.mubr.f32.mxu0 0.0
    %601 = vmatmul.mubr.f32.gmra.mrb[0].mxu0 %v263
    %v602 = vpop.f32.mrb[0].mxu0
    %v603 = vadd.f32 %v142, %v602
    %v604 = vpop.f32.mrb[0].mxu0
    %605 = vmatprep.mubr.f32.mxu0 0.0
    %606 = vmatmul.mubr.f32.gmra.mrb[0].mxu0 %v266
    %v607 = vpop.f32.mrb[0].mxu0
    %v608 = vadd.f32 %v142, %v607
    %v609 = vpop.f32.mrb[0].mxu0
    %610 = vmatprep.mubr.f32.mxu0 0.0
    %611 = vmatmul.mubr.f32.gmra.mrb[0].mxu0 %v269
    %v612 = vpop.f32.mrb[0].mxu0
    %v613 = vadd.f32 %v142, %v612
    %v614 = vpop.f32.mrb[0].mxu0
    %615 = vmatprep.mubr.f32.mxu0 0.0
    %616 = vmatmul.mubr.f32.gmra.mrb[0].mxu0 %v272
    %v617 = vpop.f32.mrb[0].mxu0
    %v618 = vadd.f32 %v142, %v617
    %v619 = vpop.f32.mrb[0].mxu0
    %620 = vmatprep.mubr.f32.mxu0 0.0
    %621 = vmatmul.mubr.f32.gmra.mrb[0].mxu0 %v275
    %v622 = vpop.f32.mrb[0].mxu0
    %v623 = vadd.f32 %v142, %v622
    %v624 = vpop.f32.mrb[0].mxu0
    %625 = vmatprep.mubr.f32.mxu0 0.0
    %626 = vmatmul.mubr.f32.gmra.mrb[0].mxu0 %v278
    %v627 = vpop.f32.mrb[0].mxu0
    %v628 = vadd.f32 %v142, %v627
    %v629 = vpop.f32.mrb[0].mxu0
    %630 = vmatprep.mubr.f32.mxu0 0.0
    %631 = vmatmul.mubr.f32.gmra.mrb[0].mxu0 %v281
    %v632 = vpop.f32.mrb[0].mxu0
    %v633 = vadd.f32 %v142, %v632
    %v634 = vpop.f32.mrb[0].mxu0
    %635 = vmatprep.mubr.f32.mxu0 0.0
    %636 = vmatmul.mubr.f32.gmra.mrb[0].mxu0 %v284
    %v637 = vpop.f32.mrb[0].mxu0
    %v638 = vadd.f32 %v142, %v637
    %v639 = vpop.f32.mrb[0].mxu0
    %640 = vmatprep.mubr.f32.mxu0 0.0
    %641 = vmatmul.mubr.f32.gmra.mrb[0].mxu0 %v287
    %v642 = vpop.f32.mrb[0].mxu0
    %v643 = vadd.f32 %v142, %v642
    %v644 = vpop.f32.mrb[0].mxu0
    %645 = vmatprep.mubr.f32.mxu0 0.0
    %646 = vmatmul.mubr.f32.gmra.mrb[0].mxu0 %v290
    %v647 = vpop.f32.mrb[0].mxu0
    %v648 = vadd.f32 %v142, %v647
    %v649 = vpop.f32.mrb[0].mxu0
    %650 = vmatprep.mubr.f32.mxu0 0.0
    %651 = vmatmul.mubr.f32.gmra.mrb[0].mxu0 %v293
    %v652 = vpop.f32.mrb[0].mxu0
    %v653 = vadd.f32 %v142, %v652
    %v654 = vpop.f32.mrb[0].mxu0
    %655 = vmatprep.mubr.f32.mxu0 0.0
    %656 = vmatmul.mubr.f32.gmra.mrb[0].mxu0 %v296
    %v657 = vpop.f32.mrb[0].mxu0
    %v658 = vadd.f32 %v142, %v657
    %v659 = vpop.f32.mrb[0].mxu0
    %660 = vmatprep.mubr.f32.mxu0 0.0
    %661 = vmatmul.mubr.f32.gmra.mrb[0].mxu0 %v299
    %v662 = vpop.f32.mrb[0].mxu0
    %v663 = vadd.f32 %v142, %v662
    %v664 = vpop.f32.mrb[0].mxu0
    %665 = vmatprep.mubr.f32.mxu0 0.0
    %666 = vmatmul.mubr.f32.gmra.mrb[0].mxu0 %v302
    %v667 = vpop.f32.mrb[0].mxu0
    %v668 = vadd.f32 %v142, %v667
    %v669 = vpop.f32.mrb[0].mxu0
    %670 = vmatprep.mubr.f32.mxu0 0.0
    %671 = vmatmul.mubr.f32.gmra.mrb[0].mxu0 %v305
    %v672 = vpop.f32.mrb[0].mxu0
    %v673 = vadd.f32 %v142, %v672
    %v674 = vpop.f32.mrb[0].mxu0
    %675 = vmatprep.mubr.f32.mxu0 0.0
    %676 = vmatmul.mubr.f32.gmra.mrb[0].mxu0 %v308
    %v677 = vpop.f32.mrb[0].mxu0
    %v678 = vadd.f32 %v142, %v677
    %v679 = vpop.f32.mrb[0].mxu0
    %680 = vmatprep.mubr.f32.mxu0 0.0
    %681 = vmatmul.mubr.f32.gmra.mrb[0].mxu0 %v311
    %v682 = vpop.f32.mrb[0].mxu0
    %v683 = vadd.f32 %v142, %v682
    %v684 = vpop.f32.mrb[0].mxu0
    %685 = vmatprep.mubr.f32.mxu0 0.0
    %686 = vmatmul.mubr.f32.gmra.mrb[0].mxu0 %v314
    %v687 = vpop.f32.mrb[0].mxu0
    %v688 = vadd.f32 %v142, %v687
    %v689 = vpop.f32.mrb[0].mxu0
    %690 = vmatprep.mubr.f32.mxu0 0.0
    %691 = vmatmul.mubr.f32.gmra.mrb[0].mxu0 %v317
    %v692 = vpop.f32.mrb[0].mxu0
    %v693 = vadd.f32 %v142, %v692
    %v694 = vpop.f32.mrb[0].mxu0
    %695 = vmatprep.mubr.f32.mxu0 0.0
    %696 = vmatmul.mubr.f32.gmra.mrb[0].mxu0 %v320
    %v697 = vpop.f32.mrb[0].mxu0
    %v698 = vadd.f32 %v142, %v697
    %v699 = vpop.f32.mrb[0].mxu0
    %700 = vmatprep.mubr.f32.mxu0 0.0
    %701 = vmatmul.mubr.f32.gmra.mrb[0].mxu0 %v323
    %v702 = vpop.f32.mrb[0].mxu0
    %v703 = vadd.f32 %v142, %v702
    %v704 = vpop.f32.mrb[0].mxu0
    %705 = vmatprep.mubr.f32.mxu0 0.0
    %706 = vmatmul.mubr.f32.gmra.mrb[0].mxu0 %v326
    %v707 = vpop.f32.mrb[0].mxu0
    %v708 = vadd.f32 %v142, %v707
    %v709 = vpop.f32.mrb[0].mxu0
    %710 = vmatprep.mubr.f32.mxu0 0.0
    %711 = vmatmul.mubr.f32.gmra.mrb[0].mxu0 %v329
    %v712 = vpop.f32.mrb[0].mxu0
    %v713 = vadd.f32 %v142, %v712
    %v714 = vpop.f32.mrb[0].mxu0
    %715 = vmatprep.mubr.f32.mxu0 0.0
    %716 = vmatmul.mubr.f32.gmra.mrb[0].mxu0 %v332
    %v717 = vpop.f32.mrb[0].mxu0
    %v718 = vadd.f32 %v142, %v717
    %v719 = vpop.f32.mrb[0].mxu0
    %720 = vmatprep.mubr.f32.mxu0 0.0
    %721 = vmatmul.mubr.f32.gmra.mrb[0].mxu0 %v335
    %v722 = vpop.f32.mrb[0].mxu0
    %v723 = vadd.f32 %v142, %v722
    %v724 = vpop.f32.mrb[0].mxu0
    %725 = vdwg.mxu0
    %v726 = vmax.f32 %v408, 0.0
    %v727 = vmax.f32 %v413, 0.0
    %v728 = vmax.f32 %v418, 0.0
    %v729 = vmax.f32 %v423, 0.0
    %v730 = vmax.f32 %v428, 0.0
    %v731 = vmax.f32 %v433, 0.0
    %v732 = vmax.f32 %v438, 0.0
    %v733 = vmax.f32 %v443, 0.0
    %v734 = vmax.f32 %v448, 0.0
    %v735 = vmax.f32 %v453, 0.0
    %v736 = vmax.f32 %v458, 0.0
    %v737 = vmax.f32 %v463, 0.0
    %v738 = vmax.f32 %v468, 0.0
    %v739 = vmax.f32 %v473, 0.0
    %v740 = vmax.f32 %v478, 0.0
    %v741 = vmax.f32 %v483, 0.0
    %v742 = vmax.f32 %v488, 0.0
    %v743 = vmax.f32 %v493, 0.0
    %v744 = vmax.f32 %v498, 0.0
    %v745 = vmax.f32 %v503, 0.0
    %v746 = vmax.f32 %v508, 0.0
    %v747 = vmax.f32 %v513, 0.0
    %v748 = vmax.f32 %v518, 0.0
    %v749 = vmax.f32 %v523, 0.0
    %v750 = vmax.f32 %v528, 0.0
    %v751 = vmax.f32 %v533, 0.0
    %v752 = vmax.f32 %v538, 0.0
    %v753 = vmax.f32 %v543, 0.0
    %v754 = vmax.f32 %v548, 0.0
    %v755 = vmax.f32 %v553, 0.0
    %v756 = vmax.f32 %v558, 0.0
    %v757 = vmax.f32 %v563, 0.0
    %v758 = vmax.f32 %v568, 0.0
    %v759 = vmax.f32 %v573, 0.0
    %v760 = vmax.f32 %v578, 0.0
    %v761 = vmax.f32 %v583, 0.0
    %v762 = vmax.f32 %v588, 0.0
    %v763 = vmax.f32 %v593, 0.0
    %v764 = vmax.f32 %v598, 0.0
    %v765 = vmax.f32 %v603, 0.0
    %v766 = vmax.f32 %v608, 0.0
    %v767 = vmax.f32 %v613, 0.0
    %v768 = vmax.f32 %v618, 0.0
    %v769 = vmax.f32 %v623, 0.0
    %v770 = vmax.f32 %v628, 0.0
    %v771 = vmax.f32 %v633, 0.0
    %v772 = vmax.f32 %v638, 0.0
    %v773 = vmax.f32 %v643, 0.0
    %v774 = vmax.f32 %v648, 0.0
    %v775 = vmax.f32 %v653, 0.0
    %v776 = vmax.f32 %v658, 0.0
    %v777 = vmax.f32 %v663, 0.0
    %v778 = vmax.f32 %v668, 0.0
    %v779 = vmax.f32 %v673, 0.0
    %v780 = vmax.f32 %v678, 0.0
    %v781 = vmax.f32 %v683, 0.0
    %v782 = vmax.f32 %v688, 0.0
    %v783 = vmax.f32 %v693, 0.0
    %v784 = vmax.f32 %v698, 0.0
    %v785 = vmax.f32 %v703, 0.0
    %v786 = vmax.f32 %v708, 0.0
    %v787 = vmax.f32 %v713, 0.0
    %v788 = vmax.f32 %v718, 0.0
    %v789 = vmax.f32 %v723, 0.0
    %v790 = vld [vmem:[%s5] sm:$0xff]
    %v791 = vld [vmem:[%s5 + $0x8] sm:$0xff]
    %v792 = vld [vmem:[%s5 + $0x10] sm:$0xff]
    %v793 = vld [vmem:[%s5 + $0x18] sm:$0xff]
    %v794 = vld [vmem:[%s5 + $0x20] sm:$0xff]
    %v795 = vld [vmem:[%s5 + $0x28] sm:$0xff]
    %v796 = vld [vmem:[%s5 + $0x30] sm:$0xff]
    %v797 = vld [vmem:[%s5 + $0x38] sm:$0xff]
    %v798 = vld [vmem:[%s6] sm:$0x1]
    %v800 = vlaneseq
    %v801 = vshrl.u32 %v800, 7
    %v802 = vsub.s32 0, %v801
    %v803 = vrot.slane %v798, %v802
    %vm805 = vcmask 523264
    %v807 = vsel %vm805, %v726, 0
    %v810 = vsel %vm805, %v727, 0
    %v813 = vsel %vm805, %v728, 0
    %v816 = vsel %vm805, %v729, 0
    %v819 = vsel %vm805, %v730, 0
    %v822 = vsel %vm805, %v731, 0
    %v825 = vsel %vm805, %v732, 0
    %v828 = vsel %vm805, %v733, 0
    %v831 = vsel %vm805, %v734, 0
    %v834 = vsel %vm805, %v735, 0
    %v837 = vsel %vm805, %v736, 0
    %v840 = vsel %vm805, %v737, 0
    %v843 = vsel %vm805, %v738, 0
    %v846 = vsel %vm805, %v739, 0
    %v849 = vsel %vm805, %v740, 0
    %v852 = vsel %vm805, %v741, 0
    %v855 = vsel %vm805, %v742, 0
    %v858 = vsel %vm805, %v743, 0
    %v861 = vsel %vm805, %v744, 0
    %v864 = vsel %vm805, %v745, 0
    %v867 = vsel %vm805, %v746, 0
    %v870 = vsel %vm805, %v747, 0
    %v873 = vsel %vm805, %v748, 0
    %v876 = vsel %vm805, %v749, 0
    %v879 = vsel %vm805, %v750, 0
    %v882 = vsel %vm805, %v751, 0
    %v885 = vsel %vm805, %v752, 0
    %v888 = vsel %vm805, %v753, 0
    %v891 = vsel %vm805, %v754, 0
    %v894 = vsel %vm805, %v755, 0
    %v897 = vsel %vm805, %v756, 0
    %v900 = vsel %vm805, %v757, 0
    %v903 = vsel %vm805, %v758, 0
    %v906 = vsel %vm805, %v759, 0
    %v909 = vsel %vm805, %v760, 0
    %v912 = vsel %vm805, %v761, 0
    %v915 = vsel %vm805, %v762, 0
    %v918 = vsel %vm805, %v763, 0
    %v921 = vsel %vm805, %v764, 0
    %v924 = vsel %vm805, %v765, 0
    %v927 = vsel %vm805, %v766, 0
    %v930 = vsel %vm805, %v767, 0
    %v933 = vsel %vm805, %v768, 0
    %v936 = vsel %vm805, %v769, 0
    %v939 = vsel %vm805, %v770, 0
    %v942 = vsel %vm805, %v771, 0
    %v945 = vsel %vm805, %v772, 0
    %v948 = vsel %vm805, %v773, 0
    %v951 = vsel %vm805, %v774, 0
    %v954 = vsel %vm805, %v775, 0
    %v957 = vsel %vm805, %v776, 0
    %v960 = vsel %vm805, %v777, 0
    %v963 = vsel %vm805, %v778, 0
    %v966 = vsel %vm805, %v779, 0
    %v969 = vsel %vm805, %v780, 0
    %v972 = vsel %vm805, %v781, 0
    %v975 = vsel %vm805, %v782, 0
    %v978 = vsel %vm805, %v783, 0
    %v981 = vsel %vm805, %v784, 0
    %v984 = vsel %vm805, %v785, 0
    %v987 = vsel %vm805, %v786, 0
    %v990 = vsel %vm805, %v787, 0
    %v993 = vsel %vm805, %v788, 0
    %v996 = vsel %vm805, %v789, 0
    %998 = vmatprep.subr.mxu0 0.0
    %999 = vmatpush1.msra.mxu0 %v790
    %1000 = vmatprep.subr.mxu0 0.0
    %1001 = vmatpush1.msra.mxu0 %v791
    %1002 = vmatprep.subr.mxu0 0.0
    %1003 = vmatpush1.msra.mxu0 %v792
    %1004 = vmatprep.subr.mxu0 0.0
    %1005 = vmatpush1.msra.mxu0 %v793
    %1006 = vmatprep.subr.mxu0 0.0
    %1007 = vmatpush1.msra.mxu0 %v794
    %1008 = vmatprep.subr.mxu0 0.0
    %1009 = vmatpush1.msra.mxu0 %v795
    %1010 = vmatprep.subr.mxu0 0.0
    %1011 = vmatpush1.msra.mxu0 %v796
    %1012 = vmatprep.subr.mxu0 0.0
    %1013 = vmatpush1.msra.mxu0 %v797
    %1014 = vmatprep.subr.mxu0 0.0
    %1015 = vmatpush1.msra.mxu0 0.0
    %1016 = vmatprep.subr.mxu0 0.0
    %1017 = vmatpush1.msra.mxu0 0.0
    %1018 = vmatprep.subr.mxu0 0.0
    %1019 = vmatpush1.msra.mxu0 0.0
    %1020 = vmatprep.subr.mxu0 0.0
    %1021 = vmatpush1.msra.mxu0 0.0
    %1022 = vmatprep.subr.mxu0 0.0
    %1023 = vmatpush1.msra.mxu0 0.0
    %1024 = vmatprep.subr.mxu0 0.0
    %1025 = vmatpush1.msra.mxu0 0.0
    %1026 = vmatprep.subr.mxu0 0.0
    %1027 = vmatpush1.msra.mxu0 0.0
    %1028 = vmatprep.subr.mxu0 0.0
    %1029 = vmatpush1.msra.mxu0 0.0
    %1030 = vmatprep.subr.mxu0 0.0
    %1031 = vmatpush1.msra.mxu0 0.0
    %1032 = vmatprep.subr.mxu0 0.0
    %1033 = vmatpush1.msra.mxu0 0.0
    %1034 = vmatprep.subr.mxu0 0.0
    %1035 = vmatpush1.msra.mxu0 0.0
    %1036 = vmatprep.subr.mxu0 0.0
    %1037 = vmatpush1.msra.mxu0 0.0
    %1038 = vmatprep.subr.mxu0 0.0
    %1039 = vmatpush1.msra.mxu0 0.0
    %1040 = vmatprep.subr.mxu0 0.0
    %1041 = vmatpush1.msra.mxu0 0.0
    %1042 = vmatprep.subr.mxu0 0.0
    %1043 = vmatpush1.msra.mxu0 0.0
    %1044 = vmatprep.subr.mxu0 0.0
    %1045 = vmatpush1.msra.mxu0 0.0
    %1046 = vmatprep.subr.mxu0 0.0
    %1047 = vmatpush1.msra.mxu0 0.0
    %1048 = vmatprep.subr.mxu0 0.0
    %1049 = vmatpush1.msra.mxu0 0.0
    %1050 = vmatprep.subr.mxu0 0.0
    %1051 = vmatpush1.msra.mxu0 0.0
    %1052 = vmatprep.subr.mxu0 0.0
    %1053 = vmatpush1.msra.mxu0 0.0
    %1054 = vmatprep.subr.mxu0 0.0
    %1055 = vmatpush1.msra.mxu0 0.0
    %1056 = vmatprep.subr.mxu0 0.0
    %1057 = vmatpush1.msra.mxu0 0.0
    %1058 = vmatprep.subr.mxu0 0.0
    %1059 = vmatpush1.msra.mxu0 0.0
    %1060 = vmatprep.subr.mxu0 0.0
    %1061 = vmatpush1.msra.mxu0 0.0
    %1062 = vmatprep.mubr.f32.mxu0 0.0
    %1063 = vmatmul.mubr.f32.gmra.mrb[0].mxu0 %v807
    %v1064 = vpop.f32.mrb[0].mxu0
    %v1065 = vadd.f32 %v803, %v1064
    %v1066 = vpop.f32.mrb[0].mxu0
    %1067 = vmatprep.mubr.f32.mxu0 0.0
    %1068 = vmatmul.mubr.f32.gmra.mrb[0].mxu0 %v810
    %v1069 = vpop.f32.mrb[0].mxu0
    %v1070 = vadd.f32 %v803, %v1069
    %v1071 = vpop.f32.mrb[0].mxu0
    %1072 = vmatprep.mubr.f32.mxu0 0.0
    %1073 = vmatmul.mubr.f32.gmra.mrb[0].mxu0 %v813
    %v1074 = vpop.f32.mrb[0].mxu0
    %v1075 = vadd.f32 %v803, %v1074
    %v1076 = vpop.f32.mrb[0].mxu0
    %1077 = vmatprep.mubr.f32.mxu0 0.0
    %1078 = vmatmul.mubr.f32.gmra.mrb[0].mxu0 %v816
    %v1079 = vpop.f32.mrb[0].mxu0
    %v1080 = vadd.f32 %v803, %v1079
    %v1081 = vpop.f32.mrb[0].mxu0
    %1082 = vmatprep.mubr.f32.mxu0 0.0
    %1083 = vmatmul.mubr.f32.gmra.mrb[0].mxu0 %v819
    %v1084 = vpop.f32.mrb[0].mxu0
    %v1085 = vadd.f32 %v803, %v1084
    %v1086 = vpop.f32.mrb[0].mxu0
    %1087 = vmatprep.mubr.f32.mxu0 0.0
    %1088 = vmatmul.mubr.f32.gmra.mrb[0].mxu0 %v822
    %v1089 = vpop.f32.mrb[0].mxu0
    %v1090 = vadd.f32 %v803, %v1089
    %v1091 = vpop.f32.mrb[0].mxu0
    %1092 = vmatprep.mubr.f32.mxu0 0.0
    %1093 = vmatmul.mubr.f32.gmra.mrb[0].mxu0 %v825
    %v1094 = vpop.f32.mrb[0].mxu0
    %v1095 = vadd.f32 %v803, %v1094
    %v1096 = vpop.f32.mrb[0].mxu0
    %1097 = vmatprep.mubr.f32.mxu0 0.0
    %1098 = vmatmul.mubr.f32.gmra.mrb[0].mxu0 %v828
    %v1099 = vpop.f32.mrb[0].mxu0
    %v1100 = vadd.f32 %v803, %v1099
    %v1101 = vpop.f32.mrb[0].mxu0
    %1102 = vmatprep.mubr.f32.mxu0 0.0
    %1103 = vmatmul.mubr.f32.gmra.mrb[0].mxu0 %v831
    %v1104 = vpop.f32.mrb[0].mxu0
    %v1105 = vadd.f32 %v803, %v1104
    %v1106 = vpop.f32.mrb[0].mxu0
    %1107 = vmatprep.mubr.f32.mxu0 0.0
    %1108 = vmatmul.mubr.f32.gmra.mrb[0].mxu0 %v834
    %v1109 = vpop.f32.mrb[0].mxu0
    %v1110 = vadd.f32 %v803, %v1109
    %v1111 = vpop.f32.mrb[0].mxu0
    %1112 = vmatprep.mubr.f32.mxu0 0.0
    %1113 = vmatmul.mubr.f32.gmra.mrb[0].mxu0 %v837
    %v1114 = vpop.f32.mrb[0].mxu0
    %v1115 = vadd.f32 %v803, %v1114
    %v1116 = vpop.f32.mrb[0].mxu0
    %1117 = vmatprep.mubr.f32.mxu0 0.0
    %1118 = vmatmul.mubr.f32.gmra.mrb[0].mxu0 %v840
    %v1119 = vpop.f32.mrb[0].mxu0
    %v1120 = vadd.f32 %v803, %v1119
    %v1121 = vpop.f32.mrb[0].mxu0
    %1122 = vmatprep.mubr.f32.mxu0 0.0
    %1123 = vmatmul.mubr.f32.gmra.mrb[0].mxu0 %v843
    %v1124 = vpop.f32.mrb[0].mxu0
    %v1125 = vadd.f32 %v803, %v1124
    %v1126 = vpop.f32.mrb[0].mxu0
    %1127 = vmatprep.mubr.f32.mxu0 0.0
    %1128 = vmatmul.mubr.f32.gmra.mrb[0].mxu0 %v846
    %v1129 = vpop.f32.mrb[0].mxu0
    %v1130 = vadd.f32 %v803, %v1129
    %v1131 = vpop.f32.mrb[0].mxu0
    %1132 = vmatprep.mubr.f32.mxu0 0.0
    %1133 = vmatmul.mubr.f32.gmra.mrb[0].mxu0 %v849
    %v1134 = vpop.f32.mrb[0].mxu0
    %v1135 = vadd.f32 %v803, %v1134
    %v1136 = vpop.f32.mrb[0].mxu0
    %1137 = vmatprep.mubr.f32.mxu0 0.0
    %1138 = vmatmul.mubr.f32.gmra.mrb[0].mxu0 %v852
    %v1139 = vpop.f32.mrb[0].mxu0
    %v1140 = vadd.f32 %v803, %v1139
    %v1141 = vpop.f32.mrb[0].mxu0
    %1142 = vmatprep.mubr.f32.mxu0 0.0
    %1143 = vmatmul.mubr.f32.gmra.mrb[0].mxu0 %v855
    %v1144 = vpop.f32.mrb[0].mxu0
    %v1145 = vadd.f32 %v803, %v1144
    %v1146 = vpop.f32.mrb[0].mxu0
    %1147 = vmatprep.mubr.f32.mxu0 0.0
    %1148 = vmatmul.mubr.f32.gmra.mrb[0].mxu0 %v858
    %v1149 = vpop.f32.mrb[0].mxu0
    %v1150 = vadd.f32 %v803, %v1149
    %v1151 = vpop.f32.mrb[0].mxu0
    %1152 = vmatprep.mubr.f32.mxu0 0.0
    %1153 = vmatmul.mubr.f32.gmra.mrb[0].mxu0 %v861
    %v1154 = vpop.f32.mrb[0].mxu0
    %v1155 = vadd.f32 %v803, %v1154
    %v1156 = vpop.f32.mrb[0].mxu0
    %1157 = vmatprep.mubr.f32.mxu0 0.0
    %1158 = vmatmul.mubr.f32.gmra.mrb[0].mxu0 %v864
    %v1159 = vpop.f32.mrb[0].mxu0
    %v1160 = vadd.f32 %v803, %v1159
    %v1161 = vpop.f32.mrb[0].mxu0
    %1162 = vmatprep.mubr.f32.mxu0 0.0
    %1163 = vmatmul.mubr.f32.gmra.mrb[0].mxu0 %v867
    %v1164 = vpop.f32.mrb[0].mxu0
    %v1165 = vadd.f32 %v803, %v1164
    %v1166 = vpop.f32.mrb[0].mxu0
    %1167 = vmatprep.mubr.f32.mxu0 0.0
    %1168 = vmatmul.mubr.f32.gmra.mrb[0].mxu0 %v870
    %v1169 = vpop.f32.mrb[0].mxu0
    %v1170 = vadd.f32 %v803, %v1169
    %v1171 = vpop.f32.mrb[0].mxu0
    %1172 = vmatprep.mubr.f32.mxu0 0.0
    %1173 = vmatmul.mubr.f32.gmra.mrb[0].mxu0 %v873
    %v1174 = vpop.f32.mrb[0].mxu0
    %v1175 = vadd.f32 %v803, %v1174
    %v1176 = vpop.f32.mrb[0].mxu0
    %1177 = vmatprep.mubr.f32.mxu0 0.0
    %1178 = vmatmul.mubr.f32.gmra.mrb[0].mxu0 %v876
    %v1179 = vpop.f32.mrb[0].mxu0
    %v1180 = vadd.f32 %v803, %v1179
    %v1181 = vpop.f32.mrb[0].mxu0
    %1182 = vmatprep.mubr.f32.mxu0 0.0
    %1183 = vmatmul.mubr.f32.gmra.mrb[0].mxu0 %v879
    %v1184 = vpop.f32.mrb[0].mxu0
    %v1185 = vadd.f32 %v803, %v1184
    %v1186 = vpop.f32.mrb[0].mxu0
    %1187 = vmatprep.mubr.f32.mxu0 0.0
    %1188 = vmatmul.mubr.f32.gmra.mrb[0].mxu0 %v882
    %v1189 = vpop.f32.mrb[0].mxu0
    %v1190 = vadd.f32 %v803, %v1189
    %v1191 = vpop.f32.mrb[0].mxu0
    %1192 = vmatprep.mubr.f32.mxu0 0.0
    %1193 = vmatmul.mubr.f32.gmra.mrb[0].mxu0 %v885
    %v1194 = vpop.f32.mrb[0].mxu0
    %v1195 = vadd.f32 %v803, %v1194
    %v1196 = vpop.f32.mrb[0].mxu0
    %1197 = vmatprep.mubr.f32.mxu0 0.0
    %1198 = vmatmul.mubr.f32.gmra.mrb[0].mxu0 %v888
    %v1199 = vpop.f32.mrb[0].mxu0
    %v1200 = vadd.f32 %v803, %v1199
    %v1201 = vpop.f32.mrb[0].mxu0
    %1202 = vmatprep.mubr.f32.mxu0 0.0
    %1203 = vmatmul.mubr.f32.gmra.mrb[0].mxu0 %v891
    %v1204 = vpop.f32.mrb[0].mxu0
    %v1205 = vadd.f32 %v803, %v1204
    %v1206 = vpop.f32.mrb[0].mxu0
    %1207 = vmatprep.mubr.f32.mxu0 0.0
    %1208 = vmatmul.mubr.f32.gmra.mrb[0].mxu0 %v894
    %v1209 = vpop.f32.mrb[0].mxu0
    %v1210 = vadd.f32 %v803, %v1209
    %v1211 = vpop.f32.mrb[0].mxu0
    %1212 = vmatprep.mubr.f32.mxu0 0.0
    %1213 = vmatmul.mubr.f32.gmra.mrb[0].mxu0 %v897
    %v1214 = vpop.f32.mrb[0].mxu0
    %v1215 = vadd.f32 %v803, %v1214
    %v1216 = vpop.f32.mrb[0].mxu0
    %1217 = vmatprep.mubr.f32.mxu0 0.0
    %1218 = vmatmul.mubr.f32.gmra.mrb[0].mxu0 %v900
    %v1219 = vpop.f32.mrb[0].mxu0
    %v1220 = vadd.f32 %v803, %v1219
    %v1221 = vpop.f32.mrb[0].mxu0
    %1222 = vmatprep.mubr.f32.mxu0 0.0
    %1223 = vmatmul.mubr.f32.gmra.mrb[0].mxu0 %v903
    %v1224 = vpop.f32.mrb[0].mxu0
    %v1225 = vadd.f32 %v803, %v1224
    %v1226 = vpop.f32.mrb[0].mxu0
    %1227 = vmatprep.mubr.f32.mxu0 0.0
    %1228 = vmatmul.mubr.f32.gmra.mrb[0].mxu0 %v906
    %v1229 = vpop.f32.mrb[0].mxu0
    %v1230 = vadd.f32 %v803, %v1229
    %v1231 = vpop.f32.mrb[0].mxu0
    %1232 = vmatprep.mubr.f32.mxu0 0.0
    %1233 = vmatmul.mubr.f32.gmra.mrb[0].mxu0 %v909
    %v1234 = vpop.f32.mrb[0].mxu0
    %v1235 = vadd.f32 %v803, %v1234
    %v1236 = vpop.f32.mrb[0].mxu0
    %1237 = vmatprep.mubr.f32.mxu0 0.0
    %1238 = vmatmul.mubr.f32.gmra.mrb[0].mxu0 %v912
    %v1239 = vpop.f32.mrb[0].mxu0
    %v1240 = vadd.f32 %v803, %v1239
    %v1241 = vpop.f32.mrb[0].mxu0
    %1242 = vmatprep.mubr.f32.mxu0 0.0
    %1243 = vmatmul.mubr.f32.gmra.mrb[0].mxu0 %v915
    %v1244 = vpop.f32.mrb[0].mxu0
    %v1245 = vadd.f32 %v803, %v1244
    %v1246 = vpop.f32.mrb[0].mxu0
    %1247 = vmatprep.mubr.f32.mxu0 0.0
    %1248 = vmatmul.mubr.f32.gmra.mrb[0].mxu0 %v918
    %v1249 = vpop.f32.mrb[0].mxu0
    %v1250 = vadd.f32 %v803, %v1249
    %v1251 = vpop.f32.mrb[0].mxu0
    %1252 = vmatprep.mubr.f32.mxu0 0.0
    %1253 = vmatmul.mubr.f32.gmra.mrb[0].mxu0 %v921
    %v1254 = vpop.f32.mrb[0].mxu0
    %v1255 = vadd.f32 %v803, %v1254
    %v1256 = vpop.f32.mrb[0].mxu0
    %1257 = vmatprep.mubr.f32.mxu0 0.0
    %1258 = vmatmul.mubr.f32.gmra.mrb[0].mxu0 %v924
    %v1259 = vpop.f32.mrb[0].mxu0
    %v1260 = vadd.f32 %v803, %v1259
    %v1261 = vpop.f32.mrb[0].mxu0
    %1262 = vmatprep.mubr.f32.mxu0 0.0
    %1263 = vmatmul.mubr.f32.gmra.mrb[0].mxu0 %v927
    %v1264 = vpop.f32.mrb[0].mxu0
    %v1265 = vadd.f32 %v803, %v1264
    %v1266 = vpop.f32.mrb[0].mxu0
    %1267 = vmatprep.mubr.f32.mxu0 0.0
    %1268 = vmatmul.mubr.f32.gmra.mrb[0].mxu0 %v930
    %v1269 = vpop.f32.mrb[0].mxu0
    %v1270 = vadd.f32 %v803, %v1269
    %v1271 = vpop.f32.mrb[0].mxu0
    %1272 = vmatprep.mubr.f32.mxu0 0.0
    %1273 = vmatmul.mubr.f32.gmra.mrb[0].mxu0 %v933
    %v1274 = vpop.f32.mrb[0].mxu0
    %v1275 = vadd.f32 %v803, %v1274
    %v1276 = vpop.f32.mrb[0].mxu0
    %1277 = vmatprep.mubr.f32.mxu0 0.0
    %1278 = vmatmul.mubr.f32.gmra.mrb[0].mxu0 %v936
    %v1279 = vpop.f32.mrb[0].mxu0
    %v1280 = vadd.f32 %v803, %v1279
    %v1281 = vpop.f32.mrb[0].mxu0
    %1282 = vmatprep.mubr.f32.mxu0 0.0
    %1283 = vmatmul.mubr.f32.gmra.mrb[0].mxu0 %v939
    %v1284 = vpop.f32.mrb[0].mxu0
    %v1285 = vadd.f32 %v803, %v1284
    %v1286 = vpop.f32.mrb[0].mxu0
    %1287 = vmatprep.mubr.f32.mxu0 0.0
    %1288 = vmatmul.mubr.f32.gmra.mrb[0].mxu0 %v942
    %v1289 = vpop.f32.mrb[0].mxu0
    %v1290 = vadd.f32 %v803, %v1289
    %v1291 = vpop.f32.mrb[0].mxu0
    %1292 = vmatprep.mubr.f32.mxu0 0.0
    %1293 = vmatmul.mubr.f32.gmra.mrb[0].mxu0 %v945
    %v1294 = vpop.f32.mrb[0].mxu0
    %v1295 = vadd.f32 %v803, %v1294
    %v1296 = vpop.f32.mrb[0].mxu0
    %1297 = vmatprep.mubr.f32.mxu0 0.0
    %1298 = vmatmul.mubr.f32.gmra.mrb[0].mxu0 %v948
    %v1299 = vpop.f32.mrb[0].mxu0
    %v1300 = vadd.f32 %v803, %v1299
    %v1301 = vpop.f32.mrb[0].mxu0
    %1302 = vmatprep.mubr.f32.mxu0 0.0
    %1303 = vmatmul.mubr.f32.gmra.mrb[0].mxu0 %v951
    %v1304 = vpop.f32.mrb[0].mxu0
    %v1305 = vadd.f32 %v803, %v1304
    %v1306 = vpop.f32.mrb[0].mxu0
    %1307 = vmatprep.mubr.f32.mxu0 0.0
    %1308 = vmatmul.mubr.f32.gmra.mrb[0].mxu0 %v954
    %v1309 = vpop.f32.mrb[0].mxu0
    %v1310 = vadd.f32 %v803, %v1309
    %v1311 = vpop.f32.mrb[0].mxu0
    %1312 = vmatprep.mubr.f32.mxu0 0.0
    %1313 = vmatmul.mubr.f32.gmra.mrb[0].mxu0 %v957
    %v1314 = vpop.f32.mrb[0].mxu0
    %v1315 = vadd.f32 %v803, %v1314
    %v1316 = vpop.f32.mrb[0].mxu0
    %1317 = vmatprep.mubr.f32.mxu0 0.0
    %1318 = vmatmul.mubr.f32.gmra.mrb[0].mxu0 %v960
    %v1319 = vpop.f32.mrb[0].mxu0
    %v1320 = vadd.f32 %v803, %v1319
    %v1321 = vpop.f32.mrb[0].mxu0
    %1322 = vmatprep.mubr.f32.mxu0 0.0
    %1323 = vmatmul.mubr.f32.gmra.mrb[0].mxu0 %v963
    %v1324 = vpop.f32.mrb[0].mxu0
    %v1325 = vadd.f32 %v803, %v1324
    %v1326 = vpop.f32.mrb[0].mxu0
    %1327 = vmatprep.mubr.f32.mxu0 0.0
    %1328 = vmatmul.mubr.f32.gmra.mrb[0].mxu0 %v966
    %v1329 = vpop.f32.mrb[0].mxu0
    %v1330 = vadd.f32 %v803, %v1329
    %v1331 = vpop.f32.mrb[0].mxu0
    %1332 = vmatprep.mubr.f32.mxu0 0.0
    %1333 = vmatmul.mubr.f32.gmra.mrb[0].mxu0 %v969
    %v1334 = vpop.f32.mrb[0].mxu0
    %v1335 = vadd.f32 %v803, %v1334
    %v1336 = vpop.f32.mrb[0].mxu0
    %1337 = vmatprep.mubr.f32.mxu0 0.0
    %1338 = vmatmul.mubr.f32.gmra.mrb[0].mxu0 %v972
    %v1339 = vpop.f32.mrb[0].mxu0
    %v1340 = vadd.f32 %v803, %v1339
    %v1341 = vpop.f32.mrb[0].mxu0
    %1342 = vmatprep.mubr.f32.mxu0 0.0
    %1343 = vmatmul.mubr.f32.gmra.mrb[0].mxu0 %v975
    %v1344 = vpop.f32.mrb[0].mxu0
    %v1345 = vadd.f32 %v803, %v1344
    %v1346 = vpop.f32.mrb[0].mxu0
    %1347 = vmatprep.mubr.f32.mxu0 0.0
    %1348 = vmatmul.mubr.f32.gmra.mrb[0].mxu0 %v978
    %v1349 = vpop.f32.mrb[0].mxu0
    %v1350 = vadd.f32 %v803, %v1349
    %v1351 = vpop.f32.mrb[0].mxu0
    %1352 = vmatprep.mubr.f32.mxu0 0.0
    %1353 = vmatmul.mubr.f32.gmra.mrb[0].mxu0 %v981
    %v1354 = vpop.f32.mrb[0].mxu0
    %v1355 = vadd.f32 %v803, %v1354
    %v1356 = vpop.f32.mrb[0].mxu0
    %1357 = vmatprep.mubr.f32.mxu0 0.0
    %1358 = vmatmul.mubr.f32.gmra.mrb[0].mxu0 %v984
    %v1359 = vpop.f32.mrb[0].mxu0
    %v1360 = vadd.f32 %v803, %v1359
    %v1361 = vpop.f32.mrb[0].mxu0
    %1362 = vmatprep.mubr.f32.mxu0 0.0
    %1363 = vmatmul.mubr.f32.gmra.mrb[0].mxu0 %v987
    %v1364 = vpop.f32.mrb[0].mxu0
    %v1365 = vadd.f32 %v803, %v1364
    %v1366 = vpop.f32.mrb[0].mxu0
    %1367 = vmatprep.mubr.f32.mxu0 0.0
    %1368 = vmatmul.mubr.f32.gmra.mrb[0].mxu0 %v990
    %v1369 = vpop.f32.mrb[0].mxu0
    %v1370 = vadd.f32 %v803, %v1369
    %v1371 = vpop.f32.mrb[0].mxu0
    %1372 = vmatprep.mubr.f32.mxu0 0.0
    %1373 = vmatmul.mubr.f32.gmra.mrb[0].mxu0 %v993
    %v1374 = vpop.f32.mrb[0].mxu0
    %v1375 = vadd.f32 %v803, %v1374
    %v1376 = vpop.f32.mrb[0].mxu0
    %1377 = vmatprep.mubr.f32.mxu0 0.0
    %1378 = vmatmul.mubr.f32.gmra.mrb[0].mxu0 %v996
    %v1379 = vpop.f32.mrb[0].mxu0
    %v1380 = vadd.f32 %v803, %v1379
    %v1381 = vpop.f32.mrb[0].mxu0
    %1382 = vdwg.mxu0
    %v1383 = vmax.f32 %v1065, 0.0
    %v1384 = vmax.f32 %v1070, 0.0
    %v1385 = vmax.f32 %v1075, 0.0
    %v1386 = vmax.f32 %v1080, 0.0
    %v1387 = vmax.f32 %v1085, 0.0
    %v1388 = vmax.f32 %v1090, 0.0
    %v1389 = vmax.f32 %v1095, 0.0
    %v1390 = vmax.f32 %v1100, 0.0
    %v1391 = vmax.f32 %v1105, 0.0
    %v1392 = vmax.f32 %v1110, 0.0
    %v1393 = vmax.f32 %v1115, 0.0
    %v1394 = vmax.f32 %v1120, 0.0
    %v1395 = vmax.f32 %v1125, 0.0
    %v1396 = vmax.f32 %v1130, 0.0
    %v1397 = vmax.f32 %v1135, 0.0
    %v1398 = vmax.f32 %v1140, 0.0
    %v1399 = vmax.f32 %v1145, 0.0
    %v1400 = vmax.f32 %v1150, 0.0
    %v1401 = vmax.f32 %v1155, 0.0
    %v1402 = vmax.f32 %v1160, 0.0
    %v1403 = vmax.f32 %v1165, 0.0
    %v1404 = vmax.f32 %v1170, 0.0
    %v1405 = vmax.f32 %v1175, 0.0
    %v1406 = vmax.f32 %v1180, 0.0
    %v1407 = vmax.f32 %v1185, 0.0
    %v1408 = vmax.f32 %v1190, 0.0
    %v1409 = vmax.f32 %v1195, 0.0
    %v1410 = vmax.f32 %v1200, 0.0
    %v1411 = vmax.f32 %v1205, 0.0
    %v1412 = vmax.f32 %v1210, 0.0
    %v1413 = vmax.f32 %v1215, 0.0
    %v1414 = vmax.f32 %v1220, 0.0
    %v1415 = vmax.f32 %v1225, 0.0
    %v1416 = vmax.f32 %v1230, 0.0
    %v1417 = vmax.f32 %v1235, 0.0
    %v1418 = vmax.f32 %v1240, 0.0
    %v1419 = vmax.f32 %v1245, 0.0
    %v1420 = vmax.f32 %v1250, 0.0
    %v1421 = vmax.f32 %v1255, 0.0
    %v1422 = vmax.f32 %v1260, 0.0
    %v1423 = vmax.f32 %v1265, 0.0
    %v1424 = vmax.f32 %v1270, 0.0
    %v1425 = vmax.f32 %v1275, 0.0
    %v1426 = vmax.f32 %v1280, 0.0
    %v1427 = vmax.f32 %v1285, 0.0
    %v1428 = vmax.f32 %v1290, 0.0
    %v1429 = vmax.f32 %v1295, 0.0
    %v1430 = vmax.f32 %v1300, 0.0
    %v1431 = vmax.f32 %v1305, 0.0
    %v1432 = vmax.f32 %v1310, 0.0
    %v1433 = vmax.f32 %v1315, 0.0
    %v1434 = vmax.f32 %v1320, 0.0
    %v1435 = vmax.f32 %v1325, 0.0
    %v1436 = vmax.f32 %v1330, 0.0
    %v1437 = vmax.f32 %v1335, 0.0
    %v1438 = vmax.f32 %v1340, 0.0
    %v1439 = vmax.f32 %v1345, 0.0
    %v1440 = vmax.f32 %v1350, 0.0
    %v1441 = vmax.f32 %v1355, 0.0
    %v1442 = vmax.f32 %v1360, 0.0
    %v1443 = vmax.f32 %v1365, 0.0
    %v1444 = vmax.f32 %v1370, 0.0
    %v1445 = vmax.f32 %v1375, 0.0
    %v1446 = vmax.f32 %v1380, 0.0
    %v1447 = vld [vmem:[%s7] sm:$0xff]
    %v1448 = vld [vmem:[%s7 + $0x8] sm:$0xff]
    %v1449 = vld [vmem:[%s7 + $0x10] sm:$0xff]
    %v1450 = vld [vmem:[%s7 + $0x18] sm:$0xff]
    %v1451 = vld [vmem:[%s7 + $0x20] sm:$0xff]
    %v1452 = vld [vmem:[%s7 + $0x28] sm:$0xff]
    %v1453 = vld [vmem:[%s7 + $0x30] sm:$0xff]
    %v1454 = vld [vmem:[%s7 + $0x38] sm:$0xff]
    %v1456 = vsel %vm805, %v1383, 0
    %v1459 = vsel %vm805, %v1384, 0
    %v1462 = vsel %vm805, %v1385, 0
    %v1465 = vsel %vm805, %v1386, 0
    %v1468 = vsel %vm805, %v1387, 0
    %v1471 = vsel %vm805, %v1388, 0
    %v1474 = vsel %vm805, %v1389, 0
    %v1477 = vsel %vm805, %v1390, 0
    %v1480 = vsel %vm805, %v1391, 0
    %v1483 = vsel %vm805, %v1392, 0
    %v1486 = vsel %vm805, %v1393, 0
    %v1489 = vsel %vm805, %v1394, 0
    %v1492 = vsel %vm805, %v1395, 0
    %v1495 = vsel %vm805, %v1396, 0
    %v1498 = vsel %vm805, %v1397, 0
    %v1501 = vsel %vm805, %v1398, 0
    %v1504 = vsel %vm805, %v1399, 0
    %v1507 = vsel %vm805, %v1400, 0
    %v1510 = vsel %vm805, %v1401, 0
    %v1513 = vsel %vm805, %v1402, 0
    %v1516 = vsel %vm805, %v1403, 0
    %v1519 = vsel %vm805, %v1404, 0
    %v1522 = vsel %vm805, %v1405, 0
    %v1525 = vsel %vm805, %v1406, 0
    %v1528 = vsel %vm805, %v1407, 0
    %v1531 = vsel %vm805, %v1408, 0
    %v1534 = vsel %vm805, %v1409, 0
    %v1537 = vsel %vm805, %v1410, 0
    %v1540 = vsel %vm805, %v1411, 0
    %v1543 = vsel %vm805, %v1412, 0
    %v1546 = vsel %vm805, %v1413, 0
    %v1549 = vsel %vm805, %v1414, 0
    %v1552 = vsel %vm805, %v1415, 0
    %v1555 = vsel %vm805, %v1416, 0
    %v1558 = vsel %vm805, %v1417, 0
    %v1561 = vsel %vm805, %v1418, 0
    %v1564 = vsel %vm805, %v1419, 0
    %v1567 = vsel %vm805, %v1420, 0
    %v1570 = vsel %vm805, %v1421, 0
    %v1573 = vsel %vm805, %v1422, 0
    %v1576 = vsel %vm805, %v1423, 0
    %v1579 = vsel %vm805, %v1424, 0
    %v1582 = vsel %vm805, %v1425, 0
    %v1585 = vsel %vm805, %v1426, 0
    %v1588 = vsel %vm805, %v1427, 0
    %v1591 = vsel %vm805, %v1428, 0
    %v1594 = vsel %vm805, %v1429, 0
    %v1597 = vsel %vm805, %v1430, 0
    %v1600 = vsel %vm805, %v1431, 0
    %v1603 = vsel %vm805, %v1432, 0
    %v1606 = vsel %vm805, %v1433, 0
    %v1609 = vsel %vm805, %v1434, 0
    %v1612 = vsel %vm805, %v1435, 0
    %v1615 = vsel %vm805, %v1436, 0
    %v1618 = vsel %vm805, %v1437, 0
    %v1621 = vsel %vm805, %v1438, 0
    %v1624 = vsel %vm805, %v1439, 0
    %v1627 = vsel %vm805, %v1440, 0
    %v1630 = vsel %vm805, %v1441, 0
    %v1633 = vsel %vm805, %v1442, 0
    %v1636 = vsel %vm805, %v1443, 0
    %v1639 = vsel %vm805, %v1444, 0
    %v1642 = vsel %vm805, %v1445, 0
    %v1645 = vsel %vm805, %v1446, 0
    %1647 = vmatprep.subr.mxu0 0.0
    %1648 = vmatpush1.msra.mxu0 %v1447
    %1649 = vmatprep.subr.mxu0 0.0
    %1650 = vmatpush1.msra.mxu0 %v1448
    %1651 = vmatprep.subr.mxu0 0.0
    %1652 = vmatpush1.msra.mxu0 %v1449
    %1653 = vmatprep.subr.mxu0 0.0
    %1654 = vmatpush1.msra.mxu0 %v1450
    %1655 = vmatprep.subr.mxu0 0.0
    %1656 = vmatpush1.msra.mxu0 %v1451
    %1657 = vmatprep.subr.mxu0 0.0
    %1658 = vmatpush1.msra.mxu0 %v1452
    %1659 = vmatprep.subr.mxu0 0.0
    %1660 = vmatpush1.msra.mxu0 %v1453
    %1661 = vmatprep.subr.mxu0 0.0
    %1662 = vmatpush1.msra.mxu0 %v1454
    %1663 = vmatprep.subr.mxu0 0.0
    %1664 = vmatpush1.msra.mxu0 0.0
    %1665 = vmatprep.subr.mxu0 0.0
    %1666 = vmatpush1.msra.mxu0 0.0
    %1667 = vmatprep.subr.mxu0 0.0
    %1668 = vmatpush1.msra.mxu0 0.0
    %1669 = vmatprep.subr.mxu0 0.0
    %1670 = vmatpush1.msra.mxu0 0.0
    %1671 = vmatprep.subr.mxu0 0.0
    %1672 = vmatpush1.msra.mxu0 0.0
    %1673 = vmatprep.subr.mxu0 0.0
    %1674 = vmatpush1.msra.mxu0 0.0
    %1675 = vmatprep.subr.mxu0 0.0
    %1676 = vmatpush1.msra.mxu0 0.0
    %1677 = vmatprep.subr.mxu0 0.0
    %1678 = vmatpush1.msra.mxu0 0.0
    %1679 = vmatprep.subr.mxu0 0.0
    %1680 = vmatpush1.msra.mxu0 0.0
    %1681 = vmatprep.subr.mxu0 0.0
    %1682 = vmatpush1.msra.mxu0 0.0
    %1683 = vmatprep.subr.mxu0 0.0
    %1684 = vmatpush1.msra.mxu0 0.0
    %1685 = vmatprep.subr.mxu0 0.0
    %1686 = vmatpush1.msra.mxu0 0.0
    %1687 = vmatprep.subr.mxu0 0.0
    %1688 = vmatpush1.msra.mxu0 0.0
    %1689 = vmatprep.subr.mxu0 0.0
    %1690 = vmatpush1.msra.mxu0 0.0
    %1691 = vmatprep.subr.mxu0 0.0
    %1692 = vmatpush1.msra.mxu0 0.0
    %1693 = vmatprep.subr.mxu0 0.0
    %1694 = vmatpush1.msra.mxu0 0.0
    %1695 = vmatprep.subr.mxu0 0.0
    %1696 = vmatpush1.msra.mxu0 0.0
    %1697 = vmatprep.subr.mxu0 0.0
    %1698 = vmatpush1.msra.mxu0 0.0
    %1699 = vmatprep.subr.mxu0 0.0
    %1700 = vmatpush1.msra.mxu0 0.0
    %1701 = vmatprep.subr.mxu0 0.0
    %1702 = vmatpush1.msra.mxu0 0.0
    %1703 = vmatprep.subr.mxu0 0.0
    %1704 = vmatpush1.msra.mxu0 0.0
    %1705 = vmatprep.subr.mxu0 0.0
    %1706 = vmatpush1.msra.mxu0 0.0
    %1707 = vmatprep.subr.mxu0 0.0
    %1708 = vmatpush1.msra.mxu0 0.0
    %1709 = vmatprep.subr.mxu0 0.0
    %1710 = vmatpush1.msra.mxu0 0.0
    %1711 = vmatprep.mubr.f32.mxu0 0.0
    %1712 = vmatmul.mubr.f32.gmra.mrb[0].mxu0 %v1456
    %v1713 = vpop.f32.mrb[0].mxu0
    %v1714 = vadd.f32 0.0, %v1713
    %v1715 = vpop.f32.mrb[0].mxu0
    %1716 = vmatprep.mubr.f32.mxu0 0.0
    %1717 = vmatmul.mubr.f32.gmra.mrb[0].mxu0 %v1459
    %v1718 = vpop.f32.mrb[0].mxu0
    %v1719 = vadd.f32 0.0, %v1718
    %v1720 = vpop.f32.mrb[0].mxu0
    %1721 = vmatprep.mubr.f32.mxu0 0.0
    %1722 = vmatmul.mubr.f32.gmra.mrb[0].mxu0 %v1462
    %v1723 = vpop.f32.mrb[0].mxu0
    %v1724 = vadd.f32 0.0, %v1723
    %v1725 = vpop.f32.mrb[0].mxu0
    %1726 = vmatprep.mubr.f32.mxu0 0.0
    %1727 = vmatmul.mubr.f32.gmra.mrb[0].mxu0 %v1465
    %v1728 = vpop.f32.mrb[0].mxu0
    %v1729 = vadd.f32 0.0, %v1728
    %v1730 = vpop.f32.mrb[0].mxu0
    %1731 = vmatprep.mubr.f32.mxu0 0.0
    %1732 = vmatmul.mubr.f32.gmra.mrb[0].mxu0 %v1468
    %v1733 = vpop.f32.mrb[0].mxu0
    %v1734 = vadd.f32 0.0, %v1733
    %v1735 = vpop.f32.mrb[0].mxu0
    %1736 = vmatprep.mubr.f32.mxu0 0.0
    %1737 = vmatmul.mubr.f32.gmra.mrb[0].mxu0 %v1471
    %v1738 = vpop.f32.mrb[0].mxu0
    %v1739 = vadd.f32 0.0, %v1738
    %v1740 = vpop.f32.mrb[0].mxu0
    %1741 = vmatprep.mubr.f32.mxu0 0.0
    %1742 = vmatmul.mubr.f32.gmra.mrb[0].mxu0 %v1474
    %v1743 = vpop.f32.mrb[0].mxu0
    %v1744 = vadd.f32 0.0, %v1743
    %v1745 = vpop.f32.mrb[0].mxu0
    %1746 = vmatprep.mubr.f32.mxu0 0.0
    %1747 = vmatmul.mubr.f32.gmra.mrb[0].mxu0 %v1477
    %v1748 = vpop.f32.mrb[0].mxu0
    %v1749 = vadd.f32 0.0, %v1748
    %v1750 = vpop.f32.mrb[0].mxu0
    %1751 = vmatprep.mubr.f32.mxu0 0.0
    %1752 = vmatmul.mubr.f32.gmra.mrb[0].mxu0 %v1480
    %v1753 = vpop.f32.mrb[0].mxu0
    %v1754 = vadd.f32 0.0, %v1753
    %v1755 = vpop.f32.mrb[0].mxu0
    %1756 = vmatprep.mubr.f32.mxu0 0.0
    %1757 = vmatmul.mubr.f32.gmra.mrb[0].mxu0 %v1483
    %v1758 = vpop.f32.mrb[0].mxu0
    %v1759 = vadd.f32 0.0, %v1758
    %v1760 = vpop.f32.mrb[0].mxu0
    %1761 = vmatprep.mubr.f32.mxu0 0.0
    %1762 = vmatmul.mubr.f32.gmra.mrb[0].mxu0 %v1486
    %v1763 = vpop.f32.mrb[0].mxu0
    %v1764 = vadd.f32 0.0, %v1763
    %v1765 = vpop.f32.mrb[0].mxu0
    %1766 = vmatprep.mubr.f32.mxu0 0.0
    %1767 = vmatmul.mubr.f32.gmra.mrb[0].mxu0 %v1489
    %v1768 = vpop.f32.mrb[0].mxu0
    %v1769 = vadd.f32 0.0, %v1768
    %v1770 = vpop.f32.mrb[0].mxu0
    %1771 = vmatprep.mubr.f32.mxu0 0.0
    %1772 = vmatmul.mubr.f32.gmra.mrb[0].mxu0 %v1492
    %v1773 = vpop.f32.mrb[0].mxu0
    %v1774 = vadd.f32 0.0, %v1773
    %v1775 = vpop.f32.mrb[0].mxu0
    %1776 = vmatprep.mubr.f32.mxu0 0.0
    %1777 = vmatmul.mubr.f32.gmra.mrb[0].mxu0 %v1495
    %v1778 = vpop.f32.mrb[0].mxu0
    %v1779 = vadd.f32 0.0, %v1778
    %v1780 = vpop.f32.mrb[0].mxu0
    %1781 = vmatprep.mubr.f32.mxu0 0.0
    %1782 = vmatmul.mubr.f32.gmra.mrb[0].mxu0 %v1498
    %v1783 = vpop.f32.mrb[0].mxu0
    %v1784 = vadd.f32 0.0, %v1783
    %v1785 = vpop.f32.mrb[0].mxu0
    %1786 = vmatprep.mubr.f32.mxu0 0.0
    %1787 = vmatmul.mubr.f32.gmra.mrb[0].mxu0 %v1501
    %v1788 = vpop.f32.mrb[0].mxu0
    %v1789 = vadd.f32 0.0, %v1788
    %v1790 = vpop.f32.mrb[0].mxu0
    %1791 = vmatprep.mubr.f32.mxu0 0.0
    %1792 = vmatmul.mubr.f32.gmra.mrb[0].mxu0 %v1504
    %v1793 = vpop.f32.mrb[0].mxu0
    %v1794 = vadd.f32 0.0, %v1793
    %v1795 = vpop.f32.mrb[0].mxu0
    %1796 = vmatprep.mubr.f32.mxu0 0.0
    %1797 = vmatmul.mubr.f32.gmra.mrb[0].mxu0 %v1507
    %v1798 = vpop.f32.mrb[0].mxu0
    %v1799 = vadd.f32 0.0, %v1798
    %v1800 = vpop.f32.mrb[0].mxu0
    %1801 = vmatprep.mubr.f32.mxu0 0.0
    %1802 = vmatmul.mubr.f32.gmra.mrb[0].mxu0 %v1510
    %v1803 = vpop.f32.mrb[0].mxu0
    %v1804 = vadd.f32 0.0, %v1803
    %v1805 = vpop.f32.mrb[0].mxu0
    %1806 = vmatprep.mubr.f32.mxu0 0.0
    %1807 = vmatmul.mubr.f32.gmra.mrb[0].mxu0 %v1513
    %v1808 = vpop.f32.mrb[0].mxu0
    %v1809 = vadd.f32 0.0, %v1808
    %v1810 = vpop.f32.mrb[0].mxu0
    %1811 = vmatprep.mubr.f32.mxu0 0.0
    %1812 = vmatmul.mubr.f32.gmra.mrb[0].mxu0 %v1516
    %v1813 = vpop.f32.mrb[0].mxu0
    %v1814 = vadd.f32 0.0, %v1813
    %v1815 = vpop.f32.mrb[0].mxu0
    %1816 = vmatprep.mubr.f32.mxu0 0.0
    %1817 = vmatmul.mubr.f32.gmra.mrb[0].mxu0 %v1519
    %v1818 = vpop.f32.mrb[0].mxu0
    %v1819 = vadd.f32 0.0, %v1818
    %v1820 = vpop.f32.mrb[0].mxu0
    %1821 = vmatprep.mubr.f32.mxu0 0.0
    %1822 = vmatmul.mubr.f32.gmra.mrb[0].mxu0 %v1522
    %v1823 = vpop.f32.mrb[0].mxu0
    %v1824 = vadd.f32 0.0, %v1823
    %v1825 = vpop.f32.mrb[0].mxu0
    %1826 = vmatprep.mubr.f32.mxu0 0.0
    %1827 = vmatmul.mubr.f32.gmra.mrb[0].mxu0 %v1525
    %v1828 = vpop.f32.mrb[0].mxu0
    %v1829 = vadd.f32 0.0, %v1828
    %v1830 = vpop.f32.mrb[0].mxu0
    %1831 = vmatprep.mubr.f32.mxu0 0.0
    %1832 = vmatmul.mubr.f32.gmra.mrb[0].mxu0 %v1528
    %v1833 = vpop.f32.mrb[0].mxu0
    %v1834 = vadd.f32 0.0, %v1833
    %v1835 = vpop.f32.mrb[0].mxu0
    %1836 = vmatprep.mubr.f32.mxu0 0.0
    %1837 = vmatmul.mubr.f32.gmra.mrb[0].mxu0 %v1531
    %v1838 = vpop.f32.mrb[0].mxu0
    %v1839 = vadd.f32 0.0, %v1838
    %v1840 = vpop.f32.mrb[0].mxu0
    %1841 = vmatprep.mubr.f32.mxu0 0.0
    %1842 = vmatmul.mubr.f32.gmra.mrb[0].mxu0 %v1534
    %v1843 = vpop.f32.mrb[0].mxu0
    %v1844 = vadd.f32 0.0, %v1843
    %v1845 = vpop.f32.mrb[0].mxu0
    %1846 = vmatprep.mubr.f32.mxu0 0.0
    %1847 = vmatmul.mubr.f32.gmra.mrb[0].mxu0 %v1537
    %v1848 = vpop.f32.mrb[0].mxu0
    %v1849 = vadd.f32 0.0, %v1848
    %v1850 = vpop.f32.mrb[0].mxu0
    %1851 = vmatprep.mubr.f32.mxu0 0.0
    %1852 = vmatmul.mubr.f32.gmra.mrb[0].mxu0 %v1540
    %v1853 = vpop.f32.mrb[0].mxu0
    %v1854 = vadd.f32 0.0, %v1853
    %v1855 = vpop.f32.mrb[0].mxu0
    %1856 = vmatprep.mubr.f32.mxu0 0.0
    %1857 = vmatmul.mubr.f32.gmra.mrb[0].mxu0 %v1543
    %v1858 = vpop.f32.mrb[0].mxu0
    %v1859 = vadd.f32 0.0, %v1858
    %v1860 = vpop.f32.mrb[0].mxu0
    %1861 = vmatprep.mubr.f32.mxu0 0.0
    %1862 = vmatmul.mubr.f32.gmra.mrb[0].mxu0 %v1546
    %v1863 = vpop.f32.mrb[0].mxu0
    %v1864 = vadd.f32 0.0, %v1863
    %v1865 = vpop.f32.mrb[0].mxu0
    %1866 = vmatprep.mubr.f32.mxu0 0.0
    %1867 = vmatmul.mubr.f32.gmra.mrb[0].mxu0 %v1549
    %v1868 = vpop.f32.mrb[0].mxu0
    %v1869 = vadd.f32 0.0, %v1868
    %v1870 = vpop.f32.mrb[0].mxu0
    %1871 = vmatprep.mubr.f32.mxu0 0.0
    %1872 = vmatmul.mubr.f32.gmra.mrb[0].mxu0 %v1552
    %v1873 = vpop.f32.mrb[0].mxu0
    %v1874 = vadd.f32 0.0, %v1873
    %v1875 = vpop.f32.mrb[0].mxu0
    %1876 = vmatprep.mubr.f32.mxu0 0.0
    %1877 = vmatmul.mubr.f32.gmra.mrb[0].mxu0 %v1555
    %v1878 = vpop.f32.mrb[0].mxu0
    %v1879 = vadd.f32 0.0, %v1878
    %v1880 = vpop.f32.mrb[0].mxu0
    %1881 = vmatprep.mubr.f32.mxu0 0.0
    %1882 = vmatmul.mubr.f32.gmra.mrb[0].mxu0 %v1558
    %v1883 = vpop.f32.mrb[0].mxu0
    %v1884 = vadd.f32 0.0, %v1883
    %v1885 = vpop.f32.mrb[0].mxu0
    %1886 = vmatprep.mubr.f32.mxu0 0.0
    %1887 = vmatmul.mubr.f32.gmra.mrb[0].mxu0 %v1561
    %v1888 = vpop.f32.mrb[0].mxu0
    %v1889 = vadd.f32 0.0, %v1888
    %v1890 = vpop.f32.mrb[0].mxu0
    %1891 = vmatprep.mubr.f32.mxu0 0.0
    %1892 = vmatmul.mubr.f32.gmra.mrb[0].mxu0 %v1564
    %v1893 = vpop.f32.mrb[0].mxu0
    %v1894 = vadd.f32 0.0, %v1893
    %v1895 = vpop.f32.mrb[0].mxu0
    %1896 = vmatprep.mubr.f32.mxu0 0.0
    %1897 = vmatmul.mubr.f32.gmra.mrb[0].mxu0 %v1567
    %v1898 = vpop.f32.mrb[0].mxu0
    %v1899 = vadd.f32 0.0, %v1898
    %v1900 = vpop.f32.mrb[0].mxu0
    %1901 = vmatprep.mubr.f32.mxu0 0.0
    %1902 = vmatmul.mubr.f32.gmra.mrb[0].mxu0 %v1570
    %v1903 = vpop.f32.mrb[0].mxu0
    %v1904 = vadd.f32 0.0, %v1903
    %v1905 = vpop.f32.mrb[0].mxu0
    %1906 = vmatprep.mubr.f32.mxu0 0.0
    %1907 = vmatmul.mubr.f32.gmra.mrb[0].mxu0 %v1573
    %v1908 = vpop.f32.mrb[0].mxu0
    %v1909 = vadd.f32 0.0, %v1908
    %v1910 = vpop.f32.mrb[0].mxu0
    %1911 = vmatprep.mubr.f32.mxu0 0.0
    %1912 = vmatmul.mubr.f32.gmra.mrb[0].mxu0 %v1576
    %v1913 = vpop.f32.mrb[0].mxu0
    %v1914 = vadd.f32 0.0, %v1913
    %v1915 = vpop.f32.mrb[0].mxu0
    %1916 = vmatprep.mubr.f32.mxu0 0.0
    %1917 = vmatmul.mubr.f32.gmra.mrb[0].mxu0 %v1579
    %v1918 = vpop.f32.mrb[0].mxu0
    %v1919 = vadd.f32 0.0, %v1918
    %v1920 = vpop.f32.mrb[0].mxu0
    %1921 = vmatprep.mubr.f32.mxu0 0.0
    %1922 = vmatmul.mubr.f32.gmra.mrb[0].mxu0 %v1582
    %v1923 = vpop.f32.mrb[0].mxu0
    %v1924 = vadd.f32 0.0, %v1923
    %v1925 = vpop.f32.mrb[0].mxu0
    %1926 = vmatprep.mubr.f32.mxu0 0.0
    %1927 = vmatmul.mubr.f32.gmra.mrb[0].mxu0 %v1585
    %v1928 = vpop.f32.mrb[0].mxu0
    %v1929 = vadd.f32 0.0, %v1928
    %v1930 = vpop.f32.mrb[0].mxu0
    %1931 = vmatprep.mubr.f32.mxu0 0.0
    %1932 = vmatmul.mubr.f32.gmra.mrb[0].mxu0 %v1588
    %v1933 = vpop.f32.mrb[0].mxu0
    %v1934 = vadd.f32 0.0, %v1933
    %v1935 = vpop.f32.mrb[0].mxu0
    %1936 = vmatprep.mubr.f32.mxu0 0.0
    %1937 = vmatmul.mubr.f32.gmra.mrb[0].mxu0 %v1591
    %v1938 = vpop.f32.mrb[0].mxu0
    %v1939 = vadd.f32 0.0, %v1938
    %v1940 = vpop.f32.mrb[0].mxu0
    %1941 = vmatprep.mubr.f32.mxu0 0.0
    %1942 = vmatmul.mubr.f32.gmra.mrb[0].mxu0 %v1594
    %v1943 = vpop.f32.mrb[0].mxu0
    %v1944 = vadd.f32 0.0, %v1943
    %v1945 = vpop.f32.mrb[0].mxu0
    %1946 = vmatprep.mubr.f32.mxu0 0.0
    %1947 = vmatmul.mubr.f32.gmra.mrb[0].mxu0 %v1597
    %v1948 = vpop.f32.mrb[0].mxu0
    %v1949 = vadd.f32 0.0, %v1948
    %v1950 = vpop.f32.mrb[0].mxu0
    %1951 = vmatprep.mubr.f32.mxu0 0.0
    %1952 = vmatmul.mubr.f32.gmra.mrb[0].mxu0 %v1600
    %v1953 = vpop.f32.mrb[0].mxu0
    %v1954 = vadd.f32 0.0, %v1953
    %v1955 = vpop.f32.mrb[0].mxu0
    %1956 = vmatprep.mubr.f32.mxu0 0.0
    %1957 = vmatmul.mubr.f32.gmra.mrb[0].mxu0 %v1603
    %v1958 = vpop.f32.mrb[0].mxu0
    %v1959 = vadd.f32 0.0, %v1958
    %v1960 = vpop.f32.mrb[0].mxu0
    %1961 = vmatprep.mubr.f32.mxu0 0.0
    %1962 = vmatmul.mubr.f32.gmra.mrb[0].mxu0 %v1606
    %v1963 = vpop.f32.mrb[0].mxu0
    %v1964 = vadd.f32 0.0, %v1963
    %v1965 = vpop.f32.mrb[0].mxu0
    %1966 = vmatprep.mubr.f32.mxu0 0.0
    %1967 = vmatmul.mubr.f32.gmra.mrb[0].mxu0 %v1609
    %v1968 = vpop.f32.mrb[0].mxu0
    %v1969 = vadd.f32 0.0, %v1968
    %v1970 = vpop.f32.mrb[0].mxu0
    %1971 = vmatprep.mubr.f32.mxu0 0.0
    %1972 = vmatmul.mubr.f32.gmra.mrb[0].mxu0 %v1612
    %v1973 = vpop.f32.mrb[0].mxu0
    %v1974 = vadd.f32 0.0, %v1973
    %v1975 = vpop.f32.mrb[0].mxu0
    %1976 = vmatprep.mubr.f32.mxu0 0.0
    %1977 = vmatmul.mubr.f32.gmra.mrb[0].mxu0 %v1615
    %v1978 = vpop.f32.mrb[0].mxu0
    %v1979 = vadd.f32 0.0, %v1978
    %v1980 = vpop.f32.mrb[0].mxu0
    %1981 = vmatprep.mubr.f32.mxu0 0.0
    %1982 = vmatmul.mubr.f32.gmra.mrb[0].mxu0 %v1618
    %v1983 = vpop.f32.mrb[0].mxu0
    %v1984 = vadd.f32 0.0, %v1983
    %v1985 = vpop.f32.mrb[0].mxu0
    %1986 = vmatprep.mubr.f32.mxu0 0.0
    %1987 = vmatmul.mubr.f32.gmra.mrb[0].mxu0 %v1621
    %v1988 = vpop.f32.mrb[0].mxu0
    %v1989 = vadd.f32 0.0, %v1988
    %v1990 = vpop.f32.mrb[0].mxu0
    %1991 = vmatprep.mubr.f32.mxu0 0.0
    %1992 = vmatmul.mubr.f32.gmra.mrb[0].mxu0 %v1624
    %v1993 = vpop.f32.mrb[0].mxu0
    %v1994 = vadd.f32 0.0, %v1993
    %v1995 = vpop.f32.mrb[0].mxu0
    %1996 = vmatprep.mubr.f32.mxu0 0.0
    %1997 = vmatmul.mubr.f32.gmra.mrb[0].mxu0 %v1627
    %v1998 = vpop.f32.mrb[0].mxu0
    %v1999 = vadd.f32 0.0, %v1998
    %v2000 = vpop.f32.mrb[0].mxu0
    %2001 = vmatprep.mubr.f32.mxu0 0.0
    %2002 = vmatmul.mubr.f32.gmra.mrb[0].mxu0 %v1630
    %v2003 = vpop.f32.mrb[0].mxu0
    %v2004 = vadd.f32 0.0, %v2003
    %v2005 = vpop.f32.mrb[0].mxu0
    %2006 = vmatprep.mubr.f32.mxu0 0.0
    %2007 = vmatmul.mubr.f32.gmra.mrb[0].mxu0 %v1633
    %v2008 = vpop.f32.mrb[0].mxu0
    %v2009 = vadd.f32 0.0, %v2008
    %v2010 = vpop.f32.mrb[0].mxu0
    %2011 = vmatprep.mubr.f32.mxu0 0.0
    %2012 = vmatmul.mubr.f32.gmra.mrb[0].mxu0 %v1636
    %v2013 = vpop.f32.mrb[0].mxu0
    %v2014 = vadd.f32 0.0, %v2013
    %v2015 = vpop.f32.mrb[0].mxu0
    %2016 = vmatprep.mubr.f32.mxu0 0.0
    %2017 = vmatmul.mubr.f32.gmra.mrb[0].mxu0 %v1639
    %v2018 = vpop.f32.mrb[0].mxu0
    %v2019 = vadd.f32 0.0, %v2018
    %v2020 = vpop.f32.mrb[0].mxu0
    %2021 = vmatprep.mubr.f32.mxu0 0.0
    %2022 = vmatmul.mubr.f32.gmra.mrb[0].mxu0 %v1642
    %v2023 = vpop.f32.mrb[0].mxu0
    %v2024 = vadd.f32 0.0, %v2023
    %v2025 = vpop.f32.mrb[0].mxu0
    %2026 = vmatprep.mubr.f32.mxu0 0.0
    %2027 = vmatmul.mubr.f32.gmra.mrb[0].mxu0 %v1645
    %v2028 = vpop.f32.mrb[0].mxu0
    %v2029 = vadd.f32 0.0, %v2028
    %v2030 = vpop.f32.mrb[0].mxu0
    %2031 = vdwg.mxu0
    %v2032 = vadd.f32 %v726, %v1714
    %v2033 = vadd.f32 %v727, %v1719
    %v2034 = vadd.f32 %v728, %v1724
    %v2035 = vadd.f32 %v729, %v1729
    %v2036 = vadd.f32 %v730, %v1734
    %v2037 = vadd.f32 %v731, %v1739
    %v2038 = vadd.f32 %v732, %v1744
    %v2039 = vadd.f32 %v733, %v1749
    %v2040 = vadd.f32 %v734, %v1754
    %v2041 = vadd.f32 %v735, %v1759
    %v2042 = vadd.f32 %v736, %v1764
    %v2043 = vadd.f32 %v737, %v1769
    %v2044 = vadd.f32 %v738, %v1774
    %v2045 = vadd.f32 %v739, %v1779
    %v2046 = vadd.f32 %v740, %v1784
    %v2047 = vadd.f32 %v741, %v1789
    %v2048 = vadd.f32 %v742, %v1794
    %v2049 = vadd.f32 %v743, %v1799
    %v2050 = vadd.f32 %v744, %v1804
    %v2051 = vadd.f32 %v745, %v1809
    %v2052 = vadd.f32 %v746, %v1814
    %v2053 = vadd.f32 %v747, %v1819
    %v2054 = vadd.f32 %v748, %v1824
    %v2055 = vadd.f32 %v749, %v1829
    %v2056 = vadd.f32 %v750, %v1834
    %v2057 = vadd.f32 %v751, %v1839
    %v2058 = vadd.f32 %v752, %v1844
    %v2059 = vadd.f32 %v753, %v1849
    %v2060 = vadd.f32 %v754, %v1854
    %v2061 = vadd.f32 %v755, %v1859
    %v2062 = vadd.f32 %v756, %v1864
    %v2063 = vadd.f32 %v757, %v1869
    %v2064 = vadd.f32 %v758, %v1874
    %v2065 = vadd.f32 %v759, %v1879
    %v2066 = vadd.f32 %v760, %v1884
    %v2067 = vadd.f32 %v761, %v1889
    %v2068 = vadd.f32 %v762, %v1894
    %v2069 = vadd.f32 %v763, %v1899
    %v2070 = vadd.f32 %v764, %v1904
    %v2071 = vadd.f32 %v765, %v1909
    %v2072 = vadd.f32 %v766, %v1914
    %v2073 = vadd.f32 %v767, %v1919
    %v2074 = vadd.f32 %v768, %v1924
    %v2075 = vadd.f32 %v769, %v1929
    %v2076 = vadd.f32 %v770, %v1934
    %v2077 = vadd.f32 %v771, %v1939
    %v2078 = vadd.f32 %v772, %v1944
    %v2079 = vadd.f32 %v773, %v1949
    %v2080 = vadd.f32 %v774, %v1954
    %v2081 = vadd.f32 %v775, %v1959
    %v2082 = vadd.f32 %v776, %v1964
    %v2083 = vadd.f32 %v777, %v1969
    %v2084 = vadd.f32 %v778, %v1974
    %v2085 = vadd.f32 %v779, %v1979
    %v2086 = vadd.f32 %v780, %v1984
    %v2087 = vadd.f32 %v781, %v1989
    %v2088 = vadd.f32 %v782, %v1994
    %v2089 = vadd.f32 %v783, %v1999
    %v2090 = vadd.f32 %v784, %v2004
    %v2091 = vadd.f32 %v785, %v2009
    %v2092 = vadd.f32 %v786, %v2014
    %v2093 = vadd.f32 %v787, %v2019
    %v2094 = vadd.f32 %v788, %v2024
    %v2095 = vadd.f32 %v789, %v2029
    %v2096 = vld [vmem:[%s8] sm:$0x1]
    %v2098 = vlaneseq
    %v2099 = vshrl.u32 %v2098, 7
    %v2100 = vsub.s32 0, %v2099
    %v2101 = vrot.slane %v2096, %v2100
    %v2103 = vadd.f32 %v2032, %v2101
    %v2104 = vadd.f32 %v2033, %v2101
    %v2105 = vadd.f32 %v2034, %v2101
    %v2106 = vadd.f32 %v2035, %v2101
    %v2107 = vadd.f32 %v2036, %v2101
    %v2108 = vadd.f32 %v2037, %v2101
    %v2109 = vadd.f32 %v2038, %v2101
    %v2110 = vadd.f32 %v2039, %v2101
    %v2111 = vadd.f32 %v2040, %v2101
    %v2112 = vadd.f32 %v2041, %v2101
    %v2113 = vadd.f32 %v2042, %v2101
    %v2114 = vadd.f32 %v2043, %v2101
    %v2115 = vadd.f32 %v2044, %v2101
    %v2116 = vadd.f32 %v2045, %v2101
    %v2117 = vadd.f32 %v2046, %v2101
    %v2118 = vadd.f32 %v2047, %v2101
    %v2119 = vadd.f32 %v2048, %v2101
    %v2120 = vadd.f32 %v2049, %v2101
    %v2121 = vadd.f32 %v2050, %v2101
    %v2122 = vadd.f32 %v2051, %v2101
    %v2123 = vadd.f32 %v2052, %v2101
    %v2124 = vadd.f32 %v2053, %v2101
    %v2125 = vadd.f32 %v2054, %v2101
    %v2126 = vadd.f32 %v2055, %v2101
    %v2127 = vadd.f32 %v2056, %v2101
    %v2128 = vadd.f32 %v2057, %v2101
    %v2129 = vadd.f32 %v2058, %v2101
    %v2130 = vadd.f32 %v2059, %v2101
    %v2131 = vadd.f32 %v2060, %v2101
    %v2132 = vadd.f32 %v2061, %v2101
    %v2133 = vadd.f32 %v2062, %v2101
    %v2134 = vadd.f32 %v2063, %v2101
    %v2135 = vadd.f32 %v2064, %v2101
    %v2136 = vadd.f32 %v2065, %v2101
    %v2137 = vadd.f32 %v2066, %v2101
    %v2138 = vadd.f32 %v2067, %v2101
    %v2139 = vadd.f32 %v2068, %v2101
    %v2140 = vadd.f32 %v2069, %v2101
    %v2141 = vadd.f32 %v2070, %v2101
    %v2142 = vadd.f32 %v2071, %v2101
    %v2143 = vadd.f32 %v2072, %v2101
    %v2144 = vadd.f32 %v2073, %v2101
    %v2145 = vadd.f32 %v2074, %v2101
    %v2146 = vadd.f32 %v2075, %v2101
    %v2147 = vadd.f32 %v2076, %v2101
    %v2148 = vadd.f32 %v2077, %v2101
    %v2149 = vadd.f32 %v2078, %v2101
    %v2150 = vadd.f32 %v2079, %v2101
    %v2151 = vadd.f32 %v2080, %v2101
    %v2152 = vadd.f32 %v2081, %v2101
    %v2153 = vadd.f32 %v2082, %v2101
    %v2154 = vadd.f32 %v2083, %v2101
    %v2155 = vadd.f32 %v2084, %v2101
    %v2156 = vadd.f32 %v2085, %v2101
    %v2157 = vadd.f32 %v2086, %v2101
    %v2158 = vadd.f32 %v2087, %v2101
    %v2159 = vadd.f32 %v2088, %v2101
    %v2160 = vadd.f32 %v2089, %v2101
    %v2161 = vadd.f32 %v2090, %v2101
    %v2162 = vadd.f32 %v2091, %v2101
    %v2163 = vadd.f32 %v2092, %v2101
    %v2164 = vadd.f32 %v2093, %v2101
    %v2165 = vadd.f32 %v2094, %v2101
    %v2166 = vadd.f32 %v2095, %v2101
    %v2167 = vmax.f32 %v2103, 0.0
    %v2168 = vmax.f32 %v2104, 0.0
    %v2169 = vmax.f32 %v2105, 0.0
    %v2170 = vmax.f32 %v2106, 0.0
    %v2171 = vmax.f32 %v2107, 0.0
    %v2172 = vmax.f32 %v2108, 0.0
    %v2173 = vmax.f32 %v2109, 0.0
    %v2174 = vmax.f32 %v2110, 0.0
    %v2175 = vmax.f32 %v2111, 0.0
    %v2176 = vmax.f32 %v2112, 0.0
    %v2177 = vmax.f32 %v2113, 0.0
    %v2178 = vmax.f32 %v2114, 0.0
    %v2179 = vmax.f32 %v2115, 0.0
    %v2180 = vmax.f32 %v2116, 0.0
    %v2181 = vmax.f32 %v2117, 0.0
    %v2182 = vmax.f32 %v2118, 0.0
    %v2183 = vmax.f32 %v2119, 0.0
    %v2184 = vmax.f32 %v2120, 0.0
    %v2185 = vmax.f32 %v2121, 0.0
    %v2186 = vmax.f32 %v2122, 0.0
    %v2187 = vmax.f32 %v2123, 0.0
    %v2188 = vmax.f32 %v2124, 0.0
    %v2189 = vmax.f32 %v2125, 0.0
    %v2190 = vmax.f32 %v2126, 0.0
    %v2191 = vmax.f32 %v2127, 0.0
    %v2192 = vmax.f32 %v2128, 0.0
    %v2193 = vmax.f32 %v2129, 0.0
    %v2194 = vmax.f32 %v2130, 0.0
    %v2195 = vmax.f32 %v2131, 0.0
    %v2196 = vmax.f32 %v2132, 0.0
    %v2197 = vmax.f32 %v2133, 0.0
    %v2198 = vmax.f32 %v2134, 0.0
    %v2199 = vmax.f32 %v2135, 0.0
    %v2200 = vmax.f32 %v2136, 0.0
    %v2201 = vmax.f32 %v2137, 0.0
    %v2202 = vmax.f32 %v2138, 0.0
    %v2203 = vmax.f32 %v2139, 0.0
    %v2204 = vmax.f32 %v2140, 0.0
    %v2205 = vmax.f32 %v2141, 0.0
    %v2206 = vmax.f32 %v2142, 0.0
    %v2207 = vmax.f32 %v2143, 0.0
    %v2208 = vmax.f32 %v2144, 0.0
    %v2209 = vmax.f32 %v2145, 0.0
    %v2210 = vmax.f32 %v2146, 0.0
    %v2211 = vmax.f32 %v2147, 0.0
    %v2212 = vmax.f32 %v2148, 0.0
    %v2213 = vmax.f32 %v2149, 0.0
    %v2214 = vmax.f32 %v2150, 0.0
    %v2215 = vmax.f32 %v2151, 0.0
    %v2216 = vmax.f32 %v2152, 0.0
    %v2217 = vmax.f32 %v2153, 0.0
    %v2218 = vmax.f32 %v2154, 0.0
    %v2219 = vmax.f32 %v2155, 0.0
    %v2220 = vmax.f32 %v2156, 0.0
    %v2221 = vmax.f32 %v2157, 0.0
    %v2222 = vmax.f32 %v2158, 0.0
    %v2223 = vmax.f32 %v2159, 0.0
    %v2224 = vmax.f32 %v2160, 0.0
    %v2225 = vmax.f32 %v2161, 0.0
    %v2226 = vmax.f32 %v2162, 0.0
    %v2227 = vmax.f32 %v2163, 0.0
    %v2228 = vmax.f32 %v2164, 0.0
    %v2229 = vmax.f32 %v2165, 0.0
    %v2230 = vmax.f32 %v2166, 0.0
    %v2231 = vld [vmem:[%s9] sm:$0xff]
    %v2232 = vld [vmem:[%s9 + $0x8] sm:$0xff]
    %v2233 = vld [vmem:[%s9 + $0x10] sm:$0xff]
    %v2234 = vld [vmem:[%s9 + $0x18] sm:$0xff]
    %v2235 = vld [vmem:[%s9 + $0x20] sm:$0xff]
    %v2236 = vld [vmem:[%s9 + $0x28] sm:$0xff]
    %v2237 = vld [vmem:[%s9 + $0x30] sm:$0xff]
    %v2238 = vld [vmem:[%s9 + $0x38] sm:$0xff]
    %v2239 = vld [vmem:[%s10] sm:$0x1]
    %v2241 = vlaneseq
    %v2242 = vshrl.u32 %v2241, 7
    %v2243 = vsub.s32 0, %v2242
    %v2244 = vrot.slane %v2239, %v2243
    %v2247 = vsel %vm805, %v2167, 0
    %v2250 = vsel %vm805, %v2168, 0
    %v2253 = vsel %vm805, %v2169, 0
    %v2256 = vsel %vm805, %v2170, 0
    %v2259 = vsel %vm805, %v2171, 0
    %v2262 = vsel %vm805, %v2172, 0
    %v2265 = vsel %vm805, %v2173, 0
    %v2268 = vsel %vm805, %v2174, 0
    %v2271 = vsel %vm805, %v2175, 0
    %v2274 = vsel %vm805, %v2176, 0
    %v2277 = vsel %vm805, %v2177, 0
    %v2280 = vsel %vm805, %v2178, 0
    %v2283 = vsel %vm805, %v2179, 0
    %v2286 = vsel %vm805, %v2180, 0
    %v2289 = vsel %vm805, %v2181, 0
    %v2292 = vsel %vm805, %v2182, 0
    %v2295 = vsel %vm805, %v2183, 0
    %v2298 = vsel %vm805, %v2184, 0
    %v2301 = vsel %vm805, %v2185, 0
    %v2304 = vsel %vm805, %v2186, 0
    %v2307 = vsel %vm805, %v2187, 0
    %v2310 = vsel %vm805, %v2188, 0
    %v2313 = vsel %vm805, %v2189, 0
    %v2316 = vsel %vm805, %v2190, 0
    %v2319 = vsel %vm805, %v2191, 0
    %v2322 = vsel %vm805, %v2192, 0
    %v2325 = vsel %vm805, %v2193, 0
    %v2328 = vsel %vm805, %v2194, 0
    %v2331 = vsel %vm805, %v2195, 0
    %v2334 = vsel %vm805, %v2196, 0
    %v2337 = vsel %vm805, %v2197, 0
    %v2340 = vsel %vm805, %v2198, 0
    %v2343 = vsel %vm805, %v2199, 0
    %v2346 = vsel %vm805, %v2200, 0
    %v2349 = vsel %vm805, %v2201, 0
    %v2352 = vsel %vm805, %v2202, 0
    %v2355 = vsel %vm805, %v2203, 0
    %v2358 = vsel %vm805, %v2204, 0
    %v2361 = vsel %vm805, %v2205, 0
    %v2364 = vsel %vm805, %v2206, 0
    %v2367 = vsel %vm805, %v2207, 0
    %v2370 = vsel %vm805, %v2208, 0
    %v2373 = vsel %vm805, %v2209, 0
    %v2376 = vsel %vm805, %v2210, 0
    %v2379 = vsel %vm805, %v2211, 0
    %v2382 = vsel %vm805, %v2212, 0
    %v2385 = vsel %vm805, %v2213, 0
    %v2388 = vsel %vm805, %v2214, 0
    %v2391 = vsel %vm805, %v2215, 0
    %v2394 = vsel %vm805, %v2216, 0
    %v2397 = vsel %vm805, %v2217, 0
    %v2400 = vsel %vm805, %v2218, 0
    %v2403 = vsel %vm805, %v2219, 0
    %v2406 = vsel %vm805, %v2220, 0
    %v2409 = vsel %vm805, %v2221, 0
    %v2412 = vsel %vm805, %v2222, 0
    %v2415 = vsel %vm805, %v2223, 0
    %v2418 = vsel %vm805, %v2224, 0
    %v2421 = vsel %vm805, %v2225, 0
    %v2424 = vsel %vm805, %v2226, 0
    %v2427 = vsel %vm805, %v2227, 0
    %v2430 = vsel %vm805, %v2228, 0
    %v2433 = vsel %vm805, %v2229, 0
    %v2436 = vsel %vm805, %v2230, 0
    %2438 = vmatprep.subr.mxu0 0.0
    %2439 = vmatpush1.msra.mxu0 %v2231
    %2440 = vmatprep.subr.mxu0 0.0
    %2441 = vmatpush1.msra.mxu0 %v2232
    %2442 = vmatprep.subr.mxu0 0.0
    %2443 = vmatpush1.msra.mxu0 %v2233
    %2444 = vmatprep.subr.mxu0 0.0
    %2445 = vmatpush1.msra.mxu0 %v2234
    %2446 = vmatprep.subr.mxu0 0.0
    %2447 = vmatpush1.msra.mxu0 %v2235
    %2448 = vmatprep.subr.mxu0 0.0
    %2449 = vmatpush1.msra.mxu0 %v2236
    %2450 = vmatprep.subr.mxu0 0.0
    %2451 = vmatpush1.msra.mxu0 %v2237
    %2452 = vmatprep.subr.mxu0 0.0
    %2453 = vmatpush1.msra.mxu0 %v2238
    %2454 = vmatprep.subr.mxu0 0.0
    %2455 = vmatpush1.msra.mxu0 0.0
    %2456 = vmatprep.subr.mxu0 0.0
    %2457 = vmatpush1.msra.mxu0 0.0
    %2458 = vmatprep.subr.mxu0 0.0
    %2459 = vmatpush1.msra.mxu0 0.0
    %2460 = vmatprep.subr.mxu0 0.0
    %2461 = vmatpush1.msra.mxu0 0.0
    %2462 = vmatprep.subr.mxu0 0.0
    %2463 = vmatpush1.msra.mxu0 0.0
    %2464 = vmatprep.subr.mxu0 0.0
    %2465 = vmatpush1.msra.mxu0 0.0
    %2466 = vmatprep.subr.mxu0 0.0
    %2467 = vmatpush1.msra.mxu0 0.0
    %2468 = vmatprep.subr.mxu0 0.0
    %2469 = vmatpush1.msra.mxu0 0.0
    %2470 = vmatprep.subr.mxu0 0.0
    %2471 = vmatpush1.msra.mxu0 0.0
    %2472 = vmatprep.subr.mxu0 0.0
    %2473 = vmatpush1.msra.mxu0 0.0
    %2474 = vmatprep.subr.mxu0 0.0
    %2475 = vmatpush1.msra.mxu0 0.0
    %2476 = vmatprep.subr.mxu0 0.0
    %2477 = vmatpush1.msra.mxu0 0.0
    %2478 = vmatprep.subr.mxu0 0.0
    %2479 = vmatpush1.msra.mxu0 0.0
    %2480 = vmatprep.subr.mxu0 0.0
    %2481 = vmatpush1.msra.mxu0 0.0
    %2482 = vmatprep.subr.mxu0 0.0
    %2483 = vmatpush1.msra.mxu0 0.0
    %2484 = vmatprep.subr.mxu0 0.0
    %2485 = vmatpush1.msra.mxu0 0.0
    %2486 = vmatprep.subr.mxu0 0.0
    %2487 = vmatpush1.msra.mxu0 0.0
    %2488 = vmatprep.subr.mxu0 0.0
    %2489 = vmatpush1.msra.mxu0 0.0
    %2490 = vmatprep.subr.mxu0 0.0
    %2491 = vmatpush1.msra.mxu0 0.0
    %2492 = vmatprep.subr.mxu0 0.0
    %2493 = vmatpush1.msra.mxu0 0.0
    %2494 = vmatprep.subr.mxu0 0.0
    %2495 = vmatpush1.msra.mxu0 0.0
    %2496 = vmatprep.subr.mxu0 0.0
    %2497 = vmatpush1.msra.mxu0 0.0
    %2498 = vmatprep.subr.mxu0 0.0
    %2499 = vmatpush1.msra.mxu0 0.0
    %2500 = vmatprep.subr.mxu0 0.0
    %2501 = vmatpush1.msra.mxu0 0.0
    %2502 = vmatprep.mubr.f32.mxu0 0.0
    %2503 = vmatmul.mubr.f32.gmra.mrb[0].mxu0 %v2247
    %v2504 = vpop.f32.mrb[0].mxu0
    %v2505 = vadd.f32 %v2244, %v2504
    %v2506 = vpop.f32.mrb[0].mxu0
    %2507 = vmatprep.mubr.f32.mxu0 0.0
    %2508 = vmatmul.mubr.f32.gmra.mrb[0].mxu0 %v2250
    %v2509 = vpop.f32.mrb[0].mxu0
    %v2510 = vadd.f32 %v2244, %v2509
    %v2511 = vpop.f32.mrb[0].mxu0
    %2512 = vmatprep.mubr.f32.mxu0 0.0
    %2513 = vmatmul.mubr.f32.gmra.mrb[0].mxu0 %v2253
    %v2514 = vpop.f32.mrb[0].mxu0
    %v2515 = vadd.f32 %v2244, %v2514
    %v2516 = vpop.f32.mrb[0].mxu0
    %2517 = vmatprep.mubr.f32.mxu0 0.0
    %2518 = vmatmul.mubr.f32.gmra.mrb[0].mxu0 %v2256
    %v2519 = vpop.f32.mrb[0].mxu0
    %v2520 = vadd.f32 %v2244, %v2519
    %v2521 = vpop.f32.mrb[0].mxu0
    %2522 = vmatprep.mubr.f32.mxu0 0.0
    %2523 = vmatmul.mubr.f32.gmra.mrb[0].mxu0 %v2259
    %v2524 = vpop.f32.mrb[0].mxu0
    %v2525 = vadd.f32 %v2244, %v2524
    %v2526 = vpop.f32.mrb[0].mxu0
    %2527 = vmatprep.mubr.f32.mxu0 0.0
    %2528 = vmatmul.mubr.f32.gmra.mrb[0].mxu0 %v2262
    %v2529 = vpop.f32.mrb[0].mxu0
    %v2530 = vadd.f32 %v2244, %v2529
    %v2531 = vpop.f32.mrb[0].mxu0
    %2532 = vmatprep.mubr.f32.mxu0 0.0
    %2533 = vmatmul.mubr.f32.gmra.mrb[0].mxu0 %v2265
    %v2534 = vpop.f32.mrb[0].mxu0
    %v2535 = vadd.f32 %v2244, %v2534
    %v2536 = vpop.f32.mrb[0].mxu0
    %2537 = vmatprep.mubr.f32.mxu0 0.0
    %2538 = vmatmul.mubr.f32.gmra.mrb[0].mxu0 %v2268
    %v2539 = vpop.f32.mrb[0].mxu0
    %v2540 = vadd.f32 %v2244, %v2539
    %v2541 = vpop.f32.mrb[0].mxu0
    %2542 = vmatprep.mubr.f32.mxu0 0.0
    %2543 = vmatmul.mubr.f32.gmra.mrb[0].mxu0 %v2271
    %v2544 = vpop.f32.mrb[0].mxu0
    %v2545 = vadd.f32 %v2244, %v2544
    %v2546 = vpop.f32.mrb[0].mxu0
    %2547 = vmatprep.mubr.f32.mxu0 0.0
    %2548 = vmatmul.mubr.f32.gmra.mrb[0].mxu0 %v2274
    %v2549 = vpop.f32.mrb[0].mxu0
    %v2550 = vadd.f32 %v2244, %v2549
    %v2551 = vpop.f32.mrb[0].mxu0
    %2552 = vmatprep.mubr.f32.mxu0 0.0
    %2553 = vmatmul.mubr.f32.gmra.mrb[0].mxu0 %v2277
    %v2554 = vpop.f32.mrb[0].mxu0
    %v2555 = vadd.f32 %v2244, %v2554
    %v2556 = vpop.f32.mrb[0].mxu0
    %2557 = vmatprep.mubr.f32.mxu0 0.0
    %2558 = vmatmul.mubr.f32.gmra.mrb[0].mxu0 %v2280
    %v2559 = vpop.f32.mrb[0].mxu0
    %v2560 = vadd.f32 %v2244, %v2559
    %v2561 = vpop.f32.mrb[0].mxu0
    %2562 = vmatprep.mubr.f32.mxu0 0.0
    %2563 = vmatmul.mubr.f32.gmra.mrb[0].mxu0 %v2283
    %v2564 = vpop.f32.mrb[0].mxu0
    %v2565 = vadd.f32 %v2244, %v2564
    %v2566 = vpop.f32.mrb[0].mxu0
    %2567 = vmatprep.mubr.f32.mxu0 0.0
    %2568 = vmatmul.mubr.f32.gmra.mrb[0].mxu0 %v2286
    %v2569 = vpop.f32.mrb[0].mxu0
    %v2570 = vadd.f32 %v2244, %v2569
    %v2571 = vpop.f32.mrb[0].mxu0
    %2572 = vmatprep.mubr.f32.mxu0 0.0
    %2573 = vmatmul.mubr.f32.gmra.mrb[0].mxu0 %v2289
    %v2574 = vpop.f32.mrb[0].mxu0
    %v2575 = vadd.f32 %v2244, %v2574
    %v2576 = vpop.f32.mrb[0].mxu0
    %2577 = vmatprep.mubr.f32.mxu0 0.0
    %2578 = vmatmul.mubr.f32.gmra.mrb[0].mxu0 %v2292
    %v2579 = vpop.f32.mrb[0].mxu0
    %v2580 = vadd.f32 %v2244, %v2579
    %v2581 = vpop.f32.mrb[0].mxu0
    %2582 = vmatprep.mubr.f32.mxu0 0.0
    %2583 = vmatmul.mubr.f32.gmra.mrb[0].mxu0 %v2295
    %v2584 = vpop.f32.mrb[0].mxu0
    %v2585 = vadd.f32 %v2244, %v2584
    %v2586 = vpop.f32.mrb[0].mxu0
    %2587 = vmatprep.mubr.f32.mxu0 0.0
    %2588 = vmatmul.mubr.f32.gmra.mrb[0].mxu0 %v2298
    %v2589 = vpop.f32.mrb[0].mxu0
    %v2590 = vadd.f32 %v2244, %v2589
    %v2591 = vpop.f32.mrb[0].mxu0
    %2592 = vmatprep.mubr.f32.mxu0 0.0
    %2593 = vmatmul.mubr.f32.gmra.mrb[0].mxu0 %v2301
    %v2594 = vpop.f32.mrb[0].mxu0
    %v2595 = vadd.f32 %v2244, %v2594
    %v2596 = vpop.f32.mrb[0].mxu0
    %2597 = vmatprep.mubr.f32.mxu0 0.0
    %2598 = vmatmul.mubr.f32.gmra.mrb[0].mxu0 %v2304
    %v2599 = vpop.f32.mrb[0].mxu0
    %v2600 = vadd.f32 %v2244, %v2599
    %v2601 = vpop.f32.mrb[0].mxu0
    %2602 = vmatprep.mubr.f32.mxu0 0.0
    %2603 = vmatmul.mubr.f32.gmra.mrb[0].mxu0 %v2307
    %v2604 = vpop.f32.mrb[0].mxu0
    %v2605 = vadd.f32 %v2244, %v2604
    %v2606 = vpop.f32.mrb[0].mxu0
    %2607 = vmatprep.mubr.f32.mxu0 0.0
    %2608 = vmatmul.mubr.f32.gmra.mrb[0].mxu0 %v2310
    %v2609 = vpop.f32.mrb[0].mxu0
    %v2610 = vadd.f32 %v2244, %v2609
    %v2611 = vpop.f32.mrb[0].mxu0
    %2612 = vmatprep.mubr.f32.mxu0 0.0
    %2613 = vmatmul.mubr.f32.gmra.mrb[0].mxu0 %v2313
    %v2614 = vpop.f32.mrb[0].mxu0
    %v2615 = vadd.f32 %v2244, %v2614
    %v2616 = vpop.f32.mrb[0].mxu0
    %2617 = vmatprep.mubr.f32.mxu0 0.0
    %2618 = vmatmul.mubr.f32.gmra.mrb[0].mxu0 %v2316
    %v2619 = vpop.f32.mrb[0].mxu0
    %v2620 = vadd.f32 %v2244, %v2619
    %v2621 = vpop.f32.mrb[0].mxu0
    %2622 = vmatprep.mubr.f32.mxu0 0.0
    %2623 = vmatmul.mubr.f32.gmra.mrb[0].mxu0 %v2319
    %v2624 = vpop.f32.mrb[0].mxu0
    %v2625 = vadd.f32 %v2244, %v2624
    %v2626 = vpop.f32.mrb[0].mxu0
    %2627 = vmatprep.mubr.f32.mxu0 0.0
    %2628 = vmatmul.mubr.f32.gmra.mrb[0].mxu0 %v2322
    %v2629 = vpop.f32.mrb[0].mxu0
    %v2630 = vadd.f32 %v2244, %v2629
    %v2631 = vpop.f32.mrb[0].mxu0
    %2632 = vmatprep.mubr.f32.mxu0 0.0
    %2633 = vmatmul.mubr.f32.gmra.mrb[0].mxu0 %v2325
    %v2634 = vpop.f32.mrb[0].mxu0
    %v2635 = vadd.f32 %v2244, %v2634
    %v2636 = vpop.f32.mrb[0].mxu0
    %2637 = vmatprep.mubr.f32.mxu0 0.0
    %2638 = vmatmul.mubr.f32.gmra.mrb[0].mxu0 %v2328
    %v2639 = vpop.f32.mrb[0].mxu0
    %v2640 = vadd.f32 %v2244, %v2639
    %v2641 = vpop.f32.mrb[0].mxu0
    %2642 = vmatprep.mubr.f32.mxu0 0.0
    %2643 = vmatmul.mubr.f32.gmra.mrb[0].mxu0 %v2331
    %v2644 = vpop.f32.mrb[0].mxu0
    %v2645 = vadd.f32 %v2244, %v2644
    %v2646 = vpop.f32.mrb[0].mxu0
    %2647 = vmatprep.mubr.f32.mxu0 0.0
    %2648 = vmatmul.mubr.f32.gmra.mrb[0].mxu0 %v2334
    %v2649 = vpop.f32.mrb[0].mxu0
    %v2650 = vadd.f32 %v2244, %v2649
    %v2651 = vpop.f32.mrb[0].mxu0
    %2652 = vmatprep.mubr.f32.mxu0 0.0
    %2653 = vmatmul.mubr.f32.gmra.mrb[0].mxu0 %v2337
    %v2654 = vpop.f32.mrb[0].mxu0
    %v2655 = vadd.f32 %v2244, %v2654
    %v2656 = vpop.f32.mrb[0].mxu0
    %2657 = vmatprep.mubr.f32.mxu0 0.0
    %2658 = vmatmul.mubr.f32.gmra.mrb[0].mxu0 %v2340
    %v2659 = vpop.f32.mrb[0].mxu0
    %v2660 = vadd.f32 %v2244, %v2659
    %v2661 = vpop.f32.mrb[0].mxu0
    %2662 = vmatprep.mubr.f32.mxu0 0.0
    %2663 = vmatmul.mubr.f32.gmra.mrb[0].mxu0 %v2343
    %v2664 = vpop.f32.mrb[0].mxu0
    %v2665 = vadd.f32 %v2244, %v2664
    %v2666 = vpop.f32.mrb[0].mxu0
    %2667 = vmatprep.mubr.f32.mxu0 0.0
    %2668 = vmatmul.mubr.f32.gmra.mrb[0].mxu0 %v2346
    %v2669 = vpop.f32.mrb[0].mxu0
    %v2670 = vadd.f32 %v2244, %v2669
    %v2671 = vpop.f32.mrb[0].mxu0
    %2672 = vmatprep.mubr.f32.mxu0 0.0
    %2673 = vmatmul.mubr.f32.gmra.mrb[0].mxu0 %v2349
    %v2674 = vpop.f32.mrb[0].mxu0
    %v2675 = vadd.f32 %v2244, %v2674
    %v2676 = vpop.f32.mrb[0].mxu0
    %2677 = vmatprep.mubr.f32.mxu0 0.0
    %2678 = vmatmul.mubr.f32.gmra.mrb[0].mxu0 %v2352
    %v2679 = vpop.f32.mrb[0].mxu0
    %v2680 = vadd.f32 %v2244, %v2679
    %v2681 = vpop.f32.mrb[0].mxu0
    %2682 = vmatprep.mubr.f32.mxu0 0.0
    %2683 = vmatmul.mubr.f32.gmra.mrb[0].mxu0 %v2355
    %v2684 = vpop.f32.mrb[0].mxu0
    %v2685 = vadd.f32 %v2244, %v2684
    %v2686 = vpop.f32.mrb[0].mxu0
    %2687 = vmatprep.mubr.f32.mxu0 0.0
    %2688 = vmatmul.mubr.f32.gmra.mrb[0].mxu0 %v2358
    %v2689 = vpop.f32.mrb[0].mxu0
    %v2690 = vadd.f32 %v2244, %v2689
    %v2691 = vpop.f32.mrb[0].mxu0
    %2692 = vmatprep.mubr.f32.mxu0 0.0
    %2693 = vmatmul.mubr.f32.gmra.mrb[0].mxu0 %v2361
    %v2694 = vpop.f32.mrb[0].mxu0
    %v2695 = vadd.f32 %v2244, %v2694
    %v2696 = vpop.f32.mrb[0].mxu0
    %2697 = vmatprep.mubr.f32.mxu0 0.0
    %2698 = vmatmul.mubr.f32.gmra.mrb[0].mxu0 %v2364
    %v2699 = vpop.f32.mrb[0].mxu0
    %v2700 = vadd.f32 %v2244, %v2699
    %v2701 = vpop.f32.mrb[0].mxu0
    %2702 = vmatprep.mubr.f32.mxu0 0.0
    %2703 = vmatmul.mubr.f32.gmra.mrb[0].mxu0 %v2367
    %v2704 = vpop.f32.mrb[0].mxu0
    %v2705 = vadd.f32 %v2244, %v2704
    %v2706 = vpop.f32.mrb[0].mxu0
    %2707 = vmatprep.mubr.f32.mxu0 0.0
    %2708 = vmatmul.mubr.f32.gmra.mrb[0].mxu0 %v2370
    %v2709 = vpop.f32.mrb[0].mxu0
    %v2710 = vadd.f32 %v2244, %v2709
    %v2711 = vpop.f32.mrb[0].mxu0
    %2712 = vmatprep.mubr.f32.mxu0 0.0
    %2713 = vmatmul.mubr.f32.gmra.mrb[0].mxu0 %v2373
    %v2714 = vpop.f32.mrb[0].mxu0
    %v2715 = vadd.f32 %v2244, %v2714
    %v2716 = vpop.f32.mrb[0].mxu0
    %2717 = vmatprep.mubr.f32.mxu0 0.0
    %2718 = vmatmul.mubr.f32.gmra.mrb[0].mxu0 %v2376
    %v2719 = vpop.f32.mrb[0].mxu0
    %v2720 = vadd.f32 %v2244, %v2719
    %v2721 = vpop.f32.mrb[0].mxu0
    %2722 = vmatprep.mubr.f32.mxu0 0.0
    %2723 = vmatmul.mubr.f32.gmra.mrb[0].mxu0 %v2379
    %v2724 = vpop.f32.mrb[0].mxu0
    %v2725 = vadd.f32 %v2244, %v2724
    %v2726 = vpop.f32.mrb[0].mxu0
    %2727 = vmatprep.mubr.f32.mxu0 0.0
    %2728 = vmatmul.mubr.f32.gmra.mrb[0].mxu0 %v2382
    %v2729 = vpop.f32.mrb[0].mxu0
    %v2730 = vadd.f32 %v2244, %v2729
    %v2731 = vpop.f32.mrb[0].mxu0
    %2732 = vmatprep.mubr.f32.mxu0 0.0
    %2733 = vmatmul.mubr.f32.gmra.mrb[0].mxu0 %v2385
    %v2734 = vpop.f32.mrb[0].mxu0
    %v2735 = vadd.f32 %v2244, %v2734
    %v2736 = vpop.f32.mrb[0].mxu0
    %2737 = vmatprep.mubr.f32.mxu0 0.0
    %2738 = vmatmul.mubr.f32.gmra.mrb[0].mxu0 %v2388
    %v2739 = vpop.f32.mrb[0].mxu0
    %v2740 = vadd.f32 %v2244, %v2739
    %v2741 = vpop.f32.mrb[0].mxu0
    %2742 = vmatprep.mubr.f32.mxu0 0.0
    %2743 = vmatmul.mubr.f32.gmra.mrb[0].mxu0 %v2391
    %v2744 = vpop.f32.mrb[0].mxu0
    %v2745 = vadd.f32 %v2244, %v2744
    %v2746 = vpop.f32.mrb[0].mxu0
    %2747 = vmatprep.mubr.f32.mxu0 0.0
    %2748 = vmatmul.mubr.f32.gmra.mrb[0].mxu0 %v2394
    %v2749 = vpop.f32.mrb[0].mxu0
    %v2750 = vadd.f32 %v2244, %v2749
    %v2751 = vpop.f32.mrb[0].mxu0
    %2752 = vmatprep.mubr.f32.mxu0 0.0
    %2753 = vmatmul.mubr.f32.gmra.mrb[0].mxu0 %v2397
    %v2754 = vpop.f32.mrb[0].mxu0
    %v2755 = vadd.f32 %v2244, %v2754
    %v2756 = vpop.f32.mrb[0].mxu0
    %2757 = vmatprep.mubr.f32.mxu0 0.0
    %2758 = vmatmul.mubr.f32.gmra.mrb[0].mxu0 %v2400
    %v2759 = vpop.f32.mrb[0].mxu0
    %v2760 = vadd.f32 %v2244, %v2759
    %v2761 = vpop.f32.mrb[0].mxu0
    %2762 = vmatprep.mubr.f32.mxu0 0.0
    %2763 = vmatmul.mubr.f32.gmra.mrb[0].mxu0 %v2403
    %v2764 = vpop.f32.mrb[0].mxu0
    %v2765 = vadd.f32 %v2244, %v2764
    %v2766 = vpop.f32.mrb[0].mxu0
    %2767 = vmatprep.mubr.f32.mxu0 0.0
    %2768 = vmatmul.mubr.f32.gmra.mrb[0].mxu0 %v2406
    %v2769 = vpop.f32.mrb[0].mxu0
    %v2770 = vadd.f32 %v2244, %v2769
    %v2771 = vpop.f32.mrb[0].mxu0
    %2772 = vmatprep.mubr.f32.mxu0 0.0
    %2773 = vmatmul.mubr.f32.gmra.mrb[0].mxu0 %v2409
    %v2774 = vpop.f32.mrb[0].mxu0
    %v2775 = vadd.f32 %v2244, %v2774
    %v2776 = vpop.f32.mrb[0].mxu0
    %2777 = vmatprep.mubr.f32.mxu0 0.0
    %2778 = vmatmul.mubr.f32.gmra.mrb[0].mxu0 %v2412
    %v2779 = vpop.f32.mrb[0].mxu0
    %v2780 = vadd.f32 %v2244, %v2779
    %v2781 = vpop.f32.mrb[0].mxu0
    %2782 = vmatprep.mubr.f32.mxu0 0.0
    %2783 = vmatmul.mubr.f32.gmra.mrb[0].mxu0 %v2415
    %v2784 = vpop.f32.mrb[0].mxu0
    %v2785 = vadd.f32 %v2244, %v2784
    %v2786 = vpop.f32.mrb[0].mxu0
    %2787 = vmatprep.mubr.f32.mxu0 0.0
    %2788 = vmatmul.mubr.f32.gmra.mrb[0].mxu0 %v2418
    %v2789 = vpop.f32.mrb[0].mxu0
    %v2790 = vadd.f32 %v2244, %v2789
    %v2791 = vpop.f32.mrb[0].mxu0
    %2792 = vmatprep.mubr.f32.mxu0 0.0
    %2793 = vmatmul.mubr.f32.gmra.mrb[0].mxu0 %v2421
    %v2794 = vpop.f32.mrb[0].mxu0
    %v2795 = vadd.f32 %v2244, %v2794
    %v2796 = vpop.f32.mrb[0].mxu0
    %2797 = vmatprep.mubr.f32.mxu0 0.0
    %2798 = vmatmul.mubr.f32.gmra.mrb[0].mxu0 %v2424
    %v2799 = vpop.f32.mrb[0].mxu0
    %v2800 = vadd.f32 %v2244, %v2799
    %v2801 = vpop.f32.mrb[0].mxu0
    %2802 = vmatprep.mubr.f32.mxu0 0.0
    %2803 = vmatmul.mubr.f32.gmra.mrb[0].mxu0 %v2427
    %v2804 = vpop.f32.mrb[0].mxu0
    %v2805 = vadd.f32 %v2244, %v2804
    %v2806 = vpop.f32.mrb[0].mxu0
    %2807 = vmatprep.mubr.f32.mxu0 0.0
    %2808 = vmatmul.mubr.f32.gmra.mrb[0].mxu0 %v2430
    %v2809 = vpop.f32.mrb[0].mxu0
    %v2810 = vadd.f32 %v2244, %v2809
    %v2811 = vpop.f32.mrb[0].mxu0
    %2812 = vmatprep.mubr.f32.mxu0 0.0
    %2813 = vmatmul.mubr.f32.gmra.mrb[0].mxu0 %v2433
    %v2814 = vpop.f32.mrb[0].mxu0
    %v2815 = vadd.f32 %v2244, %v2814
    %v2816 = vpop.f32.mrb[0].mxu0
    %2817 = vmatprep.mubr.f32.mxu0 0.0
    %2818 = vmatmul.mubr.f32.gmra.mrb[0].mxu0 %v2436
    %v2819 = vpop.f32.mrb[0].mxu0
    %v2820 = vadd.f32 %v2244, %v2819
    %v2821 = vpop.f32.mrb[0].mxu0
    %2822 = vdwg.mxu0
    %v2823 = vmax.f32 %v2505, 0.0
    %v2824 = vmax.f32 %v2510, 0.0
    %v2825 = vmax.f32 %v2515, 0.0
    %v2826 = vmax.f32 %v2520, 0.0
    %v2827 = vmax.f32 %v2525, 0.0
    %v2828 = vmax.f32 %v2530, 0.0
    %v2829 = vmax.f32 %v2535, 0.0
    %v2830 = vmax.f32 %v2540, 0.0
    %v2831 = vmax.f32 %v2545, 0.0
    %v2832 = vmax.f32 %v2550, 0.0
    %v2833 = vmax.f32 %v2555, 0.0
    %v2834 = vmax.f32 %v2560, 0.0
    %v2835 = vmax.f32 %v2565, 0.0
    %v2836 = vmax.f32 %v2570, 0.0
    %v2837 = vmax.f32 %v2575, 0.0
    %v2838 = vmax.f32 %v2580, 0.0
    %v2839 = vmax.f32 %v2585, 0.0
    %v2840 = vmax.f32 %v2590, 0.0
    %v2841 = vmax.f32 %v2595, 0.0
    %v2842 = vmax.f32 %v2600, 0.0
    %v2843 = vmax.f32 %v2605, 0.0
    %v2844 = vmax.f32 %v2610, 0.0
    %v2845 = vmax.f32 %v2615, 0.0
    %v2846 = vmax.f32 %v2620, 0.0
    %v2847 = vmax.f32 %v2625, 0.0
    %v2848 = vmax.f32 %v2630, 0.0
    %v2849 = vmax.f32 %v2635, 0.0
    %v2850 = vmax.f32 %v2640, 0.0
    %v2851 = vmax.f32 %v2645, 0.0
    %v2852 = vmax.f32 %v2650, 0.0
    %v2853 = vmax.f32 %v2655, 0.0
    %v2854 = vmax.f32 %v2660, 0.0
    %v2855 = vmax.f32 %v2665, 0.0
    %v2856 = vmax.f32 %v2670, 0.0
    %v2857 = vmax.f32 %v2675, 0.0
    %v2858 = vmax.f32 %v2680, 0.0
    %v2859 = vmax.f32 %v2685, 0.0
    %v2860 = vmax.f32 %v2690, 0.0
    %v2861 = vmax.f32 %v2695, 0.0
    %v2862 = vmax.f32 %v2700, 0.0
    %v2863 = vmax.f32 %v2705, 0.0
    %v2864 = vmax.f32 %v2710, 0.0
    %v2865 = vmax.f32 %v2715, 0.0
    %v2866 = vmax.f32 %v2720, 0.0
    %v2867 = vmax.f32 %v2725, 0.0
    %v2868 = vmax.f32 %v2730, 0.0
    %v2869 = vmax.f32 %v2735, 0.0
    %v2870 = vmax.f32 %v2740, 0.0
    %v2871 = vmax.f32 %v2745, 0.0
    %v2872 = vmax.f32 %v2750, 0.0
    %v2873 = vmax.f32 %v2755, 0.0
    %v2874 = vmax.f32 %v2760, 0.0
    %v2875 = vmax.f32 %v2765, 0.0
    %v2876 = vmax.f32 %v2770, 0.0
    %v2877 = vmax.f32 %v2775, 0.0
    %v2878 = vmax.f32 %v2780, 0.0
    %v2879 = vmax.f32 %v2785, 0.0
    %v2880 = vmax.f32 %v2790, 0.0
    %v2881 = vmax.f32 %v2795, 0.0
    %v2882 = vmax.f32 %v2800, 0.0
    %v2883 = vmax.f32 %v2805, 0.0
    %v2884 = vmax.f32 %v2810, 0.0
    %v2885 = vmax.f32 %v2815, 0.0
    %v2886 = vmax.f32 %v2820, 0.0
    %v2887 = vld [vmem:[%s1] sm:$0xff]
    %v2889 = vcombine.high %v2887, %v2887
    %v2891 = vunpack.c.l.s4 1983009808
    %v2892 = vunpack.c.0.s8 %v2891
    %v2893 = vlaneseq
    %v2894 = vshrl.u32 %v2893, 7
    %v2895 = vsub.s32 %v2892, %v2894
    %v2896 = vrot.slane %v2887, %v2895
    %v2898 = vunpack.c.l.s4 1983009808
    %v2899 = vunpack.c.0.s8 %v2898
    %v2900 = vlaneseq
    %v2901 = vshrl.u32 %v2900, 7
    %v2902 = vsub.s32 %v2899, %v2901
    %v2903 = vrot.slane %v2889, %v2902
    %v2904 = vcombine.high %v2896, %v2896
    %v2905 = vcombine.high %v2903, %v2903
    %2910 = vmatprep.subr.mxu0 0.0
    %2911 = vmatpush1.msra.mxu0 %v2823
    %2912 = vmatprep.subr.mxu0 0.0
    %2913 = vmatpush1.msra.mxu0 %v2824
    %2914 = vmatprep.subr.mxu0 0.0
    %2915 = vmatpush1.msra.mxu0 %v2825
    %2916 = vmatprep.subr.mxu0 0.0
    %2917 = vmatpush1.msra.mxu0 %v2826
    %2918 = vmatprep.subr.mxu0 0.0
    %2919 = vmatpush1.msra.mxu0 %v2827
    %2920 = vmatprep.subr.mxu0 0.0
    %2921 = vmatpush1.msra.mxu0 %v2828
    %2922 = vmatprep.subr.mxu0 0.0
    %2923 = vmatpush1.msra.mxu0 %v2829
    %2924 = vmatprep.subr.mxu0 0.0
    %2925 = vmatpush1.msra.mxu0 %v2830
    %2926 = vmatprep.subr.mxu0 0.0
    %2927 = vmatpush1.msra.mxu0 %v2831
    %2928 = vmatprep.subr.mxu0 0.0
    %2929 = vmatpush1.msra.mxu0 %v2832
    %2930 = vmatprep.subr.mxu0 0.0
    %2931 = vmatpush1.msra.mxu0 %v2833
    %2932 = vmatprep.subr.mxu0 0.0
    %2933 = vmatpush1.msra.mxu0 %v2834
    %2934 = vmatprep.subr.mxu0 0.0
    %2935 = vmatpush1.msra.mxu0 %v2835
    %2936 = vmatprep.subr.mxu0 0.0
    %2937 = vmatpush1.msra.mxu0 %v2836
    %2938 = vmatprep.subr.mxu0 0.0
    %2939 = vmatpush1.msra.mxu0 %v2837
    %2940 = vmatprep.subr.mxu0 0.0
    %2941 = vmatpush1.msra.mxu0 %v2838
    %2942 = vmatprep.subr.mxu0 0.0
    %2943 = vmatpush1.msra.mxu0 %v2839
    %2944 = vmatprep.subr.mxu0 0.0
    %2945 = vmatpush1.msra.mxu0 %v2840
    %2946 = vmatprep.subr.mxu0 0.0
    %2947 = vmatpush1.msra.mxu0 %v2841
    %2948 = vmatprep.subr.mxu0 0.0
    %2949 = vmatpush1.msra.mxu0 %v2842
    %2950 = vmatprep.subr.mxu0 0.0
    %2951 = vmatpush1.msra.mxu0 %v2843
    %2952 = vmatprep.subr.mxu0 0.0
    %2953 = vmatpush1.msra.mxu0 %v2844
    %2954 = vmatprep.subr.mxu0 0.0
    %2955 = vmatpush1.msra.mxu0 %v2845
    %2956 = vmatprep.subr.mxu0 0.0
    %2957 = vmatpush1.msra.mxu0 %v2846
    %2958 = vmatprep.subr.mxu0 0.0
    %2959 = vmatpush1.msra.mxu0 %v2847
    %2960 = vmatprep.subr.mxu0 0.0
    %2961 = vmatpush1.msra.mxu0 %v2848
    %2962 = vmatprep.subr.mxu0 0.0
    %2963 = vmatpush1.msra.mxu0 %v2849
    %2964 = vmatprep.subr.mxu0 0.0
    %2965 = vmatpush1.msra.mxu0 %v2850
    %2966 = vmatprep.subr.mxu0 0.0
    %2967 = vmatpush1.msra.mxu0 %v2851
    %2968 = vmatprep.subr.mxu0 0.0
    %2969 = vmatpush1.msra.mxu0 %v2852
    %2970 = vmatprep.subr.mxu0 0.0
    %2971 = vmatpush1.msra.mxu0 %v2853
    %2972 = vmatprep.subr.mxu0 0.0
    %2973 = vmatpush1.msra.mxu0 %v2854
    %2974 = vmatprep.mubr.f32.mxu0 %v2904
    %2975 = vmatmul.mubr.f32.gmra.mrb[0].mxu0 %v2896
    %v2976 = vpop.f32.mrb[0].mxu0
    %v2977 = vadd.f32 0.0, %v2976
    %v2978 = vpop.f32.mrb[0].mxu0
    %2979 = vdwg.mxu0
    %2980 = vmatprep.subr.mxu0 0.0
    %2981 = vmatpush1.msra.mxu0 %v2855
    %2982 = vmatprep.subr.mxu0 0.0
    %2983 = vmatpush1.msra.mxu0 %v2856
    %2984 = vmatprep.subr.mxu0 0.0
    %2985 = vmatpush1.msra.mxu0 %v2857
    %2986 = vmatprep.subr.mxu0 0.0
    %2987 = vmatpush1.msra.mxu0 %v2858
    %2988 = vmatprep.subr.mxu0 0.0
    %2989 = vmatpush1.msra.mxu0 %v2859
    %2990 = vmatprep.subr.mxu0 0.0
    %2991 = vmatpush1.msra.mxu0 %v2860
    %2992 = vmatprep.subr.mxu0 0.0
    %2993 = vmatpush1.msra.mxu0 %v2861
    %2994 = vmatprep.subr.mxu0 0.0
    %2995 = vmatpush1.msra.mxu0 %v2862
    %2996 = vmatprep.subr.mxu0 0.0
    %2997 = vmatpush1.msra.mxu0 %v2863
    %2998 = vmatprep.subr.mxu0 0.0
    %2999 = vmatpush1.msra.mxu0 %v2864
    %3000 = vmatprep.subr.mxu0 0.0
    %3001 = vmatpush1.msra.mxu0 %v2865
    %3002 = vmatprep.subr.mxu0 0.0
    %3003 = vmatpush1.msra.mxu0 %v2866
    %3004 = vmatprep.subr.mxu0 0.0
    %3005 = vmatpush1.msra.mxu0 %v2867
    %3006 = vmatprep.subr.mxu0 0.0
    %3007 = vmatpush1.msra.mxu0 %v2868
    %3008 = vmatprep.subr.mxu0 0.0
    %3009 = vmatpush1.msra.mxu0 %v2869
    %3010 = vmatprep.subr.mxu0 0.0
    %3011 = vmatpush1.msra.mxu0 %v2870
    %3012 = vmatprep.subr.mxu0 0.0
    %3013 = vmatpush1.msra.mxu0 %v2871
    %3014 = vmatprep.subr.mxu0 0.0
    %3015 = vmatpush1.msra.mxu0 %v2872
    %3016 = vmatprep.subr.mxu0 0.0
    %3017 = vmatpush1.msra.mxu0 %v2873
    %3018 = vmatprep.subr.mxu0 0.0
    %3019 = vmatpush1.msra.mxu0 %v2874
    %3020 = vmatprep.subr.mxu0 0.0
    %3021 = vmatpush1.msra.mxu0 %v2875
    %3022 = vmatprep.subr.mxu0 0.0
    %3023 = vmatpush1.msra.mxu0 %v2876
    %3024 = vmatprep.subr.mxu0 0.0
    %3025 = vmatpush1.msra.mxu0 %v2877
    %3026 = vmatprep.subr.mxu0 0.0
    %3027 = vmatpush1.msra.mxu0 %v2878
    %3028 = vmatprep.subr.mxu0 0.0
    %3029 = vmatpush1.msra.mxu0 %v2879
    %3030 = vmatprep.subr.mxu0 0.0
    %3031 = vmatpush1.msra.mxu0 %v2880
    %3032 = vmatprep.subr.mxu0 0.0
    %3033 = vmatpush1.msra.mxu0 %v2881
    %3034 = vmatprep.subr.mxu0 0.0
    %3035 = vmatpush1.msra.mxu0 %v2882
    %3036 = vmatprep.subr.mxu0 0.0
    %3037 = vmatpush1.msra.mxu0 %v2883
    %3038 = vmatprep.subr.mxu0 0.0
    %3039 = vmatpush1.msra.mxu0 %v2884
    %3040 = vmatprep.subr.mxu0 0.0
    %3041 = vmatpush1.msra.mxu0 %v2885
    %3042 = vmatprep.subr.mxu0 0.0
    %3043 = vmatpush1.msra.mxu0 %v2886
    %3044 = vmatprep.mubr.f32.mxu0 %v2905
    %3045 = vmatmul.mubr.f32.gmra.mrb[0].mxu0 %v2903
    %v3046 = vpop.f32.mrb[0].mxu0
    %v3047 = vadd.f32 %v2977, %v3046
    %v3048 = vpop.f32.mrb[0].mxu0
    %3049 = vdwg.mxu0
    %v3050 = vld [vmem:[%s2] sm:$0xff]
    %v3051 = vld [vmem:[%s2 + $0x8] sm:$0xff]
    %v3052 = vld [vmem:[%s2 + $0x10] sm:$0xff]
    %v3053 = vld [vmem:[%s2 + $0x18] sm:$0xff]
    %v3054 = vld [vmem:[%s2 + $0x20] sm:$0xff]
    %v3055 = vld [vmem:[%s2 + $0x28] sm:$0xff]
    %v3056 = vld [vmem:[%s2 + $0x30] sm:$0xff]
    %v3057 = vld [vmem:[%s2 + $0x38] sm:$0xff]
    %v3058 = vld [vmem:[%s2 + $0x40] sm:$0xff]
    %v3059 = vld [vmem:[%s2 + $0x48] sm:$0xff]
    %v3060 = vld [vmem:[%s2 + $0x50] sm:$0xff]
    %v3061 = vld [vmem:[%s2 + $0x58] sm:$0xff]
    %v3062 = vld [vmem:[%s2 + $0x60] sm:$0xff]
    %v3063 = vld [vmem:[%s2 + $0x68] sm:$0xff]
    %v3064 = vld [vmem:[%s2 + $0x70] sm:$0xff]
    %v3065 = vld [vmem:[%s2 + $0x78] sm:$0xff]
    %v3066 = vld [vmem:[%s11] sm:$0x1]
    %3068 = vset.pattern.permute.xlu0 0
    %3069 = vperm.xlu0 %3068, %v3050
    %v3070 = vpop.permute.xlu0 %3069
    %3073 = vset.pattern.permute.xlu0 0
    %3074 = vperm.xlu0 %3073, %v3051
    %v3075 = vpop.permute.xlu0 %3074
    %3078 = vset.pattern.permute.xlu0 0
    %3079 = vperm.xlu0 %3078, %v3052
    %v3080 = vpop.permute.xlu0 %3079
    %3083 = vset.pattern.permute.xlu0 0
    %3084 = vperm.xlu0 %3083, %v3053
    %v3085 = vpop.permute.xlu0 %3084
    %3088 = vset.pattern.permute.xlu0 0
    %3089 = vperm.xlu0 %3088, %v3054
    %v3090 = vpop.permute.xlu0 %3089
    %3093 = vset.pattern.permute.xlu0 0
    %3094 = vperm.xlu0 %3093, %v3055
    %v3095 = vpop.permute.xlu0 %3094
    %3098 = vset.pattern.permute.xlu0 0
    %3099 = vperm.xlu0 %3098, %v3056
    %v3100 = vpop.permute.xlu0 %3099
    %3103 = vset.pattern.permute.xlu0 0
    %3104 = vperm.xlu0 %3103, %v3057
    %v3105 = vpop.permute.xlu0 %3104
    %3108 = vset.pattern.permute.xlu0 0
    %3109 = vperm.xlu0 %3108, %v3058
    %v3110 = vpop.permute.xlu0 %3109
    %3113 = vset.pattern.permute.xlu0 0
    %3114 = vperm.xlu0 %3113, %v3059
    %v3115 = vpop.permute.xlu0 %3114
    %3118 = vset.pattern.permute.xlu0 0
    %3119 = vperm.xlu0 %3118, %v3060
    %v3120 = vpop.permute.xlu0 %3119
    %3123 = vset.pattern.permute.xlu0 0
    %3124 = vperm.xlu0 %3123, %v3061
    %v3125 = vpop.permute.xlu0 %3124
    %3128 = vset.pattern.permute.xlu0 0
    %3129 = vperm.xlu0 %3128, %v3062
    %v3130 = vpop.permute.xlu0 %3129
    %3133 = vset.pattern.permute.xlu0 0
    %3134 = vperm.xlu0 %3133, %v3063
    %v3135 = vpop.permute.xlu0 %3134
    %3138 = vset.pattern.permute.xlu0 0
    %3139 = vperm.xlu0 %3138, %v3064
    %v3140 = vpop.permute.xlu0 %3139
    %3143 = vset.pattern.permute.xlu0 0
    %3144 = vperm.xlu0 %3143, %v3065
    %v3145 = vpop.permute.xlu0 %3144
    %v3148 = vlaneseq
    %v3149 = vshrl.u32 %v3148, 7
    %v3150 = vsub.s32 0, %v3149
    %v3151 = vrot.slane %v3066, %v3150
    %v3153 = vmul.f32 %v3070, %v3151
    %v3154 = vmul.f32 %v3075, %v3151
    %v3155 = vmul.f32 %v3080, %v3151
    %v3156 = vmul.f32 %v3085, %v3151
    %v3157 = vmul.f32 %v3090, %v3151
    %v3158 = vmul.f32 %v3095, %v3151
    %v3159 = vmul.f32 %v3100, %v3151
    %v3160 = vmul.f32 %v3105, %v3151
    %v3161 = vmul.f32 %v3110, %v3151
    %v3162 = vmul.f32 %v3115, %v3151
    %v3163 = vmul.f32 %v3120, %v3151
    %v3164 = vmul.f32 %v3125, %v3151
    %v3165 = vmul.f32 %v3130, %v3151
    %v3166 = vmul.f32 %v3135, %v3151
    %v3167 = vmul.f32 %v3140, %v3151
    %v3168 = vmul.f32 %v3145, %v3151
    %v3169 = vld [vmem:[%s12] sm:$0x1]
    %v3171 = vlaneseq
    %v3172 = vshrl.u32 %v3171, 7
    %v3173 = vsub.s32 0, %v3172
    %v3174 = vrot.slane %v3169, %v3173
    %v3176 = vadd.f32 %v3153, %v3174
    %v3177 = vadd.f32 %v3154, %v3174
    %v3178 = vadd.f32 %v3155, %v3174
    %v3179 = vadd.f32 %v3156, %v3174
    %v3180 = vadd.f32 %v3157, %v3174
    %v3181 = vadd.f32 %v3158, %v3174
    %v3182 = vadd.f32 %v3159, %v3174
    %v3183 = vadd.f32 %v3160, %v3174
    %v3184 = vadd.f32 %v3161, %v3174
    %v3185 = vadd.f32 %v3162, %v3174
    %v3186 = vadd.f32 %v3163, %v3174
    %v3187 = vadd.f32 %v3164, %v3174
    %v3188 = vadd.f32 %v3165, %v3174
    %v3189 = vadd.f32 %v3166, %v3174
    %v3190 = vadd.f32 %v3167, %v3174
    %v3191 = vadd.f32 %v3168, %v3174
    %v3192 = vmax.f32 %v3176, 0.0
    %v3193 = vmax.f32 %v3177, 0.0
    %v3194 = vmax.f32 %v3178, 0.0
    %v3195 = vmax.f32 %v3179, 0.0
    %v3196 = vmax.f32 %v3180, 0.0
    %v3197 = vmax.f32 %v3181, 0.0
    %v3198 = vmax.f32 %v3182, 0.0
    %v3199 = vmax.f32 %v3183, 0.0
    %v3200 = vmax.f32 %v3184, 0.0
    %v3201 = vmax.f32 %v3185, 0.0
    %v3202 = vmax.f32 %v3186, 0.0
    %v3203 = vmax.f32 %v3187, 0.0
    %v3204 = vmax.f32 %v3188, 0.0
    %v3205 = vmax.f32 %v3189, 0.0
    %v3206 = vmax.f32 %v3190, 0.0
    %v3207 = vmax.f32 %v3191, 0.0
    %v3208 = vld [vmem:[%s13] sm:$0xff]
    %v3209 = vld [vmem:[%s13 + $0x8] sm:$0xff]
    %v3210 = vld [vmem:[%s13 + $0x10] sm:$0xff]
    %v3211 = vld [vmem:[%s13 + $0x18] sm:$0xff]
    %v3212 = vld [vmem:[%s13 + $0x20] sm:$0xff]
    %v3213 = vld [vmem:[%s13 + $0x28] sm:$0xff]
    %v3214 = vld [vmem:[%s13 + $0x30] sm:$0xff]
    %v3215 = vld [vmem:[%s13 + $0x38] sm:$0xff]
    %v3216 = vld [vmem:[%s14] sm:$0x1]
    %v3218 = vlaneseq
    %v3219 = vshrl.u32 %v3218, 7
    %v3220 = vsub.s32 0, %v3219
    %v3221 = vrot.slane %v3216, %v3220
    %v3224 = vsel %vm805, %v3192, 0
    %v3227 = vsel %vm805, %v3193, 0
    %v3230 = vsel %vm805, %v3194, 0
    %v3233 = vsel %vm805, %v3195, 0
    %v3236 = vsel %vm805, %v3196, 0
    %v3239 = vsel %vm805, %v3197, 0
    %v3242 = vsel %vm805, %v3198, 0
    %v3245 = vsel %vm805, %v3199, 0
    %v3248 = vsel %vm805, %v3200, 0
    %v3251 = vsel %vm805, %v3201, 0
    %v3254 = vsel %vm805, %v3202, 0
    %v3257 = vsel %vm805, %v3203, 0
    %v3260 = vsel %vm805, %v3204, 0
    %v3263 = vsel %vm805, %v3205, 0
    %v3266 = vsel %vm805, %v3206, 0
    %v3269 = vsel %vm805, %v3207, 0
    %3271 = vmatprep.subr.mxu0 0.0
    %3272 = vmatpush1.msra.mxu0 %v3208
    %3273 = vmatprep.subr.mxu0 0.0
    %3274 = vmatpush1.msra.mxu0 %v3209
    %3275 = vmatprep.subr.mxu0 0.0
    %3276 = vmatpush1.msra.mxu0 %v3210
    %3277 = vmatprep.subr.mxu0 0.0
    %3278 = vmatpush1.msra.mxu0 %v3211
    %3279 = vmatprep.subr.mxu0 0.0
    %3280 = vmatpush1.msra.mxu0 %v3212
    %3281 = vmatprep.subr.mxu0 0.0
    %3282 = vmatpush1.msra.mxu0 %v3213
    %3283 = vmatprep.subr.mxu0 0.0
    %3284 = vmatpush1.msra.mxu0 %v3214
    %3285 = vmatprep.subr.mxu0 0.0
    %3286 = vmatpush1.msra.mxu0 %v3215
    %3287 = vmatprep.subr.mxu0 0.0
    %3288 = vmatpush1.msra.mxu0 0.0
    %3289 = vmatprep.subr.mxu0 0.0
    %3290 = vmatpush1.msra.mxu0 0.0
    %3291 = vmatprep.subr.mxu0 0.0
    %3292 = vmatpush1.msra.mxu0 0.0
    %3293 = vmatprep.subr.mxu0 0.0
    %3294 = vmatpush1.msra.mxu0 0.0
    %3295 = vmatprep.subr.mxu0 0.0
    %3296 = vmatpush1.msra.mxu0 0.0
    %3297 = vmatprep.subr.mxu0 0.0
    %3298 = vmatpush1.msra.mxu0 0.0
    %3299 = vmatprep.subr.mxu0 0.0
    %3300 = vmatpush1.msra.mxu0 0.0
    %3301 = vmatprep.subr.mxu0 0.0
    %3302 = vmatpush1.msra.mxu0 0.0
    %3303 = vmatprep.subr.mxu0 0.0
    %3304 = vmatpush1.msra.mxu0 0.0
    %3305 = vmatprep.subr.mxu0 0.0
    %3306 = vmatpush1.msra.mxu0 0.0
    %3307 = vmatprep.subr.mxu0 0.0
    %3308 = vmatpush1.msra.mxu0 0.0
    %3309 = vmatprep.subr.mxu0 0.0
    %3310 = vmatpush1.msra.mxu0 0.0
    %3311 = vmatprep.subr.mxu0 0.0
    %3312 = vmatpush1.msra.mxu0 0.0
    %3313 = vmatprep.subr.mxu0 0.0
    %3314 = vmatpush1.msra.mxu0 0.0
    %3315 = vmatprep.subr.mxu0 0.0
    %3316 = vmatpush1.msra.mxu0 0.0
    %3317 = vmatprep.subr.mxu0 0.0
    %3318 = vmatpush1.msra.mxu0 0.0
    %3319 = vmatprep.subr.mxu0 0.0
    %3320 = vmatpush1.msra.mxu0 0.0
    %3321 = vmatprep.subr.mxu0 0.0
    %3322 = vmatpush1.msra.mxu0 0.0
    %3323 = vmatprep.subr.mxu0 0.0
    %3324 = vmatpush1.msra.mxu0 0.0
    %3325 = vmatprep.subr.mxu0 0.0
    %3326 = vmatpush1.msra.mxu0 0.0
    %3327 = vmatprep.subr.mxu0 0.0
    %3328 = vmatpush1.msra.mxu0 0.0
    %3329 = vmatprep.subr.mxu0 0.0
    %3330 = vmatpush1.msra.mxu0 0.0
    %3331 = vmatprep.subr.mxu0 0.0
    %3332 = vmatpush1.msra.mxu0 0.0
    %3333 = vmatprep.subr.mxu0 0.0
    %3334 = vmatpush1.msra.mxu0 0.0
    %3335 = vmatprep.mubr.f32.mxu0 0.0
    %3336 = vmatmul.mubr.f32.gmra.mrb[0].mxu0 %v3224
    %v3337 = vpop.f32.mrb[0].mxu0
    %v3338 = vadd.f32 %v3221, %v3337
    %v3339 = vpop.f32.mrb[0].mxu0
    %3340 = vmatprep.mubr.f32.mxu0 0.0
    %3341 = vmatmul.mubr.f32.gmra.mrb[0].mxu0 %v3227
    %v3342 = vpop.f32.mrb[0].mxu0
    %v3343 = vadd.f32 %v3221, %v3342
    %v3344 = vpop.f32.mrb[0].mxu0
    %3345 = vmatprep.mubr.f32.mxu0 0.0
    %3346 = vmatmul.mubr.f32.gmra.mrb[0].mxu0 %v3230
    %v3347 = vpop.f32.mrb[0].mxu0
    %v3348 = vadd.f32 %v3221, %v3347
    %v3349 = vpop.f32.mrb[0].mxu0
    %3350 = vmatprep.mubr.f32.mxu0 0.0
    %3351 = vmatmul.mubr.f32.gmra.mrb[0].mxu0 %v3233
    %v3352 = vpop.f32.mrb[0].mxu0
    %v3353 = vadd.f32 %v3221, %v3352
    %v3354 = vpop.f32.mrb[0].mxu0
    %3355 = vmatprep.mubr.f32.mxu0 0.0
    %3356 = vmatmul.mubr.f32.gmra.mrb[0].mxu0 %v3236
    %v3357 = vpop.f32.mrb[0].mxu0
    %v3358 = vadd.f32 %v3221, %v3357
    %v3359 = vpop.f32.mrb[0].mxu0
    %3360 = vmatprep.mubr.f32.mxu0 0.0
    %3361 = vmatmul.mubr.f32.gmra.mrb[0].mxu0 %v3239
    %v3362 = vpop.f32.mrb[0].mxu0
    %v3363 = vadd.f32 %v3221, %v3362
    %v3364 = vpop.f32.mrb[0].mxu0
    %3365 = vmatprep.mubr.f32.mxu0 0.0
    %3366 = vmatmul.mubr.f32.gmra.mrb[0].mxu0 %v3242
    %v3367 = vpop.f32.mrb[0].mxu0
    %v3368 = vadd.f32 %v3221, %v3367
    %v3369 = vpop.f32.mrb[0].mxu0
    %3370 = vmatprep.mubr.f32.mxu0 0.0
    %3371 = vmatmul.mubr.f32.gmra.mrb[0].mxu0 %v3245
    %v3372 = vpop.f32.mrb[0].mxu0
    %v3373 = vadd.f32 %v3221, %v3372
    %v3374 = vpop.f32.mrb[0].mxu0
    %3375 = vmatprep.mubr.f32.mxu0 0.0
    %3376 = vmatmul.mubr.f32.gmra.mrb[0].mxu0 %v3248
    %v3377 = vpop.f32.mrb[0].mxu0
    %v3378 = vadd.f32 %v3221, %v3377
    %v3379 = vpop.f32.mrb[0].mxu0
    %3380 = vmatprep.mubr.f32.mxu0 0.0
    %3381 = vmatmul.mubr.f32.gmra.mrb[0].mxu0 %v3251
    %v3382 = vpop.f32.mrb[0].mxu0
    %v3383 = vadd.f32 %v3221, %v3382
    %v3384 = vpop.f32.mrb[0].mxu0
    %3385 = vmatprep.mubr.f32.mxu0 0.0
    %3386 = vmatmul.mubr.f32.gmra.mrb[0].mxu0 %v3254
    %v3387 = vpop.f32.mrb[0].mxu0
    %v3388 = vadd.f32 %v3221, %v3387
    %v3389 = vpop.f32.mrb[0].mxu0
    %3390 = vmatprep.mubr.f32.mxu0 0.0
    %3391 = vmatmul.mubr.f32.gmra.mrb[0].mxu0 %v3257
    %v3392 = vpop.f32.mrb[0].mxu0
    %v3393 = vadd.f32 %v3221, %v3392
    %v3394 = vpop.f32.mrb[0].mxu0
    %3395 = vmatprep.mubr.f32.mxu0 0.0
    %3396 = vmatmul.mubr.f32.gmra.mrb[0].mxu0 %v3260
    %v3397 = vpop.f32.mrb[0].mxu0
    %v3398 = vadd.f32 %v3221, %v3397
    %v3399 = vpop.f32.mrb[0].mxu0
    %3400 = vmatprep.mubr.f32.mxu0 0.0
    %3401 = vmatmul.mubr.f32.gmra.mrb[0].mxu0 %v3263
    %v3402 = vpop.f32.mrb[0].mxu0
    %v3403 = vadd.f32 %v3221, %v3402
    %v3404 = vpop.f32.mrb[0].mxu0
    %3405 = vmatprep.mubr.f32.mxu0 0.0
    %3406 = vmatmul.mubr.f32.gmra.mrb[0].mxu0 %v3266
    %v3407 = vpop.f32.mrb[0].mxu0
    %v3408 = vadd.f32 %v3221, %v3407
    %v3409 = vpop.f32.mrb[0].mxu0
    %3410 = vmatprep.mubr.f32.mxu0 0.0
    %3411 = vmatmul.mubr.f32.gmra.mrb[0].mxu0 %v3269
    %v3412 = vpop.f32.mrb[0].mxu0
    %v3413 = vadd.f32 %v3221, %v3412
    %v3414 = vpop.f32.mrb[0].mxu0
    %3415 = vdwg.mxu0
    %v3416 = vmax.f32 %v3338, 0.0
    %v3417 = vmax.f32 %v3343, 0.0
    %v3418 = vmax.f32 %v3348, 0.0
    %v3419 = vmax.f32 %v3353, 0.0
    %v3420 = vmax.f32 %v3358, 0.0
    %v3421 = vmax.f32 %v3363, 0.0
    %v3422 = vmax.f32 %v3368, 0.0
    %v3423 = vmax.f32 %v3373, 0.0
    %v3424 = vmax.f32 %v3378, 0.0
    %v3425 = vmax.f32 %v3383, 0.0
    %v3426 = vmax.f32 %v3388, 0.0
    %v3427 = vmax.f32 %v3393, 0.0
    %v3428 = vmax.f32 %v3398, 0.0
    %v3429 = vmax.f32 %v3403, 0.0
    %v3430 = vmax.f32 %v3408, 0.0
    %v3431 = vmax.f32 %v3413, 0.0
    %v3432 = vld [vmem:[%s15] sm:$0xff]
    %v3433 = vld [vmem:[%s15 + $0x8] sm:$0xff]
    %v3434 = vld [vmem:[%s15 + $0x10] sm:$0xff]
    %v3435 = vld [vmem:[%s15 + $0x18] sm:$0xff]
    %v3436 = vld [vmem:[%s15 + $0x20] sm:$0xff]
    %v3437 = vld [vmem:[%s15 + $0x28] sm:$0xff]
    %v3438 = vld [vmem:[%s15 + $0x30] sm:$0xff]
    %v3439 = vld [vmem:[%s15 + $0x38] sm:$0xff]
    %v3440 = vld [vmem:[%s16] sm:$0x1]
    %v3442 = vlaneseq
    %v3443 = vshrl.u32 %v3442, 7
    %v3444 = vsub.s32 0, %v3443
    %v3445 = vrot.slane %v3440, %v3444
    %v3448 = vsel %vm805, %v3416, 0
    %v3451 = vsel %vm805, %v3417, 0
    %v3454 = vsel %vm805, %v3418, 0
    %v3457 = vsel %vm805, %v3419, 0
    %v3460 = vsel %vm805, %v3420, 0
    %v3463 = vsel %vm805, %v3421, 0
    %v3466 = vsel %vm805, %v3422, 0
    %v3469 = vsel %vm805, %v3423, 0
    %v3472 = vsel %vm805, %v3424, 0
    %v3475 = vsel %vm805, %v3425, 0
    %v3478 = vsel %vm805, %v3426, 0
    %v3481 = vsel %vm805, %v3427, 0
    %v3484 = vsel %vm805, %v3428, 0
    %v3487 = vsel %vm805, %v3429, 0
    %v3490 = vsel %vm805, %v3430, 0
    %v3493 = vsel %vm805, %v3431, 0
    %3495 = vmatprep.subr.mxu0 0.0
    %3496 = vmatpush1.msra.mxu0 %v3432
    %3497 = vmatprep.subr.mxu0 0.0
    %3498 = vmatpush1.msra.mxu0 %v3433
    %3499 = vmatprep.subr.mxu0 0.0
    %3500 = vmatpush1.msra.mxu0 %v3434
    %3501 = vmatprep.subr.mxu0 0.0
    %3502 = vmatpush1.msra.mxu0 %v3435
    %3503 = vmatprep.subr.mxu0 0.0
    %3504 = vmatpush1.msra.mxu0 %v3436
    %3505 = vmatprep.subr.mxu0 0.0
    %3506 = vmatpush1.msra.mxu0 %v3437
    %3507 = vmatprep.subr.mxu0 0.0
    %3508 = vmatpush1.msra.mxu0 %v3438
    %3509 = vmatprep.subr.mxu0 0.0
    %3510 = vmatpush1.msra.mxu0 %v3439
    %3511 = vmatprep.subr.mxu0 0.0
    %3512 = vmatpush1.msra.mxu0 0.0
    %3513 = vmatprep.subr.mxu0 0.0
    %3514 = vmatpush1.msra.mxu0 0.0
    %3515 = vmatprep.subr.mxu0 0.0
    %3516 = vmatpush1.msra.mxu0 0.0
    %3517 = vmatprep.subr.mxu0 0.0
    %3518 = vmatpush1.msra.mxu0 0.0
    %3519 = vmatprep.subr.mxu0 0.0
    %3520 = vmatpush1.msra.mxu0 0.0
    %3521 = vmatprep.subr.mxu0 0.0
    %3522 = vmatpush1.msra.mxu0 0.0
    %3523 = vmatprep.subr.mxu0 0.0
    %3524 = vmatpush1.msra.mxu0 0.0
    %3525 = vmatprep.subr.mxu0 0.0
    %3526 = vmatpush1.msra.mxu0 0.0
    %3527 = vmatprep.subr.mxu0 0.0
    %3528 = vmatpush1.msra.mxu0 0.0
    %3529 = vmatprep.subr.mxu0 0.0
    %3530 = vmatpush1.msra.mxu0 0.0
    %3531 = vmatprep.subr.mxu0 0.0
    %3532 = vmatpush1.msra.mxu0 0.0
    %3533 = vmatprep.subr.mxu0 0.0
    %3534 = vmatpush1.msra.mxu0 0.0
    %3535 = vmatprep.subr.mxu0 0.0
    %3536 = vmatpush1.msra.mxu0 0.0
    %3537 = vmatprep.subr.mxu0 0.0
    %3538 = vmatpush1.msra.mxu0 0.0
    %3539 = vmatprep.subr.mxu0 0.0
    %3540 = vmatpush1.msra.mxu0 0.0
    %3541 = vmatprep.subr.mxu0 0.0
    %3542 = vmatpush1.msra.mxu0 0.0
    %3543 = vmatprep.subr.mxu0 0.0
    %3544 = vmatpush1.msra.mxu0 0.0
    %3545 = vmatprep.subr.mxu0 0.0
    %3546 = vmatpush1.msra.mxu0 0.0
    %3547 = vmatprep.subr.mxu0 0.0
    %3548 = vmatpush1.msra.mxu0 0.0
    %3549 = vmatprep.subr.mxu0 0.0
    %3550 = vmatpush1.msra.mxu0 0.0
    %3551 = vmatprep.subr.mxu0 0.0
    %3552 = vmatpush1.msra.mxu0 0.0
    %3553 = vmatprep.subr.mxu0 0.0
    %3554 = vmatpush1.msra.mxu0 0.0
    %3555 = vmatprep.subr.mxu0 0.0
    %3556 = vmatpush1.msra.mxu0 0.0
    %3557 = vmatprep.subr.mxu0 0.0
    %3558 = vmatpush1.msra.mxu0 0.0
    %3559 = vmatprep.mubr.f32.mxu0 0.0
    %3560 = vmatmul.mubr.f32.gmra.mrb[0].mxu0 %v3448
    %v3561 = vpop.f32.mrb[0].mxu0
    %v3562 = vadd.f32 %v3445, %v3561
    %v3563 = vpop.f32.mrb[0].mxu0
    %3564 = vmatprep.mubr.f32.mxu0 0.0
    %3565 = vmatmul.mubr.f32.gmra.mrb[0].mxu0 %v3451
    %v3566 = vpop.f32.mrb[0].mxu0
    %v3567 = vadd.f32 %v3445, %v3566
    %v3568 = vpop.f32.mrb[0].mxu0
    %3569 = vmatprep.mubr.f32.mxu0 0.0
    %3570 = vmatmul.mubr.f32.gmra.mrb[0].mxu0 %v3454
    %v3571 = vpop.f32.mrb[0].mxu0
    %v3572 = vadd.f32 %v3445, %v3571
    %v3573 = vpop.f32.mrb[0].mxu0
    %3574 = vmatprep.mubr.f32.mxu0 0.0
    %3575 = vmatmul.mubr.f32.gmra.mrb[0].mxu0 %v3457
    %v3576 = vpop.f32.mrb[0].mxu0
    %v3577 = vadd.f32 %v3445, %v3576
    %v3578 = vpop.f32.mrb[0].mxu0
    %3579 = vmatprep.mubr.f32.mxu0 0.0
    %3580 = vmatmul.mubr.f32.gmra.mrb[0].mxu0 %v3460
    %v3581 = vpop.f32.mrb[0].mxu0
    %v3582 = vadd.f32 %v3445, %v3581
    %v3583 = vpop.f32.mrb[0].mxu0
    %3584 = vmatprep.mubr.f32.mxu0 0.0
    %3585 = vmatmul.mubr.f32.gmra.mrb[0].mxu0 %v3463
    %v3586 = vpop.f32.mrb[0].mxu0
    %v3587 = vadd.f32 %v3445, %v3586
    %v3588 = vpop.f32.mrb[0].mxu0
    %3589 = vmatprep.mubr.f32.mxu0 0.0
    %3590 = vmatmul.mubr.f32.gmra.mrb[0].mxu0 %v3466
    %v3591 = vpop.f32.mrb[0].mxu0
    %v3592 = vadd.f32 %v3445, %v3591
    %v3593 = vpop.f32.mrb[0].mxu0
    %3594 = vmatprep.mubr.f32.mxu0 0.0
    %3595 = vmatmul.mubr.f32.gmra.mrb[0].mxu0 %v3469
    %v3596 = vpop.f32.mrb[0].mxu0
    %v3597 = vadd.f32 %v3445, %v3596
    %v3598 = vpop.f32.mrb[0].mxu0
    %3599 = vmatprep.mubr.f32.mxu0 0.0
    %3600 = vmatmul.mubr.f32.gmra.mrb[0].mxu0 %v3472
    %v3601 = vpop.f32.mrb[0].mxu0
    %v3602 = vadd.f32 %v3445, %v3601
    %v3603 = vpop.f32.mrb[0].mxu0
    %3604 = vmatprep.mubr.f32.mxu0 0.0
    %3605 = vmatmul.mubr.f32.gmra.mrb[0].mxu0 %v3475
    %v3606 = vpop.f32.mrb[0].mxu0
    %v3607 = vadd.f32 %v3445, %v3606
    %v3608 = vpop.f32.mrb[0].mxu0
    %3609 = vmatprep.mubr.f32.mxu0 0.0
    %3610 = vmatmul.mubr.f32.gmra.mrb[0].mxu0 %v3478
    %v3611 = vpop.f32.mrb[0].mxu0
    %v3612 = vadd.f32 %v3445, %v3611
    %v3613 = vpop.f32.mrb[0].mxu0
    %3614 = vmatprep.mubr.f32.mxu0 0.0
    %3615 = vmatmul.mubr.f32.gmra.mrb[0].mxu0 %v3481
    %v3616 = vpop.f32.mrb[0].mxu0
    %v3617 = vadd.f32 %v3445, %v3616
    %v3618 = vpop.f32.mrb[0].mxu0
    %3619 = vmatprep.mubr.f32.mxu0 0.0
    %3620 = vmatmul.mubr.f32.gmra.mrb[0].mxu0 %v3484
    %v3621 = vpop.f32.mrb[0].mxu0
    %v3622 = vadd.f32 %v3445, %v3621
    %v3623 = vpop.f32.mrb[0].mxu0
    %3624 = vmatprep.mubr.f32.mxu0 0.0
    %3625 = vmatmul.mubr.f32.gmra.mrb[0].mxu0 %v3487
    %v3626 = vpop.f32.mrb[0].mxu0
    %v3627 = vadd.f32 %v3445, %v3626
    %v3628 = vpop.f32.mrb[0].mxu0
    %3629 = vmatprep.mubr.f32.mxu0 0.0
    %3630 = vmatmul.mubr.f32.gmra.mrb[0].mxu0 %v3490
    %v3631 = vpop.f32.mrb[0].mxu0
    %v3632 = vadd.f32 %v3445, %v3631
    %v3633 = vpop.f32.mrb[0].mxu0
    %3634 = vmatprep.mubr.f32.mxu0 0.0
    %3635 = vmatmul.mubr.f32.gmra.mrb[0].mxu0 %v3493
    %v3636 = vpop.f32.mrb[0].mxu0
    %v3637 = vadd.f32 %v3445, %v3636
    %v3638 = vpop.f32.mrb[0].mxu0
    %3639 = vdwg.mxu0
    %v3640 = vmax.f32 %v3562, 0.0
    %v3641 = vmax.f32 %v3567, 0.0
    %v3642 = vmax.f32 %v3572, 0.0
    %v3643 = vmax.f32 %v3577, 0.0
    %v3644 = vmax.f32 %v3582, 0.0
    %v3645 = vmax.f32 %v3587, 0.0
    %v3646 = vmax.f32 %v3592, 0.0
    %v3647 = vmax.f32 %v3597, 0.0
    %v3648 = vmax.f32 %v3602, 0.0
    %v3649 = vmax.f32 %v3607, 0.0
    %v3650 = vmax.f32 %v3612, 0.0
    %v3651 = vmax.f32 %v3617, 0.0
    %v3652 = vmax.f32 %v3622, 0.0
    %v3653 = vmax.f32 %v3627, 0.0
    %v3654 = vmax.f32 %v3632, 0.0
    %v3655 = vmax.f32 %v3637, 0.0
    %v3656 = vld [vmem:[%s17] sm:$0xff]
    %v3657 = vld [vmem:[%s17 + $0x8] sm:$0xff]
    %v3658 = vld [vmem:[%s17 + $0x10] sm:$0xff]
    %v3659 = vld [vmem:[%s17 + $0x18] sm:$0xff]
    %v3660 = vld [vmem:[%s17 + $0x20] sm:$0xff]
    %v3661 = vld [vmem:[%s17 + $0x28] sm:$0xff]
    %v3662 = vld [vmem:[%s17 + $0x30] sm:$0xff]
    %v3663 = vld [vmem:[%s17 + $0x38] sm:$0xff]
    %v3664 = vld [vmem:[%s18] sm:$0x1]
    %v3666 = vlaneseq
    %v3667 = vshrl.u32 %v3666, 7
    %v3668 = vsub.s32 0, %v3667
    %v3669 = vrot.slane %v3664, %v3668
    %v3672 = vsel %vm805, %v3640, 0
    %v3675 = vsel %vm805, %v3641, 0
    %v3678 = vsel %vm805, %v3642, 0
    %v3681 = vsel %vm805, %v3643, 0
    %v3684 = vsel %vm805, %v3644, 0
    %v3687 = vsel %vm805, %v3645, 0
    %v3690 = vsel %vm805, %v3646, 0
    %v3693 = vsel %vm805, %v3647, 0
    %v3696 = vsel %vm805, %v3648, 0
    %v3699 = vsel %vm805, %v3649, 0
    %v3702 = vsel %vm805, %v3650, 0
    %v3705 = vsel %vm805, %v3651, 0
    %v3708 = vsel %vm805, %v3652, 0
    %v3711 = vsel %vm805, %v3653, 0
    %v3714 = vsel %vm805, %v3654, 0
    %v3717 = vsel %vm805, %v3655, 0
    %3719 = vmatprep.subr.mxu0 0.0
    %3720 = vmatpush1.msra.mxu0 %v3656
    %3721 = vmatprep.subr.mxu0 0.0
    %3722 = vmatpush1.msra.mxu0 %v3657
    %3723 = vmatprep.subr.mxu0 0.0
    %3724 = vmatpush1.msra.mxu0 %v3658
    %3725 = vmatprep.subr.mxu0 0.0
    %3726 = vmatpush1.msra.mxu0 %v3659
    %3727 = vmatprep.subr.mxu0 0.0
    %3728 = vmatpush1.msra.mxu0 %v3660
    %3729 = vmatprep.subr.mxu0 0.0
    %3730 = vmatpush1.msra.mxu0 %v3661
    %3731 = vmatprep.subr.mxu0 0.0
    %3732 = vmatpush1.msra.mxu0 %v3662
    %3733 = vmatprep.subr.mxu0 0.0
    %3734 = vmatpush1.msra.mxu0 %v3663
    %3735 = vmatprep.subr.mxu0 0.0
    %3736 = vmatpush1.msra.mxu0 0.0
    %3737 = vmatprep.subr.mxu0 0.0
    %3738 = vmatpush1.msra.mxu0 0.0
    %3739 = vmatprep.subr.mxu0 0.0
    %3740 = vmatpush1.msra.mxu0 0.0
    %3741 = vmatprep.subr.mxu0 0.0
    %3742 = vmatpush1.msra.mxu0 0.0
    %3743 = vmatprep.subr.mxu0 0.0
    %3744 = vmatpush1.msra.mxu0 0.0
    %3745 = vmatprep.subr.mxu0 0.0
    %3746 = vmatpush1.msra.mxu0 0.0
    %3747 = vmatprep.subr.mxu0 0.0
    %3748 = vmatpush1.msra.mxu0 0.0
    %3749 = vmatprep.subr.mxu0 0.0
    %3750 = vmatpush1.msra.mxu0 0.0
    %3751 = vmatprep.subr.mxu0 0.0
    %3752 = vmatpush1.msra.mxu0 0.0
    %3753 = vmatprep.subr.mxu0 0.0
    %3754 = vmatpush1.msra.mxu0 0.0
    %3755 = vmatprep.subr.mxu0 0.0
    %3756 = vmatpush1.msra.mxu0 0.0
    %3757 = vmatprep.subr.mxu0 0.0
    %3758 = vmatpush1.msra.mxu0 0.0
    %3759 = vmatprep.subr.mxu0 0.0
    %3760 = vmatpush1.msra.mxu0 0.0
    %3761 = vmatprep.subr.mxu0 0.0
    %3762 = vmatpush1.msra.mxu0 0.0
    %3763 = vmatprep.subr.mxu0 0.0
    %3764 = vmatpush1.msra.mxu0 0.0
    %3765 = vmatprep.subr.mxu0 0.0
    %3766 = vmatpush1.msra.mxu0 0.0
    %3767 = vmatprep.subr.mxu0 0.0
    %3768 = vmatpush1.msra.mxu0 0.0
    %3769 = vmatprep.subr.mxu0 0.0
    %3770 = vmatpush1.msra.mxu0 0.0
    %3771 = vmatprep.subr.mxu0 0.0
    %3772 = vmatpush1.msra.mxu0 0.0
    %3773 = vmatprep.subr.mxu0 0.0
    %3774 = vmatpush1.msra.mxu0 0.0
    %3775 = vmatprep.subr.mxu0 0.0
    %3776 = vmatpush1.msra.mxu0 0.0
    %3777 = vmatprep.subr.mxu0 0.0
    %3778 = vmatpush1.msra.mxu0 0.0
    %3779 = vmatprep.subr.mxu0 0.0
    %3780 = vmatpush1.msra.mxu0 0.0
    %3781 = vmatprep.subr.mxu0 0.0
    %3782 = vmatpush1.msra.mxu0 0.0
    %3783 = vmatprep.mubr.f32.mxu0 0.0
    %3784 = vmatmul.mubr.f32.gmra.mrb[0].mxu0 %v3672
    %v3785 = vpop.f32.mrb[0].mxu0
    %v3786 = vadd.f32 %v3669, %v3785
    %v3787 = vpop.f32.mrb[0].mxu0
    %3788 = vmatprep.mubr.f32.mxu0 0.0
    %3789 = vmatmul.mubr.f32.gmra.mrb[0].mxu0 %v3675
    %v3790 = vpop.f32.mrb[0].mxu0
    %v3791 = vadd.f32 %v3669, %v3790
    %v3792 = vpop.f32.mrb[0].mxu0
    %3793 = vmatprep.mubr.f32.mxu0 0.0
    %3794 = vmatmul.mubr.f32.gmra.mrb[0].mxu0 %v3678
    %v3795 = vpop.f32.mrb[0].mxu0
    %v3796 = vadd.f32 %v3669, %v3795
    %v3797 = vpop.f32.mrb[0].mxu0
    %3798 = vmatprep.mubr.f32.mxu0 0.0
    %3799 = vmatmul.mubr.f32.gmra.mrb[0].mxu0 %v3681
    %v3800 = vpop.f32.mrb[0].mxu0
    %v3801 = vadd.f32 %v3669, %v3800
    %v3802 = vpop.f32.mrb[0].mxu0
    %3803 = vmatprep.mubr.f32.mxu0 0.0
    %3804 = vmatmul.mubr.f32.gmra.mrb[0].mxu0 %v3684
    %v3805 = vpop.f32.mrb[0].mxu0
    %v3806 = vadd.f32 %v3669, %v3805
    %v3807 = vpop.f32.mrb[0].mxu0
    %3808 = vmatprep.mubr.f32.mxu0 0.0
    %3809 = vmatmul.mubr.f32.gmra.mrb[0].mxu0 %v3687
    %v3810 = vpop.f32.mrb[0].mxu0
    %v3811 = vadd.f32 %v3669, %v3810
    %v3812 = vpop.f32.mrb[0].mxu0
    %3813 = vmatprep.mubr.f32.mxu0 0.0
    %3814 = vmatmul.mubr.f32.gmra.mrb[0].mxu0 %v3690
    %v3815 = vpop.f32.mrb[0].mxu0
    %v3816 = vadd.f32 %v3669, %v3815
    %v3817 = vpop.f32.mrb[0].mxu0
    %3818 = vmatprep.mubr.f32.mxu0 0.0
    %3819 = vmatmul.mubr.f32.gmra.mrb[0].mxu0 %v3693
    %v3820 = vpop.f32.mrb[0].mxu0
    %v3821 = vadd.f32 %v3669, %v3820
    %v3822 = vpop.f32.mrb[0].mxu0
    %3823 = vmatprep.mubr.f32.mxu0 0.0
    %3824 = vmatmul.mubr.f32.gmra.mrb[0].mxu0 %v3696
    %v3825 = vpop.f32.mrb[0].mxu0
    %v3826 = vadd.f32 %v3669, %v3825
    %v3827 = vpop.f32.mrb[0].mxu0
    %3828 = vmatprep.mubr.f32.mxu0 0.0
    %3829 = vmatmul.mubr.f32.gmra.mrb[0].mxu0 %v3699
    %v3830 = vpop.f32.mrb[0].mxu0
    %v3831 = vadd.f32 %v3669, %v3830
    %v3832 = vpop.f32.mrb[0].mxu0
    %3833 = vmatprep.mubr.f32.mxu0 0.0
    %3834 = vmatmul.mubr.f32.gmra.mrb[0].mxu0 %v3702
    %v3835 = vpop.f32.mrb[0].mxu0
    %v3836 = vadd.f32 %v3669, %v3835
    %v3837 = vpop.f32.mrb[0].mxu0
    %3838 = vmatprep.mubr.f32.mxu0 0.0
    %3839 = vmatmul.mubr.f32.gmra.mrb[0].mxu0 %v3705
    %v3840 = vpop.f32.mrb[0].mxu0
    %v3841 = vadd.f32 %v3669, %v3840
    %v3842 = vpop.f32.mrb[0].mxu0
    %3843 = vmatprep.mubr.f32.mxu0 0.0
    %3844 = vmatmul.mubr.f32.gmra.mrb[0].mxu0 %v3708
    %v3845 = vpop.f32.mrb[0].mxu0
    %v3846 = vadd.f32 %v3669, %v3845
    %v3847 = vpop.f32.mrb[0].mxu0
    %3848 = vmatprep.mubr.f32.mxu0 0.0
    %3849 = vmatmul.mubr.f32.gmra.mrb[0].mxu0 %v3711
    %v3850 = vpop.f32.mrb[0].mxu0
    %v3851 = vadd.f32 %v3669, %v3850
    %v3852 = vpop.f32.mrb[0].mxu0
    %3853 = vmatprep.mubr.f32.mxu0 0.0
    %3854 = vmatmul.mubr.f32.gmra.mrb[0].mxu0 %v3714
    %v3855 = vpop.f32.mrb[0].mxu0
    %v3856 = vadd.f32 %v3669, %v3855
    %v3857 = vpop.f32.mrb[0].mxu0
    %3858 = vmatprep.mubr.f32.mxu0 0.0
    %3859 = vmatmul.mubr.f32.gmra.mrb[0].mxu0 %v3717
    %v3860 = vpop.f32.mrb[0].mxu0
    %v3861 = vadd.f32 %v3669, %v3860
    %v3862 = vpop.f32.mrb[0].mxu0
    %3863 = vdwg.mxu0
    %v3864 = vmax.f32 %v3786, 0.0
    %v3865 = vmax.f32 %v3791, 0.0
    %v3866 = vmax.f32 %v3796, 0.0
    %v3867 = vmax.f32 %v3801, 0.0
    %v3868 = vmax.f32 %v3806, 0.0
    %v3869 = vmax.f32 %v3811, 0.0
    %v3870 = vmax.f32 %v3816, 0.0
    %v3871 = vmax.f32 %v3821, 0.0
    %v3872 = vmax.f32 %v3826, 0.0
    %v3873 = vmax.f32 %v3831, 0.0
    %v3874 = vmax.f32 %v3836, 0.0
    %v3875 = vmax.f32 %v3841, 0.0
    %v3876 = vmax.f32 %v3846, 0.0
    %v3877 = vmax.f32 %v3851, 0.0
    %v3878 = vmax.f32 %v3856, 0.0
    %v3879 = vmax.f32 %v3861, 0.0
    %v3880 = vld [vmem:[#allocation2] sm:$0x1]
    %v3882 = vlaneseq
    %v3883 = vshrl.u32 %v3882, 7
    %v3884 = vsub.s32 0, %v3883
    %v3885 = vrot.slane %v3880, %v3884
    %3886 = vset.pattern.permute.xlu0 0
    %3887 = vperm.xlu0 %3886, %v3885
    %v3888 = vpop.permute.xlu0 %3887
    %3890 = vmatprep.subr.mxu0 0.0
    %3891 = vmatpush1.xpose.msra.mxu0 %v3864
    %3892 = vmatprep.subr.mxu0 0.0
    %3893 = vmatpush1.xpose.msra.mxu0 %v3865
    %3894 = vmatprep.subr.mxu0 0.0
    %3895 = vmatpush1.xpose.msra.mxu0 %v3866
    %3896 = vmatprep.subr.mxu0 0.0
    %3897 = vmatpush1.xpose.msra.mxu0 %v3867
    %3898 = vmatprep.subr.mxu0 0.0
    %3899 = vmatpush1.xpose.msra.mxu0 %v3868
    %3900 = vmatprep.subr.mxu0 0.0
    %3901 = vmatpush1.xpose.msra.mxu0 %v3869
    %3902 = vmatprep.subr.mxu0 0.0
    %3903 = vmatpush1.xpose.msra.mxu0 %v3870
    %3904 = vmatprep.subr.mxu0 0.0
    %3905 = vmatpush1.xpose.msra.mxu0 %v3871
    %3906 = vmatprep.subr.mxu0 0.0
    %3907 = vmatpush1.xpose.msra.mxu0 %v3872
    %3908 = vmatprep.subr.mxu0 0.0
    %3909 = vmatpush1.xpose.msra.mxu0 %v3873
    %3910 = vmatprep.subr.mxu0 0.0
    %3911 = vmatpush1.xpose.msra.mxu0 %v3874
    %3912 = vmatprep.subr.mxu0 0.0
    %3913 = vmatpush1.xpose.msra.mxu0 %v3875
    %3914 = vmatprep.subr.mxu0 0.0
    %3915 = vmatpush1.xpose.msra.mxu0 %v3876
    %3916 = vmatprep.subr.mxu0 0.0
    %3917 = vmatpush1.xpose.msra.mxu0 %v3877
    %3918 = vmatprep.subr.mxu0 0.0
    %3919 = vmatpush1.xpose.msra.mxu0 %v3878
    %3920 = vmatprep.subr.mxu0 0.0
    %3921 = vmatpush1.xpose.msra.mxu0 %v3879
    %3922 = vmatprep.subr.mxu0 0.0
    %3923 = vmatpush1.xpose.msra.mxu0 0.0
    %3924 = vmatprep.subr.mxu0 0.0
    %3925 = vmatpush1.xpose.msra.mxu0 0.0
    %3926 = vmatprep.subr.mxu0 0.0
    %3927 = vmatpush1.xpose.msra.mxu0 0.0
    %3928 = vmatprep.subr.mxu0 0.0
    %3929 = vmatpush1.xpose.msra.mxu0 0.0
    %3930 = vmatprep.subr.mxu0 0.0
    %3931 = vmatpush1.xpose.msra.mxu0 0.0
    %3932 = vmatprep.subr.mxu0 0.0
    %3933 = vmatpush1.xpose.msra.mxu0 0.0
    %3934 = vmatprep.subr.mxu0 0.0
    %3935 = vmatpush1.xpose.msra.mxu0 0.0
    %3936 = vmatprep.subr.mxu0 0.0
    %3937 = vmatpush1.xpose.msra.mxu0 0.0
    %3938 = vmatprep.subr.mxu0 0.0
    %3939 = vmatpush1.xpose.msra.mxu0 0.0
    %3940 = vmatprep.subr.mxu0 0.0
    %3941 = vmatpush1.xpose.msra.mxu0 0.0
    %3942 = vmatprep.subr.mxu0 0.0
    %3943 = vmatpush1.xpose.msra.mxu0 0.0
    %3944 = vmatprep.subr.mxu0 0.0
    %3945 = vmatpush1.xpose.msra.mxu0 0.0
    %3946 = vmatprep.subr.mxu0 0.0
    %3947 = vmatpush1.xpose.msra.mxu0 0.0
    %3948 = vmatprep.subr.mxu0 0.0
    %3949 = vmatpush1.xpose.msra.mxu0 0.0
    %3950 = vmatprep.subr.mxu0 0.0
    %3951 = vmatpush1.xpose.msra.mxu0 0.0
    %3952 = vmatprep.subr.mxu0 0.0
    %3953 = vmatpush1.xpose.msra.mxu0 0.0
    %3954 = vmatprep.mubr.f32.mxu0 0.0
    %3955 = vmatmul.mubr.f32.gmra.mrb[0].mxu0 %v3047
    %v3956 = vpop.f32.mrb[0].mxu0
    %v3957 = vadd.f32 %v3888, %v3956
    %v3958 = vpop.f32.mrb[0].mxu0
    %3959 = vdwg.mxu0
    %3960 = vst [vmem:[#allocation3] sm:$0x3] %v3957
    // Predicated region
    $region82: #{deeponet_forward.1} parent=1 // pred_check
      _
    $region83: #{deeponet_forward.1} parent=1 // pred_check_branch
      %3962 = sbr.rel (0) target = $region85
    $region84: #{deeponet_forward.1} parent=1 // pred_region
      %s3964 = ssub.s32 32, 32
      %3965 = vsyncadd [#allocation4], %s3964
      %s3967 = sshll.u32 [#allocation3], 4
      %s3968 = int_to_ptr.vmem [resolvable:$true] %s3967
      %3970 = dma.vmem_to_hbm [thread:$0]  %s3968, 32, %s20, [#allocation4]
    $region85: #{deeponet_forward.1} parent=1 // pred_fallthru
      _
    // Predicated region
    $region86: #{deeponet_forward.1} parent=1 // pred_check
      _
    $region87: #{deeponet_forward.1} parent=1 // pred_check_branch
      %3972 = sbr.rel (0) target = $region89
    $region88: #{deeponet_forward.1} parent=1 // pred_region
      %3973 = dma.done [#allocation4], 32
    $region89: #{deeponet_forward.1} parent=1 // pred_fallthru
      _
    %3974 = vsyncpa [#allocation4], 1

</llo_original>
